<compile_context>
chip_gen: v7x
topology: tpu7x:2x2x1
jax: 0.10.0
libtpu: 0.0.40
codegen_flags: <defaults>
</compile_context>

<pallas_src>
import functools
import math

import jax
import jax.numpy as jnp
from jax import lax
from jax.experimental import pallas as pl
from jax.experimental.pallas import tpu as pltpu


def _srcnn_fused_kernel(x_ref, w1_ref, b1_ref, w2_ref, b2_ref, w3_ref, b3_ref,
                        o_ref, *, kernel_sizes, row_stride):
    """Fused SRCNN forward for one group of images.

    x_ref : (1, Cin, L)        L = images_per_step * H * W, lane-dense lattice
    wK_ref: (Kk*Kk, CoutK, CinK)  per-tap weight slabs
    bK_ref: (CoutK, 1)
    o_ref : (1, Cout3, L)      full-lattice output (valid window cropped in wrapper)
    """
    k1, k2, k3 = kernel_sizes
    L = x_ref.shape[-1]

    def conv_layer(x2d, w_ref, b_ref, k, relu):
        cout = w_ref.shape[1]
        acc = jnp.zeros((cout, L), dtype=jnp.float32)
        for kh in range(k):
            for kw in range(k):
                s = kh * row_stride + kw          # flat tap offset on the lattice
                if s == 0:
                    xs = x2d
                else:
                    # xs[:, p] = x2d[:, (p + s) % L]  (wrap hits only invalid cols)
                    xs = pltpu.roll(x2d, shift=L - s, axis=1)
                acc = acc + jnp.dot(w_ref[kh * k + kw], xs,
                                    preferred_element_type=jnp.float32)
        acc = acc + b_ref[...]                    # (Cout, 1) broadcast over lanes
        if relu:
            acc = jnp.maximum(acc, 0.0)
        return acc                                # (Cout, L), stays in vregs

    x = x_ref[0].astype(jnp.float32)              # (Cin, L) lane-dense
    a1 = conv_layer(x, w1_ref, b1_ref, k1, relu=True)
    a2 = conv_layer(a1, w2_ref, b2_ref, k2, relu=True)
    a3 = conv_layer(a2, w3_ref, b3_ref, k3, relu=False)
    o_ref[0] = a3.astype(o_ref.dtype)             # unmasked, lane-dense store


def srcnn_forward(params, x_nchw, *, images_per_step=None):
    """Equivalent of SRCNN.forward; input and output are NCHW like PyTorch."""
    N, cin, H, W = x_nchw.shape
    wt1, wt2, wt3 = params["w1"], params["w2"], params["w3"]
    bias1, bias2, bias3 = params["b1"], params["b2"], params["b3"]
    n1, _, k1, _ = wt1.shape
    n2, _, k2, _ = wt2.shape
    n3, _, k3, _ = wt3.shape

    h1o, w1o = H - k1 + 1, W - k1 + 1
    h2o, w2o = h1o - k2 + 1, w1o - k2 + 1
    h3o, w3o = h2o - k3 + 1, w2o - k3 + 1

    hw = H * W
    if images_per_step is None:
        # Lane-dense target (>=128 lanes/step) while keeping >=2 grid steps
        # when possible (v7x megacore).
        images_per_step = 1
        while (images_per_step * hw < 128 and images_per_step * 2 <= N
               and N % (images_per_step * 2) == 0):
            images_per_step *= 2
    b_blk = images_per_step
    assert N % b_blk == 0, "batch must be divisible by images_per_step"
    G = N // b_blk
    L = b_blk * hw

    # (N, Cin, H, W) -> (G, Cin, b_blk*H*W); lane index = b_local*H*W + i*W + j.
    xg = (x_nchw.reshape(G, b_blk, cin, hw)
                 .transpose(0, 2, 1, 3)
                 .reshape(G, cin, L))

    def as_taps(w):
        # (Cout, Cin, KH, KW) -> (KH*KW, Cout, Cin); tap index = kh*KW + kw.
        co, ci, kh, kw = w.shape
        return jnp.transpose(w, (2, 3, 0, 1)).reshape(kh * kw, co, ci)

    w1t, w2t, w3t = as_taps(wt1), as_taps(wt2), as_taps(wt3)
    b1c, b2c, b3c = (bias1.reshape(-1, 1), bias2.reshape(-1, 1),
                     bias3.reshape(-1, 1))

    flops = 2 * N * hw * (k1 * k1 * cin * n1 + k2 * k2 * n1 * n2
                          + k3 * k3 * n2 * n3)
    itemsize = jnp.dtype(x_nchw.dtype).itemsize
    bytes_accessed = (x_nchw.size + w1t.size + b1c.size + w2t.size + b2c.size
                      + w3t.size + b3c.size + N * n3 * hw) * itemsize

    out_full = pl.pallas_call(
        functools.partial(_srcnn_fused_kernel,
                          kernel_sizes=(k1, k2, k3), row_stride=W),
        out_shape=jax.ShapeDtypeStruct((G, n3, L), x_nchw.dtype),
        grid=(G,),
        in_specs=[
            pl.BlockSpec((1, cin, L), lambda g: (g, 0, 0)),
            pl.BlockSpec(w1t.shape, lambda g: (0, 0, 0)),
            pl.BlockSpec(b1c.shape, lambda g: (0, 0)),
            pl.BlockSpec(w2t.shape, lambda g: (0, 0, 0)),
            pl.BlockSpec(b2c.shape, lambda g: (0, 0)),
            pl.BlockSpec(w3t.shape, lambda g: (0, 0, 0)),
            pl.BlockSpec(b3c.shape, lambda g: (0, 0)),
        ],
        out_specs=pl.BlockSpec((1, n3, L), lambda g: (g, 0, 0)),
        compiler_params=pltpu.CompilerParams(
            dimension_semantics=("parallel",),
            vmem_limit_bytes=32 * 1024 * 1024),
        cost_estimate=pl.CostEstimate(
            flops=flops, transcendentals=0, bytes_accessed=bytes_accessed),
    )(xg, w1t, b1c, w2t, b2c, w3t, b3c)

    # (G, Cout, L) -> (N, Cout, H, W) -> crop the valid conv3 window (NCHW).
    out = (out_full.reshape(G, n3, b_blk, H, W)
                   .transpose(0, 2, 1, 3, 4)
                   .reshape(N, n3, H, W))
    return out[:, :, :h3o, :w3o]


def xavier_normal_conv(key, cout, cin, k):
    """Matches nn.init.xavier_normal_ for a Conv2d weight (Cout, Cin, K, K)."""
    fan_in = cin * k * k
    fan_out = cout * k * k
    std = math.sqrt(2.0 / (fan_in + fan_out))
    return jax.random.normal(key, (cout, cin, k, k), jnp.float32) * std


def init_srcnn_params(key, kernel_list, filters_list, num_channels=3):
    f1, f2, f3 = kernel_list
    n1, n2, _ = filters_list          # conv3 out-channels = num_channels
    k1, k2, k3 = jax.random.split(key, 3)
    return {
        "w1": xavier_normal_conv(k1, n1, num_channels, f1),
        "b1": jnp.zeros((n1,), jnp.float32),
        "w2": xavier_normal_conv(k2, n2, n1, f2),
        "b2": jnp.zeros((n2,), jnp.float32),
        "w3": xavier_normal_conv(k3, num_channels, n2, f3),
        "b3": jnp.zeros((num_channels,), jnp.float32),
    }


def _reference_forward(params, x_nchw):
    """Pure-JAX reference (lax.conv, NCHW/OIHW) for the correctness check."""
    def conv(x, w, b, relu):
        y = lax.conv_general_dilated(
            x, w, window_strides=(1, 1), padding="VALID",
            dimension_numbers=("NCHW", "OIHW", "NCHW"),
            precision=lax.Precision.HIGHEST)
        y = y + b[None, :, None, None]
        return jnp.maximum(y, 0.0) if relu else y

    x = conv(x_nchw, params["w1"], params["b1"], True)
    x = conv(x, params["w2"], params["b2"], True)
    x = conv(x, params["w3"], params["b3"], False)
    return x


if __name__ == "__main__":
    # Small SRCNN config: kernels (5,3,3), filters (8,8,3), RGB channels.
    kernel_list = (5, 3, 3)
    filters_list = (8, 8, 3)
    num_channels = 3

    key = jax.random.PRNGKey(0)
    pkey, xkey = jax.random.split(key)
    params = init_srcnn_params(pkey, kernel_list, filters_list, num_channels)

    # Input: NCHW, batch=2, channels=3, spatial=16x16 (PyTorch convention).
    x = jax.random.normal(xkey, (2, num_channels, 16, 16), jnp.float32)

    fwd = jax.jit(srcnn_forward)
    out = jax.block_until_ready(fwd(params, x))

    ref = _reference_forward(params, x)
    assert out.shape == ref.shape == (2, 3, 8, 8), out.shape
    assert jnp.allclose(out, ref, atol=1e-4, rtol=1e-4), "mismatch vs reference"

    print("KERNEL_OK")
</pallas_src>

<mosaic_0001>
module attributes {stable_mosaic.version = 11 : i64} {
  func.func @_srcnn_fused_kernel(%arg0: i32, %arg1: memref<1x3x256xf32, #tpu.memory_space<vmem>>, %arg2: memref<25x8x3xf32, #tpu.memory_space<vmem>>, %arg3: memref<8x1xf32, #tpu.memory_space<vmem>>, %arg4: memref<9x8x8xf32, #tpu.memory_space<vmem>>, %arg5: memref<8x1xf32, #tpu.memory_space<vmem>>, %arg6: memref<9x3x8xf32, #tpu.memory_space<vmem>>, %arg7: memref<3x1xf32, #tpu.memory_space<vmem>>, %arg8: memref<1x3x256xf32, #tpu.memory_space<vmem>>) attributes {dimension_semantics = [#tpu.dimension_semantics<parallel>], iteration_bounds = array<i64: 2>, scalar_prefetch = 0 : i64, scratch_operands = 0 : i64, tpu.core_type = #tpu.core_type<tc>, window_params = [{transform_indices = @transform_0, window_bounds = array<i64: 1, 3, 256>}, {pipeline_mode = #tpu.pipeline_mode<synchronous>, transform_indices = @transform_1, window_bounds = array<i64: 25, 8, 3>}, {pipeline_mode = #tpu.pipeline_mode<synchronous>, transform_indices = @transform_2, window_bounds = array<i64: 8, 1>}, {pipeline_mode = #tpu.pipeline_mode<synchronous>, transform_indices = @transform_3, window_bounds = array<i64: 9, 8, 8>}, {pipeline_mode = #tpu.pipeline_mode<synchronous>, transform_indices = @transform_4, window_bounds = array<i64: 8, 1>}, {pipeline_mode = #tpu.pipeline_mode<synchronous>, transform_indices = @transform_5, window_bounds = array<i64: 9, 3, 8>}, {pipeline_mode = #tpu.pipeline_mode<synchronous>, transform_indices = @transform_6, window_bounds = array<i64: 3, 1>}, {transform_indices = @transform_7, window_bounds = array<i64: 1, 3, 256>}]} {
    %c0 = arith.constant 0 : index
    %c0_0 = arith.constant 0 : index
    %c0_1 = arith.constant 0 : index
    %0 = vector.load %arg1[%c0, %c0_0, %c0_1] : memref<1x3x256xf32, #tpu.memory_space<vmem>>, vector<1x3x256xf32>
    %1 = vector.shape_cast %0 : vector<1x3x256xf32> to vector<3x256xf32>
    %cst = arith.constant 0.000000e+00 : f32
    %2 = vector.broadcast %cst : f32 to vector<8x256xf32>
    %c0_2 = arith.constant 0 : index
    %c0_3 = arith.constant 0 : index
    %c0_4 = arith.constant 0 : index
    %3 = vector.load %arg2[%c0_2, %c0_3, %c0_4] : memref<25x8x3xf32, #tpu.memory_space<vmem>>, vector<1x8x3xf32>
    %4 = vector.shape_cast %3 : vector<1x8x3xf32> to vector<8x3xf32>
    %cst_5 = arith.constant dense<0.000000e+00> : vector<8x256xf32>
    %5 = tpu.matmul %4, %1, %cst_5 {dimension_numbers = #tpu.dot_dimension_numbers<[1], [0], [0], [1], [0, 0, 1, 1], [], []>} : vector<8x3xf32>, vector<3x256xf32>, vector<8x256xf32> -> vector<8x256xf32>
    %6 = arith.addf %2, %5 : vector<8x256xf32>
    %c255_i32 = arith.constant 255 : i32
    %7 = tpu.dynamic_rotate %1 by %c255_i32 dim 1 : vector<3x256xf32>, i32 -> vector<3x256xf32>
    %c1 = arith.constant 1 : index
    %c0_6 = arith.constant 0 : index
    %c0_7 = arith.constant 0 : index
    %8 = vector.load %arg2[%c1, %c0_6, %c0_7] : memref<25x8x3xf32, #tpu.memory_space<vmem>>, vector<1x8x3xf32>
    %9 = vector.shape_cast %8 : vector<1x8x3xf32> to vector<8x3xf32>
    %cst_8 = arith.constant dense<0.000000e+00> : vector<8x256xf32>
    %10 = tpu.matmul %9, %7, %cst_8 {dimension_numbers = #tpu.dot_dimension_numbers<[1], [0], [0], [1], [0, 0, 1, 1], [], []>} : vector<8x3xf32>, vector<3x256xf32>, vector<8x256xf32> -> vector<8x256xf32>
    %11 = arith.addf %6, %10 : vector<8x256xf32>
    %c254_i32 = arith.constant 254 : i32
    %12 = tpu.dynamic_rotate %1 by %c254_i32 dim 1 : vector<3x256xf32>, i32 -> vector<3x256xf32>
    %c2 = arith.constant 2 : index
    %c0_9 = arith.constant 0 : index
    %c0_10 = arith.constant 0 : index
    %13 = vector.load %arg2[%c2, %c0_9, %c0_10] : memref<25x8x3xf32, #tpu.memory_space<vmem>>, vector<1x8x3xf32>
    %14 = vector.shape_cast %13 : vector<1x8x3xf32> to vector<8x3xf32>
    %cst_11 = arith.constant dense<0.000000e+00> : vector<8x256xf32>
    %15 = tpu.matmul %14, %12, %cst_11 {dimension_numbers = #tpu.dot_dimension_numbers<[1], [0], [0], [1], [0, 0, 1, 1], [], []>} : vector<8x3xf32>, vector<3x256xf32>, vector<8x256xf32> -> vector<8x256xf32>
    %16 = arith.addf %11, %15 : vector<8x256xf32>
    %c253_i32 = arith.constant 253 : i32
    %17 = tpu.dynamic_rotate %1 by %c253_i32 dim 1 : vector<3x256xf32>, i32 -> vector<3x256xf32>
    %c3 = arith.constant 3 : index
    %c0_12 = arith.constant 0 : index
    %c0_13 = arith.constant 0 : index
    %18 = vector.load %arg2[%c3, %c0_12, %c0_13] : memref<25x8x3xf32, #tpu.memory_space<vmem>>, vector<1x8x3xf32>
    %19 = vector.shape_cast %18 : vector<1x8x3xf32> to vector<8x3xf32>
    %cst_14 = arith.constant dense<0.000000e+00> : vector<8x256xf32>
    %20 = tpu.matmul %19, %17, %cst_14 {dimension_numbers = #tpu.dot_dimension_numbers<[1], [0], [0], [1], [0, 0, 1, 1], [], []>} : vector<8x3xf32>, vector<3x256xf32>, vector<8x256xf32> -> vector<8x256xf32>
    %21 = arith.addf %16, %20 : vector<8x256xf32>
    %c252_i32 = arith.constant 252 : i32
    %22 = tpu.dynamic_rotate %1 by %c252_i32 dim 1 : vector<3x256xf32>, i32 -> vector<3x256xf32>
    %c4 = arith.constant 4 : index
    %c0_15 = arith.constant 0 : index
    %c0_16 = arith.constant 0 : index
    %23 = vector.load %arg2[%c4, %c0_15, %c0_16] : memref<25x8x3xf32, #tpu.memory_space<vmem>>, vector<1x8x3xf32>
    %24 = vector.shape_cast %23 : vector<1x8x3xf32> to vector<8x3xf32>
    %cst_17 = arith.constant dense<0.000000e+00> : vector<8x256xf32>
    %25 = tpu.matmul %24, %22, %cst_17 {dimension_numbers = #tpu.dot_dimension_numbers<[1], [0], [0], [1], [0, 0, 1, 1], [], []>} : vector<8x3xf32>, vector<3x256xf32>, vector<8x256xf32> -> vector<8x256xf32>
    %26 = arith.addf %21, %25 : vector<8x256xf32>
    %c240_i32 = arith.constant 240 : i32
    %27 = tpu.dynamic_rotate %1 by %c240_i32 dim 1 : vector<3x256xf32>, i32 -> vector<3x256xf32>
    %c5 = arith.constant 5 : index
    %c0_18 = arith.constant 0 : index
    %c0_19 = arith.constant 0 : index
    %28 = vector.load %arg2[%c5, %c0_18, %c0_19] : memref<25x8x3xf32, #tpu.memory_space<vmem>>, vector<1x8x3xf32>
    %29 = vector.shape_cast %28 : vector<1x8x3xf32> to vector<8x3xf32>
    %cst_20 = arith.constant dense<0.000000e+00> : vector<8x256xf32>
    %30 = tpu.matmul %29, %27, %cst_20 {dimension_numbers = #tpu.dot_dimension_numbers<[1], [0], [0], [1], [0, 0, 1, 1], [], []>} : vector<8x3xf32>, vector<3x256xf32>, vector<8x256xf32> -> vector<8x256xf32>
    %31 = arith.addf %26, %30 : vector<8x256xf32>
    %c239_i32 = arith.constant 239 : i32
    %32 = tpu.dynamic_rotate %1 by %c239_i32 dim 1 : vector<3x256xf32>, i32 -> vector<3x256xf32>
    %c6 = arith.constant 6 : index
    %c0_21 = arith.constant 0 : index
    %c0_22 = arith.constant 0 : index
    %33 = vector.load %arg2[%c6, %c0_21, %c0_22] : memref<25x8x3xf32, #tpu.memory_space<vmem>>, vector<1x8x3xf32>
    %34 = vector.shape_cast %33 : vector<1x8x3xf32> to vector<8x3xf32>
    %cst_23 = arith.constant dense<0.000000e+00> : vector<8x256xf32>
    %35 = tpu.matmul %34, %32, %cst_23 {dimension_numbers = #tpu.dot_dimension_numbers<[1], [0], [0], [1], [0, 0, 1, 1], [], []>} : vector<8x3xf32>, vector<3x256xf32>, vector<8x256xf32> -> vector<8x256xf32>
    %36 = arith.addf %31, %35 : vector<8x256xf32>
    %c238_i32 = arith.constant 238 : i32
    %37 = tpu.dynamic_rotate %1 by %c238_i32 dim 1 : vector<3x256xf32>, i32 -> vector<3x256xf32>
    %c7 = arith.constant 7 : index
    %c0_24 = arith.constant 0 : index
    %c0_25 = arith.constant 0 : index
    %38 = vector.load %arg2[%c7, %c0_24, %c0_25] : memref<25x8x3xf32, #tpu.memory_space<vmem>>, vector<1x8x3xf32>
    %39 = vector.shape_cast %38 : vector<1x8x3xf32> to vector<8x3xf32>
    %cst_26 = arith.constant dense<0.000000e+00> : vector<8x256xf32>
    %40 = tpu.matmul %39, %37, %cst_26 {dimension_numbers = #tpu.dot_dimension_numbers<[1], [0], [0], [1], [0, 0, 1, 1], [], []>} : vector<8x3xf32>, vector<3x256xf32>, vector<8x256xf32> -> vector<8x256xf32>
    %41 = arith.addf %36, %40 : vector<8x256xf32>
    %c237_i32 = arith.constant 237 : i32
    %42 = tpu.dynamic_rotate %1 by %c237_i32 dim 1 : vector<3x256xf32>, i32 -> vector<3x256xf32>
    %c8 = arith.constant 8 : index
    %c0_27 = arith.constant 0 : index
    %c0_28 = arith.constant 0 : index
    %43 = vector.load %arg2[%c8, %c0_27, %c0_28] : memref<25x8x3xf32, #tpu.memory_space<vmem>>, vector<1x8x3xf32>
    %44 = vector.shape_cast %43 : vector<1x8x3xf32> to vector<8x3xf32>
    %cst_29 = arith.constant dense<0.000000e+00> : vector<8x256xf32>
    %45 = tpu.matmul %44, %42, %cst_29 {dimension_numbers = #tpu.dot_dimension_numbers<[1], [0], [0], [1], [0, 0, 1, 1], [], []>} : vector<8x3xf32>, vector<3x256xf32>, vector<8x256xf32> -> vector<8x256xf32>
    %46 = arith.addf %41, %45 : vector<8x256xf32>
    %c236_i32 = arith.constant 236 : i32
    %47 = tpu.dynamic_rotate %1 by %c236_i32 dim 1 : vector<3x256xf32>, i32 -> vector<3x256xf32>
    %c9 = arith.constant 9 : index
    %c0_30 = arith.constant 0 : index
    %c0_31 = arith.constant 0 : index
    %48 = vector.load %arg2[%c9, %c0_30, %c0_31] : memref<25x8x3xf32, #tpu.memory_space<vmem>>, vector<1x8x3xf32>
    %49 = vector.shape_cast %48 : vector<1x8x3xf32> to vector<8x3xf32>
    %cst_32 = arith.constant dense<0.000000e+00> : vector<8x256xf32>
    %50 = tpu.matmul %49, %47, %cst_32 {dimension_numbers = #tpu.dot_dimension_numbers<[1], [0], [0], [1], [0, 0, 1, 1], [], []>} : vector<8x3xf32>, vector<3x256xf32>, vector<8x256xf32> -> vector<8x256xf32>
    %51 = arith.addf %46, %50 : vector<8x256xf32>
    %c224_i32 = arith.constant 224 : i32
    %52 = tpu.dynamic_rotate %1 by %c224_i32 dim 1 : vector<3x256xf32>, i32 -> vector<3x256xf32>
    %c10 = arith.constant 10 : index
    %c0_33 = arith.constant 0 : index
    %c0_34 = arith.constant 0 : index
    %53 = vector.load %arg2[%c10, %c0_33, %c0_34] : memref<25x8x3xf32, #tpu.memory_space<vmem>>, vector<1x8x3xf32>
    %54 = vector.shape_cast %53 : vector<1x8x3xf32> to vector<8x3xf32>
    %cst_35 = arith.constant dense<0.000000e+00> : vector<8x256xf32>
    %55 = tpu.matmul %54, %52, %cst_35 {dimension_numbers = #tpu.dot_dimension_numbers<[1], [0], [0], [1], [0, 0, 1, 1], [], []>} : vector<8x3xf32>, vector<3x256xf32>, vector<8x256xf32> -> vector<8x256xf32>
    %56 = arith.addf %51, %55 : vector<8x256xf32>
    %c223_i32 = arith.constant 223 : i32
    %57 = tpu.dynamic_rotate %1 by %c223_i32 dim 1 : vector<3x256xf32>, i32 -> vector<3x256xf32>
    %c11 = arith.constant 11 : index
    %c0_36 = arith.constant 0 : index
    %c0_37 = arith.constant 0 : index
    %58 = vector.load %arg2[%c11, %c0_36, %c0_37] : memref<25x8x3xf32, #tpu.memory_space<vmem>>, vector<1x8x3xf32>
    %59 = vector.shape_cast %58 : vector<1x8x3xf32> to vector<8x3xf32>
    %cst_38 = arith.constant dense<0.000000e+00> : vector<8x256xf32>
    %60 = tpu.matmul %59, %57, %cst_38 {dimension_numbers = #tpu.dot_dimension_numbers<[1], [0], [0], [1], [0, 0, 1, 1], [], []>} : vector<8x3xf32>, vector<3x256xf32>, vector<8x256xf32> -> vector<8x256xf32>
    %61 = arith.addf %56, %60 : vector<8x256xf32>
    %c222_i32 = arith.constant 222 : i32
    %62 = tpu.dynamic_rotate %1 by %c222_i32 dim 1 : vector<3x256xf32>, i32 -> vector<3x256xf32>
    %c12 = arith.constant 12 : index
    %c0_39 = arith.constant 0 : index
    %c0_40 = arith.constant 0 : index
    %63 = vector.load %arg2[%c12, %c0_39, %c0_40] : memref<25x8x3xf32, #tpu.memory_space<vmem>>, vector<1x8x3xf32>
    %64 = vector.shape_cast %63 : vector<1x8x3xf32> to vector<8x3xf32>
    %cst_41 = arith.constant dense<0.000000e+00> : vector<8x256xf32>
    %65 = tpu.matmul %64, %62, %cst_41 {dimension_numbers = #tpu.dot_dimension_numbers<[1], [0], [0], [1], [0, 0, 1, 1], [], []>} : vector<8x3xf32>, vector<3x256xf32>, vector<8x256xf32> -> vector<8x256xf32>
    %66 = arith.addf %61, %65 : vector<8x256xf32>
    %c221_i32 = arith.constant 221 : i32
    %67 = tpu.dynamic_rotate %1 by %c221_i32 dim 1 : vector<3x256xf32>, i32 -> vector<3x256xf32>
    %c13 = arith.constant 13 : index
    %c0_42 = arith.constant 0 : index
    %c0_43 = arith.constant 0 : index
    %68 = vector.load %arg2[%c13, %c0_42, %c0_43] : memref<25x8x3xf32, #tpu.memory_space<vmem>>, vector<1x8x3xf32>
    %69 = vector.shape_cast %68 : vector<1x8x3xf32> to vector<8x3xf32>
    %cst_44 = arith.constant dense<0.000000e+00> : vector<8x256xf32>
    %70 = tpu.matmul %69, %67, %cst_44 {dimension_numbers = #tpu.dot_dimension_numbers<[1], [0], [0], [1], [0, 0, 1, 1], [], []>} : vector<8x3xf32>, vector<3x256xf32>, vector<8x256xf32> -> vector<8x256xf32>
    %71 = arith.addf %66, %70 : vector<8x256xf32>
    %c220_i32 = arith.constant 220 : i32
    %72 = tpu.dynamic_rotate %1 by %c220_i32 dim 1 : vector<3x256xf32>, i32 -> vector<3x256xf32>
    %c14 = arith.constant 14 : index
    %c0_45 = arith.constant 0 : index
    %c0_46 = arith.constant 0 : index
    %73 = vector.load %arg2[%c14, %c0_45, %c0_46] : memref<25x8x3xf32, #tpu.memory_space<vmem>>, vector<1x8x3xf32>
    %74 = vector.shape_cast %73 : vector<1x8x3xf32> to vector<8x3xf32>
    %cst_47 = arith.constant dense<0.000000e+00> : vector<8x256xf32>
    %75 = tpu.matmul %74, %72, %cst_47 {dimension_numbers = #tpu.dot_dimension_numbers<[1], [0], [0], [1], [0, 0, 1, 1], [], []>} : vector<8x3xf32>, vector<3x256xf32>, vector<8x256xf32> -> vector<8x256xf32>
    %76 = arith.addf %71, %75 : vector<8x256xf32>
    %c208_i32 = arith.constant 208 : i32
    %77 = tpu.dynamic_rotate %1 by %c208_i32 dim 1 : vector<3x256xf32>, i32 -> vector<3x256xf32>
    %c15 = arith.constant 15 : index
    %c0_48 = arith.constant 0 : index
    %c0_49 = arith.constant 0 : index
    %78 = vector.load %arg2[%c15, %c0_48, %c0_49] : memref<25x8x3xf32, #tpu.memory_space<vmem>>, vector<1x8x3xf32>
    %79 = vector.shape_cast %78 : vector<1x8x3xf32> to vector<8x3xf32>
    %cst_50 = arith.constant dense<0.000000e+00> : vector<8x256xf32>
    %80 = tpu.matmul %79, %77, %cst_50 {dimension_numbers = #tpu.dot_dimension_numbers<[1], [0], [0], [1], [0, 0, 1, 1], [], []>} : vector<8x3xf32>, vector<3x256xf32>, vector<8x256xf32> -> vector<8x256xf32>
    %81 = arith.addf %76, %80 : vector<8x256xf32>
    %c207_i32 = arith.constant 207 : i32
    %82 = tpu.dynamic_rotate %1 by %c207_i32 dim 1 : vector<3x256xf32>, i32 -> vector<3x256xf32>
    %c16 = arith.constant 16 : index
    %c0_51 = arith.constant 0 : index
    %c0_52 = arith.constant 0 : index
    %83 = vector.load %arg2[%c16, %c0_51, %c0_52] : memref<25x8x3xf32, #tpu.memory_space<vmem>>, vector<1x8x3xf32>
    %84 = vector.shape_cast %83 : vector<1x8x3xf32> to vector<8x3xf32>
    %cst_53 = arith.constant dense<0.000000e+00> : vector<8x256xf32>
    %85 = tpu.matmul %84, %82, %cst_53 {dimension_numbers = #tpu.dot_dimension_numbers<[1], [0], [0], [1], [0, 0, 1, 1], [], []>} : vector<8x3xf32>, vector<3x256xf32>, vector<8x256xf32> -> vector<8x256xf32>
    %86 = arith.addf %81, %85 : vector<8x256xf32>
    %c206_i32 = arith.constant 206 : i32
    %87 = tpu.dynamic_rotate %1 by %c206_i32 dim 1 : vector<3x256xf32>, i32 -> vector<3x256xf32>
    %c17 = arith.constant 17 : index
    %c0_54 = arith.constant 0 : index
    %c0_55 = arith.constant 0 : index
    %88 = vector.load %arg2[%c17, %c0_54, %c0_55] : memref<25x8x3xf32, #tpu.memory_space<vmem>>, vector<1x8x3xf32>
    %89 = vector.shape_cast %88 : vector<1x8x3xf32> to vector<8x3xf32>
    %cst_56 = arith.constant dense<0.000000e+00> : vector<8x256xf32>
    %90 = tpu.matmul %89, %87, %cst_56 {dimension_numbers = #tpu.dot_dimension_numbers<[1], [0], [0], [1], [0, 0, 1, 1], [], []>} : vector<8x3xf32>, vector<3x256xf32>, vector<8x256xf32> -> vector<8x256xf32>
    %91 = arith.addf %86, %90 : vector<8x256xf32>
    %c205_i32 = arith.constant 205 : i32
    %92 = tpu.dynamic_rotate %1 by %c205_i32 dim 1 : vector<3x256xf32>, i32 -> vector<3x256xf32>
    %c18 = arith.constant 18 : index
    %c0_57 = arith.constant 0 : index
    %c0_58 = arith.constant 0 : index
    %93 = vector.load %arg2[%c18, %c0_57, %c0_58] : memref<25x8x3xf32, #tpu.memory_space<vmem>>, vector<1x8x3xf32>
    %94 = vector.shape_cast %93 : vector<1x8x3xf32> to vector<8x3xf32>
    %cst_59 = arith.constant dense<0.000000e+00> : vector<8x256xf32>
    %95 = tpu.matmul %94, %92, %cst_59 {dimension_numbers = #tpu.dot_dimension_numbers<[1], [0], [0], [1], [0, 0, 1, 1], [], []>} : vector<8x3xf32>, vector<3x256xf32>, vector<8x256xf32> -> vector<8x256xf32>
    %96 = arith.addf %91, %95 : vector<8x256xf32>
    %c204_i32 = arith.constant 204 : i32
    %97 = tpu.dynamic_rotate %1 by %c204_i32 dim 1 : vector<3x256xf32>, i32 -> vector<3x256xf32>
    %c19 = arith.constant 19 : index
    %c0_60 = arith.constant 0 : index
    %c0_61 = arith.constant 0 : index
    %98 = vector.load %arg2[%c19, %c0_60, %c0_61] : memref<25x8x3xf32, #tpu.memory_space<vmem>>, vector<1x8x3xf32>
    %99 = vector.shape_cast %98 : vector<1x8x3xf32> to vector<8x3xf32>
    %cst_62 = arith.constant dense<0.000000e+00> : vector<8x256xf32>
    %100 = tpu.matmul %99, %97, %cst_62 {dimension_numbers = #tpu.dot_dimension_numbers<[1], [0], [0], [1], [0, 0, 1, 1], [], []>} : vector<8x3xf32>, vector<3x256xf32>, vector<8x256xf32> -> vector<8x256xf32>
    %101 = arith.addf %96, %100 : vector<8x256xf32>
    %c192_i32 = arith.constant 192 : i32
    %102 = tpu.dynamic_rotate %1 by %c192_i32 dim 1 : vector<3x256xf32>, i32 -> vector<3x256xf32>
    %c20 = arith.constant 20 : index
    %c0_63 = arith.constant 0 : index
    %c0_64 = arith.constant 0 : index
    %103 = vector.load %arg2[%c20, %c0_63, %c0_64] : memref<25x8x3xf32, #tpu.memory_space<vmem>>, vector<1x8x3xf32>
    %104 = vector.shape_cast %103 : vector<1x8x3xf32> to vector<8x3xf32>
    %cst_65 = arith.constant dense<0.000000e+00> : vector<8x256xf32>
    %105 = tpu.matmul %104, %102, %cst_65 {dimension_numbers = #tpu.dot_dimension_numbers<[1], [0], [0], [1], [0, 0, 1, 1], [], []>} : vector<8x3xf32>, vector<3x256xf32>, vector<8x256xf32> -> vector<8x256xf32>
    %106 = arith.addf %101, %105 : vector<8x256xf32>
    %c191_i32 = arith.constant 191 : i32
    %107 = tpu.dynamic_rotate %1 by %c191_i32 dim 1 : vector<3x256xf32>, i32 -> vector<3x256xf32>
    %c21 = arith.constant 21 : index
    %c0_66 = arith.constant 0 : index
    %c0_67 = arith.constant 0 : index
    %108 = vector.load %arg2[%c21, %c0_66, %c0_67] : memref<25x8x3xf32, #tpu.memory_space<vmem>>, vector<1x8x3xf32>
    %109 = vector.shape_cast %108 : vector<1x8x3xf32> to vector<8x3xf32>
    %cst_68 = arith.constant dense<0.000000e+00> : vector<8x256xf32>
    %110 = tpu.matmul %109, %107, %cst_68 {dimension_numbers = #tpu.dot_dimension_numbers<[1], [0], [0], [1], [0, 0, 1, 1], [], []>} : vector<8x3xf32>, vector<3x256xf32>, vector<8x256xf32> -> vector<8x256xf32>
    %111 = arith.addf %106, %110 : vector<8x256xf32>
    %c190_i32 = arith.constant 190 : i32
    %112 = tpu.dynamic_rotate %1 by %c190_i32 dim 1 : vector<3x256xf32>, i32 -> vector<3x256xf32>
    %c22 = arith.constant 22 : index
    %c0_69 = arith.constant 0 : index
    %c0_70 = arith.constant 0 : index
    %113 = vector.load %arg2[%c22, %c0_69, %c0_70] : memref<25x8x3xf32, #tpu.memory_space<vmem>>, vector<1x8x3xf32>
    %114 = vector.shape_cast %113 : vector<1x8x3xf32> to vector<8x3xf32>
    %cst_71 = arith.constant dense<0.000000e+00> : vector<8x256xf32>
    %115 = tpu.matmul %114, %112, %cst_71 {dimension_numbers = #tpu.dot_dimension_numbers<[1], [0], [0], [1], [0, 0, 1, 1], [], []>} : vector<8x3xf32>, vector<3x256xf32>, vector<8x256xf32> -> vector<8x256xf32>
    %116 = arith.addf %111, %115 : vector<8x256xf32>
    %c189_i32 = arith.constant 189 : i32
    %117 = tpu.dynamic_rotate %1 by %c189_i32 dim 1 : vector<3x256xf32>, i32 -> vector<3x256xf32>
    %c23 = arith.constant 23 : index
    %c0_72 = arith.constant 0 : index
    %c0_73 = arith.constant 0 : index
    %118 = vector.load %arg2[%c23, %c0_72, %c0_73] : memref<25x8x3xf32, #tpu.memory_space<vmem>>, vector<1x8x3xf32>
    %119 = vector.shape_cast %118 : vector<1x8x3xf32> to vector<8x3xf32>
    %cst_74 = arith.constant dense<0.000000e+00> : vector<8x256xf32>
    %120 = tpu.matmul %119, %117, %cst_74 {dimension_numbers = #tpu.dot_dimension_numbers<[1], [0], [0], [1], [0, 0, 1, 1], [], []>} : vector<8x3xf32>, vector<3x256xf32>, vector<8x256xf32> -> vector<8x256xf32>
    %121 = arith.addf %116, %120 : vector<8x256xf32>
    %c188_i32 = arith.constant 188 : i32
    %122 = tpu.dynamic_rotate %1 by %c188_i32 dim 1 : vector<3x256xf32>, i32 -> vector<3x256xf32>
    %c24 = arith.constant 24 : index
    %c0_75 = arith.constant 0 : index
    %c0_76 = arith.constant 0 : index
    %123 = vector.load %arg2[%c24, %c0_75, %c0_76] : memref<25x8x3xf32, #tpu.memory_space<vmem>>, vector<1x8x3xf32>
    %124 = vector.shape_cast %123 : vector<1x8x3xf32> to vector<8x3xf32>
    %cst_77 = arith.constant dense<0.000000e+00> : vector<8x256xf32>
    %125 = tpu.matmul %124, %122, %cst_77 {dimension_numbers = #tpu.dot_dimension_numbers<[1], [0], [0], [1], [0, 0, 1, 1], [], []>} : vector<8x3xf32>, vector<3x256xf32>, vector<8x256xf32> -> vector<8x256xf32>
    %126 = arith.addf %121, %125 : vector<8x256xf32>
    %c0_78 = arith.constant 0 : index
    %c0_79 = arith.constant 0 : index
    %127 = vector.load %arg3[%c0_78, %c0_79] : memref<8x1xf32, #tpu.memory_space<vmem>>, vector<8x1xf32>
    %128 = vector.broadcast %127 : vector<8x1xf32> to vector<8x256xf32>
    %129 = arith.addf %126, %128 : vector<8x256xf32>
    %cst_80 = arith.constant 0.000000e+00 : f32
    %130 = vector.broadcast %cst_80 : f32 to vector<8x256xf32>
    %131 = arith.maximumf %129, %130 : vector<8x256xf32>
    %cst_81 = arith.constant 0.000000e+00 : f32
    %132 = vector.broadcast %cst_81 : f32 to vector<8x256xf32>
    %c0_82 = arith.constant 0 : index
    %c0_83 = arith.constant 0 : index
    %c0_84 = arith.constant 0 : index
    %133 = vector.load %arg4[%c0_82, %c0_83, %c0_84] : memref<9x8x8xf32, #tpu.memory_space<vmem>>, vector<1x8x8xf32>
    %134 = vector.shape_cast %133 : vector<1x8x8xf32> to vector<8x8xf32>
    %cst_85 = arith.constant dense<0.000000e+00> : vector<8x256xf32>
    %135 = tpu.matmul %134, %131, %cst_85 {dimension_numbers = #tpu.dot_dimension_numbers<[1], [0], [0], [1], [0, 0, 1, 1], [], []>} : vector<8x8xf32>, vector<8x256xf32>, vector<8x256xf32> -> vector<8x256xf32>
    %136 = arith.addf %132, %135 : vector<8x256xf32>
    %c255_i32_86 = arith.constant 255 : i32
    %137 = tpu.dynamic_rotate %131 by %c255_i32_86 dim 1 : vector<8x256xf32>, i32 -> vector<8x256xf32>
    %c1_87 = arith.constant 1 : index
    %c0_88 = arith.constant 0 : index
    %c0_89 = arith.constant 0 : index
    %138 = vector.load %arg4[%c1_87, %c0_88, %c0_89] : memref<9x8x8xf32, #tpu.memory_space<vmem>>, vector<1x8x8xf32>
    %139 = vector.shape_cast %138 : vector<1x8x8xf32> to vector<8x8xf32>
    %cst_90 = arith.constant dense<0.000000e+00> : vector<8x256xf32>
    %140 = tpu.matmul %139, %137, %cst_90 {dimension_numbers = #tpu.dot_dimension_numbers<[1], [0], [0], [1], [0, 0, 1, 1], [], []>} : vector<8x8xf32>, vector<8x256xf32>, vector<8x256xf32> -> vector<8x256xf32>
    %141 = arith.addf %136, %140 : vector<8x256xf32>
    %c254_i32_91 = arith.constant 254 : i32
    %142 = tpu.dynamic_rotate %131 by %c254_i32_91 dim 1 : vector<8x256xf32>, i32 -> vector<8x256xf32>
    %c2_92 = arith.constant 2 : index
    %c0_93 = arith.constant 0 : index
    %c0_94 = arith.constant 0 : index
    %143 = vector.load %arg4[%c2_92, %c0_93, %c0_94] : memref<9x8x8xf32, #tpu.memory_space<vmem>>, vector<1x8x8xf32>
    %144 = vector.shape_cast %143 : vector<1x8x8xf32> to vector<8x8xf32>
    %cst_95 = arith.constant dense<0.000000e+00> : vector<8x256xf32>
    %145 = tpu.matmul %144, %142, %cst_95 {dimension_numbers = #tpu.dot_dimension_numbers<[1], [0], [0], [1], [0, 0, 1, 1], [], []>} : vector<8x8xf32>, vector<8x256xf32>, vector<8x256xf32> -> vector<8x256xf32>
    %146 = arith.addf %141, %145 : vector<8x256xf32>
    %c240_i32_96 = arith.constant 240 : i32
    %147 = tpu.dynamic_rotate %131 by %c240_i32_96 dim 1 : vector<8x256xf32>, i32 -> vector<8x256xf32>
    %c3_97 = arith.constant 3 : index
    %c0_98 = arith.constant 0 : index
    %c0_99 = arith.constant 0 : index
    %148 = vector.load %arg4[%c3_97, %c0_98, %c0_99] : memref<9x8x8xf32, #tpu.memory_space<vmem>>, vector<1x8x8xf32>
    %149 = vector.shape_cast %148 : vector<1x8x8xf32> to vector<8x8xf32>
    %cst_100 = arith.constant dense<0.000000e+00> : vector<8x256xf32>
    %150 = tpu.matmul %149, %147, %cst_100 {dimension_numbers = #tpu.dot_dimension_numbers<[1], [0], [0], [1], [0, 0, 1, 1], [], []>} : vector<8x8xf32>, vector<8x256xf32>, vector<8x256xf32> -> vector<8x256xf32>
    %151 = arith.addf %146, %150 : vector<8x256xf32>
    %c239_i32_101 = arith.constant 239 : i32
    %152 = tpu.dynamic_rotate %131 by %c239_i32_101 dim 1 : vector<8x256xf32>, i32 -> vector<8x256xf32>
    %c4_102 = arith.constant 4 : index
    %c0_103 = arith.constant 0 : index
    %c0_104 = arith.constant 0 : index
    %153 = vector.load %arg4[%c4_102, %c0_103, %c0_104] : memref<9x8x8xf32, #tpu.memory_space<vmem>>, vector<1x8x8xf32>
    %154 = vector.shape_cast %153 : vector<1x8x8xf32> to vector<8x8xf32>
    %cst_105 = arith.constant dense<0.000000e+00> : vector<8x256xf32>
    %155 = tpu.matmul %154, %152, %cst_105 {dimension_numbers = #tpu.dot_dimension_numbers<[1], [0], [0], [1], [0, 0, 1, 1], [], []>} : vector<8x8xf32>, vector<8x256xf32>, vector<8x256xf32> -> vector<8x256xf32>
    %156 = arith.addf %151, %155 : vector<8x256xf32>
    %c238_i32_106 = arith.constant 238 : i32
    %157 = tpu.dynamic_rotate %131 by %c238_i32_106 dim 1 : vector<8x256xf32>, i32 -> vector<8x256xf32>
    %c5_107 = arith.constant 5 : index
    %c0_108 = arith.constant 0 : index
    %c0_109 = arith.constant 0 : index
    %158 = vector.load %arg4[%c5_107, %c0_108, %c0_109] : memref<9x8x8xf32, #tpu.memory_space<vmem>>, vector<1x8x8xf32>
    %159 = vector.shape_cast %158 : vector<1x8x8xf32> to vector<8x8xf32>
    %cst_110 = arith.constant dense<0.000000e+00> : vector<8x256xf32>
    %160 = tpu.matmul %159, %157, %cst_110 {dimension_numbers = #tpu.dot_dimension_numbers<[1], [0], [0], [1], [0, 0, 1, 1], [], []>} : vector<8x8xf32>, vector<8x256xf32>, vector<8x256xf32> -> vector<8x256xf32>
    %161 = arith.addf %156, %160 : vector<8x256xf32>
    %c224_i32_111 = arith.constant 224 : i32
    %162 = tpu.dynamic_rotate %131 by %c224_i32_111 dim 1 : vector<8x256xf32>, i32 -> vector<8x256xf32>
    %c6_112 = arith.constant 6 : index
    %c0_113 = arith.constant 0 : index
    %c0_114 = arith.constant 0 : index
    %163 = vector.load %arg4[%c6_112, %c0_113, %c0_114] : memref<9x8x8xf32, #tpu.memory_space<vmem>>, vector<1x8x8xf32>
    %164 = vector.shape_cast %163 : vector<1x8x8xf32> to vector<8x8xf32>
    %cst_115 = arith.constant dense<0.000000e+00> : vector<8x256xf32>
    %165 = tpu.matmul %164, %162, %cst_115 {dimension_numbers = #tpu.dot_dimension_numbers<[1], [0], [0], [1], [0, 0, 1, 1], [], []>} : vector<8x8xf32>, vector<8x256xf32>, vector<8x256xf32> -> vector<8x256xf32>
    %166 = arith.addf %161, %165 : vector<8x256xf32>
    %c223_i32_116 = arith.constant 223 : i32
    %167 = tpu.dynamic_rotate %131 by %c223_i32_116 dim 1 : vector<8x256xf32>, i32 -> vector<8x256xf32>
    %c7_117 = arith.constant 7 : index
    %c0_118 = arith.constant 0 : index
    %c0_119 = arith.constant 0 : index
    %168 = vector.load %arg4[%c7_117, %c0_118, %c0_119] : memref<9x8x8xf32, #tpu.memory_space<vmem>>, vector<1x8x8xf32>
    %169 = vector.shape_cast %168 : vector<1x8x8xf32> to vector<8x8xf32>
    %cst_120 = arith.constant dense<0.000000e+00> : vector<8x256xf32>
    %170 = tpu.matmul %169, %167, %cst_120 {dimension_numbers = #tpu.dot_dimension_numbers<[1], [0], [0], [1], [0, 0, 1, 1], [], []>} : vector<8x8xf32>, vector<8x256xf32>, vector<8x256xf32> -> vector<8x256xf32>
    %171 = arith.addf %166, %170 : vector<8x256xf32>
    %c222_i32_121 = arith.constant 222 : i32
    %172 = tpu.dynamic_rotate %131 by %c222_i32_121 dim 1 : vector<8x256xf32>, i32 -> vector<8x256xf32>
    %c8_122 = arith.constant 8 : index
    %c0_123 = arith.constant 0 : index
    %c0_124 = arith.constant 0 : index
    %173 = vector.load %arg4[%c8_122, %c0_123, %c0_124] : memref<9x8x8xf32, #tpu.memory_space<vmem>>, vector<1x8x8xf32>
    %174 = vector.shape_cast %173 : vector<1x8x8xf32> to vector<8x8xf32>
    %cst_125 = arith.constant dense<0.000000e+00> : vector<8x256xf32>
    %175 = tpu.matmul %174, %172, %cst_125 {dimension_numbers = #tpu.dot_dimension_numbers<[1], [0], [0], [1], [0, 0, 1, 1], [], []>} : vector<8x8xf32>, vector<8x256xf32>, vector<8x256xf32> -> vector<8x256xf32>
    %176 = arith.addf %171, %175 : vector<8x256xf32>
    %c0_126 = arith.constant 0 : index
    %c0_127 = arith.constant 0 : index
    %177 = vector.load %arg5[%c0_126, %c0_127] : memref<8x1xf32, #tpu.memory_space<vmem>>, vector<8x1xf32>
    %178 = vector.broadcast %177 : vector<8x1xf32> to vector<8x256xf32>
    %179 = arith.addf %176, %178 : vector<8x256xf32>
    %cst_128 = arith.constant 0.000000e+00 : f32
    %180 = vector.broadcast %cst_128 : f32 to vector<8x256xf32>
    %181 = arith.maximumf %179, %180 : vector<8x256xf32>
    %cst_129 = arith.constant 0.000000e+00 : f32
    %182 = vector.broadcast %cst_129 : f32 to vector<3x256xf32>
    %c0_130 = arith.constant 0 : index
    %c0_131 = arith.constant 0 : index
    %c0_132 = arith.constant 0 : index
    %183 = vector.load %arg6[%c0_130, %c0_131, %c0_132] : memref<9x3x8xf32, #tpu.memory_space<vmem>>, vector<1x3x8xf32>
    %184 = vector.shape_cast %183 : vector<1x3x8xf32> to vector<3x8xf32>
    %cst_133 = arith.constant dense<0.000000e+00> : vector<3x256xf32>
    %185 = tpu.matmul %184, %181, %cst_133 {dimension_numbers = #tpu.dot_dimension_numbers<[1], [0], [0], [1], [0, 0, 1, 1], [], []>} : vector<3x8xf32>, vector<8x256xf32>, vector<3x256xf32> -> vector<3x256xf32>
    %186 = arith.addf %182, %185 : vector<3x256xf32>
    %c255_i32_134 = arith.constant 255 : i32
    %187 = tpu.dynamic_rotate %181 by %c255_i32_134 dim 1 : vector<8x256xf32>, i32 -> vector<8x256xf32>
    %c1_135 = arith.constant 1 : index
    %c0_136 = arith.constant 0 : index
    %c0_137 = arith.constant 0 : index
    %188 = vector.load %arg6[%c1_135, %c0_136, %c0_137] : memref<9x3x8xf32, #tpu.memory_space<vmem>>, vector<1x3x8xf32>
    %189 = vector.shape_cast %188 : vector<1x3x8xf32> to vector<3x8xf32>
    %cst_138 = arith.constant dense<0.000000e+00> : vector<3x256xf32>
    %190 = tpu.matmul %189, %187, %cst_138 {dimension_numbers = #tpu.dot_dimension_numbers<[1], [0], [0], [1], [0, 0, 1, 1], [], []>} : vector<3x8xf32>, vector<8x256xf32>, vector<3x256xf32> -> vector<3x256xf32>
    %191 = arith.addf %186, %190 : vector<3x256xf32>
    %c254_i32_139 = arith.constant 254 : i32
    %192 = tpu.dynamic_rotate %181 by %c254_i32_139 dim 1 : vector<8x256xf32>, i32 -> vector<8x256xf32>
    %c2_140 = arith.constant 2 : index
    %c0_141 = arith.constant 0 : index
    %c0_142 = arith.constant 0 : index
    %193 = vector.load %arg6[%c2_140, %c0_141, %c0_142] : memref<9x3x8xf32, #tpu.memory_space<vmem>>, vector<1x3x8xf32>
    %194 = vector.shape_cast %193 : vector<1x3x8xf32> to vector<3x8xf32>
    %cst_143 = arith.constant dense<0.000000e+00> : vector<3x256xf32>
    %195 = tpu.matmul %194, %192, %cst_143 {dimension_numbers = #tpu.dot_dimension_numbers<[1], [0], [0], [1], [0, 0, 1, 1], [], []>} : vector<3x8xf32>, vector<8x256xf32>, vector<3x256xf32> -> vector<3x256xf32>
    %196 = arith.addf %191, %195 : vector<3x256xf32>
    %c240_i32_144 = arith.constant 240 : i32
    %197 = tpu.dynamic_rotate %181 by %c240_i32_144 dim 1 : vector<8x256xf32>, i32 -> vector<8x256xf32>
    %c3_145 = arith.constant 3 : index
    %c0_146 = arith.constant 0 : index
    %c0_147 = arith.constant 0 : index
    %198 = vector.load %arg6[%c3_145, %c0_146, %c0_147] : memref<9x3x8xf32, #tpu.memory_space<vmem>>, vector<1x3x8xf32>
    %199 = vector.shape_cast %198 : vector<1x3x8xf32> to vector<3x8xf32>
    %cst_148 = arith.constant dense<0.000000e+00> : vector<3x256xf32>
    %200 = tpu.matmul %199, %197, %cst_148 {dimension_numbers = #tpu.dot_dimension_numbers<[1], [0], [0], [1], [0, 0, 1, 1], [], []>} : vector<3x8xf32>, vector<8x256xf32>, vector<3x256xf32> -> vector<3x256xf32>
    %201 = arith.addf %196, %200 : vector<3x256xf32>
    %c239_i32_149 = arith.constant 239 : i32
    %202 = tpu.dynamic_rotate %181 by %c239_i32_149 dim 1 : vector<8x256xf32>, i32 -> vector<8x256xf32>
    %c4_150 = arith.constant 4 : index
    %c0_151 = arith.constant 0 : index
    %c0_152 = arith.constant 0 : index
    %203 = vector.load %arg6[%c4_150, %c0_151, %c0_152] : memref<9x3x8xf32, #tpu.memory_space<vmem>>, vector<1x3x8xf32>
    %204 = vector.shape_cast %203 : vector<1x3x8xf32> to vector<3x8xf32>
    %cst_153 = arith.constant dense<0.000000e+00> : vector<3x256xf32>
    %205 = tpu.matmul %204, %202, %cst_153 {dimension_numbers = #tpu.dot_dimension_numbers<[1], [0], [0], [1], [0, 0, 1, 1], [], []>} : vector<3x8xf32>, vector<8x256xf32>, vector<3x256xf32> -> vector<3x256xf32>
    %206 = arith.addf %201, %205 : vector<3x256xf32>
    %c238_i32_154 = arith.constant 238 : i32
    %207 = tpu.dynamic_rotate %181 by %c238_i32_154 dim 1 : vector<8x256xf32>, i32 -> vector<8x256xf32>
    %c5_155 = arith.constant 5 : index
    %c0_156 = arith.constant 0 : index
    %c0_157 = arith.constant 0 : index
    %208 = vector.load %arg6[%c5_155, %c0_156, %c0_157] : memref<9x3x8xf32, #tpu.memory_space<vmem>>, vector<1x3x8xf32>
    %209 = vector.shape_cast %208 : vector<1x3x8xf32> to vector<3x8xf32>
    %cst_158 = arith.constant dense<0.000000e+00> : vector<3x256xf32>
    %210 = tpu.matmul %209, %207, %cst_158 {dimension_numbers = #tpu.dot_dimension_numbers<[1], [0], [0], [1], [0, 0, 1, 1], [], []>} : vector<3x8xf32>, vector<8x256xf32>, vector<3x256xf32> -> vector<3x256xf32>
    %211 = arith.addf %206, %210 : vector<3x256xf32>
    %c224_i32_159 = arith.constant 224 : i32
    %212 = tpu.dynamic_rotate %181 by %c224_i32_159 dim 1 : vector<8x256xf32>, i32 -> vector<8x256xf32>
    %c6_160 = arith.constant 6 : index
    %c0_161 = arith.constant 0 : index
    %c0_162 = arith.constant 0 : index
    %213 = vector.load %arg6[%c6_160, %c0_161, %c0_162] : memref<9x3x8xf32, #tpu.memory_space<vmem>>, vector<1x3x8xf32>
    %214 = vector.shape_cast %213 : vector<1x3x8xf32> to vector<3x8xf32>
    %cst_163 = arith.constant dense<0.000000e+00> : vector<3x256xf32>
    %215 = tpu.matmul %214, %212, %cst_163 {dimension_numbers = #tpu.dot_dimension_numbers<[1], [0], [0], [1], [0, 0, 1, 1], [], []>} : vector<3x8xf32>, vector<8x256xf32>, vector<3x256xf32> -> vector<3x256xf32>
    %216 = arith.addf %211, %215 : vector<3x256xf32>
    %c223_i32_164 = arith.constant 223 : i32
    %217 = tpu.dynamic_rotate %181 by %c223_i32_164 dim 1 : vector<8x256xf32>, i32 -> vector<8x256xf32>
    %c7_165 = arith.constant 7 : index
    %c0_166 = arith.constant 0 : index
    %c0_167 = arith.constant 0 : index
    %218 = vector.load %arg6[%c7_165, %c0_166, %c0_167] : memref<9x3x8xf32, #tpu.memory_space<vmem>>, vector<1x3x8xf32>
    %219 = vector.shape_cast %218 : vector<1x3x8xf32> to vector<3x8xf32>
    %cst_168 = arith.constant dense<0.000000e+00> : vector<3x256xf32>
    %220 = tpu.matmul %219, %217, %cst_168 {dimension_numbers = #tpu.dot_dimension_numbers<[1], [0], [0], [1], [0, 0, 1, 1], [], []>} : vector<3x8xf32>, vector<8x256xf32>, vector<3x256xf32> -> vector<3x256xf32>
    %221 = arith.addf %216, %220 : vector<3x256xf32>
    %c222_i32_169 = arith.constant 222 : i32
    %222 = tpu.dynamic_rotate %181 by %c222_i32_169 dim 1 : vector<8x256xf32>, i32 -> vector<8x256xf32>
    %c8_170 = arith.constant 8 : index
    %c0_171 = arith.constant 0 : index
    %c0_172 = arith.constant 0 : index
    %223 = vector.load %arg6[%c8_170, %c0_171, %c0_172] : memref<9x3x8xf32, #tpu.memory_space<vmem>>, vector<1x3x8xf32>
    %224 = vector.shape_cast %223 : vector<1x3x8xf32> to vector<3x8xf32>
    %cst_173 = arith.constant dense<0.000000e+00> : vector<3x256xf32>
    %225 = tpu.matmul %224, %222, %cst_173 {dimension_numbers = #tpu.dot_dimension_numbers<[1], [0], [0], [1], [0, 0, 1, 1], [], []>} : vector<3x8xf32>, vector<8x256xf32>, vector<3x256xf32> -> vector<3x256xf32>
    %226 = arith.addf %221, %225 : vector<3x256xf32>
    %c0_174 = arith.constant 0 : index
    %c0_175 = arith.constant 0 : index
    %227 = vector.load %arg7[%c0_174, %c0_175] : memref<3x1xf32, #tpu.memory_space<vmem>>, vector<3x1xf32>
    %228 = vector.broadcast %227 : vector<3x1xf32> to vector<3x256xf32>
    %229 = arith.addf %226, %228 : vector<3x256xf32>
    %c0_176 = arith.constant 0 : index
    %c0_177 = arith.constant 0 : index
    %c0_178 = arith.constant 0 : index
    %230 = vector.load %arg8[%c0_176, %c0_177, %c0_178] : memref<1x3x256xf32, #tpu.memory_space<vmem>>, vector<1x3x256xf32>
    %231 = vector.shape_cast %230 : vector<1x3x256xf32> to vector<3x256xf32>
    %232 = vector.shape_cast %229 : vector<3x256xf32> to vector<1x3x256xf32>
    tpu.vector_store %arg8[%c0_176, %c0_177, %c0_178], %232 {strides = array<i32>} : memref<1x3x256xf32, #tpu.memory_space<vmem>>, vector<1x3x256xf32>,
    return
  }
  func.func @transform_0(%arg0: i32) -> (i32, i32, i32) {
    %c0_i32 = arith.constant 0 : i32
    %c0_i32_0 = arith.constant 0 : i32
    %c0_i32_1 = arith.constant 0 : i32
    return %arg0, %c0_i32, %c0_i32_0 : i32, i32, i32
  }
  func.func @transform_1(%arg0: i32) -> (i32, i32, i32) {
    %c0_i32 = arith.constant 0 : i32
    %c0_i32_0 = arith.constant 0 : i32
    %c0_i32_1 = arith.constant 0 : i32
    %c0_i32_2 = arith.constant 0 : i32
    return %c0_i32, %c0_i32_0, %c0_i32_1 : i32, i32, i32
  }
  func.func @transform_2(%arg0: i32) -> (i32, i32) {
    %c0_i32 = arith.constant 0 : i32
    %c0_i32_0 = arith.constant 0 : i32
    %c0_i32_1 = arith.constant 0 : i32
    return %c0_i32, %c0_i32_0 : i32, i32
  }
  func.func @transform_3(%arg0: i32) -> (i32, i32, i32) {
    %c0_i32 = arith.constant 0 : i32
    %c0_i32_0 = arith.constant 0 : i32
    %c0_i32_1 = arith.constant 0 : i32
    %c0_i32_2 = arith.constant 0 : i32
    return %c0_i32, %c0_i32_0, %c0_i32_1 : i32, i32, i32
  }
  func.func @transform_4(%arg0: i32) -> (i32, i32) {
    %c0_i32 = arith.constant 0 : i32
    %c0_i32_0 = arith.constant 0 : i32
    %c0_i32_1 = arith.constant 0 : i32
    return %c0_i32, %c0_i32_0 : i32, i32
  }
  func.func @transform_5(%arg0: i32) -> (i32, i32, i32) {
    %c0_i32 = arith.constant 0 : i32
    %c0_i32_0 = arith.constant 0 : i32
    %c0_i32_1 = arith.constant 0 : i32
    %c0_i32_2 = arith.constant 0 : i32
    return %c0_i32, %c0_i32_0, %c0_i32_1 : i32, i32, i32
  }
  func.func @transform_6(%arg0: i32) -> (i32, i32) {
    %c0_i32 = arith.constant 0 : i32
    %c0_i32_0 = arith.constant 0 : i32
    %c0_i32_1 = arith.constant 0 : i32
    return %c0_i32, %c0_i32_0 : i32, i32
  }
  func.func @transform_7(%arg0: i32) -> (i32, i32, i32) {
    %c0_i32 = arith.constant 0 : i32
    %c0_i32_0 = arith.constant 0 : i32
    %c0_i32_1 = arith.constant 0 : i32
    return %arg0, %c0_i32, %c0_i32_0 : i32, i32, i32
  }
}

</mosaic_0001>

<llo_original>
// kernel: srcnn_forward.1
$region0: #{srcnn_forward.1}
  #allocation0 [shape = 'u32[]', space=smem, size = 0x4, offset = 0x4, fixed_abs, tag = 'smem constant byte address 0x4 - core index']
  #allocation1 [shape = 'u32[144,128]{1,0:T(1,128)}', space=vmem, size = 0x12000, scoped, tag = 'internal scratch']
  %s0 = inlined_call_operand.vmem [shape: f32[2,3,256], index: 0, kind: input, shape index: {}]
  %s1 = inlined_call_operand.vmem [shape: f32[25,8,3], index: 1, kind: input, shape index: {}]
  %s2 = inlined_call_operand.vmem [shape: f32[8,1], index: 2, kind: input, shape index: {}]
  %s3 = inlined_call_operand.vmem [shape: f32[9,8,8], index: 3, kind: input, shape index: {}]
  %s4 = inlined_call_operand.vmem [shape: f32[8,1], index: 4, kind: input, shape index: {}]
  %s5 = inlined_call_operand.vmem [shape: f32[9,3,8], index: 5, kind: input, shape index: {}]
  %s6 = inlined_call_operand.vmem [shape: f32[3,1], index: 6, kind: input, shape index: {}]
  %s7 = inlined_call_operand.vmem [shape: f32[2,3,256], index: 7, kind: output, shape index: {}]
  %s8 = sld [smem:[#allocation0]]
  $region61: #{srcnn_forward.1} parent=0
    _
  %s10 = ssub.s32 1, %s8
  %s11 = scalar_select 0, %s10, %s8
  loop: start=0, step=1, limit=4
  $region2: #{srcnn_forward.1} parent=0 // loop_pre_header
    _
  $region3: #{srcnn_forward.1} parent=0 // loop_header
    %s13 = sphi 0, %s17
    %p14 = scmp.ge.s32.totalorder %s13, 4
    %s23 = sphi 0, %s25
    %s26 = sphi 0, %s23
    %s27 = sphi 0, %s26
    %s43 = sphi 0, %s27
    %s47 = sphi 0, %s47
    %s49 = sphi 0, %s47
    %s50 = sphi 0, %s49
    %s64 = sphi 0, %s50
    %s68 = sphi 0, %s68
    %s70 = sphi 0, %s68
    %s71 = sphi 0, %s70
    %s85 = sphi 0, %s71
    %s89 = sphi 0, %s89
    %s91 = sphi 0, %s89
    %s92 = sphi 0, %s91
    %s106 = sphi 0, %s92
    %s110 = sphi 0, %s110
    %s112 = sphi 0, %s110
    %s113 = sphi 0, %s112
    %s127 = sphi 0, %s113
    %s131 = sphi 0, %s131
    %s133 = sphi 0, %s131
    %s134 = sphi 0, %s133
    %s148 = sphi 0, %s134
    %s152 = sphi 0, %s152
    %s154 = sphi 0, %s152
    %s155 = sphi 0, %s154
    %s169 = sphi 0, %s155
    %s175 = sphi 0, %s177
    %s178 = sphi 0, %s175
    %s179 = sphi 0, %s178
    %s195 = sphi 0, %s179
  $region4: #{srcnn_forward.1} parent=0 // loop_header_branch
    %16 = sbr.rel (%p14) target = $region8
  $region5: #{srcnn_forward.1} parent=0 // loop_body
    %s18 = ssub.s32 %s13, 1
    %s19 = ssub.s32 %s13, 2
    %s20 = sadd.s32 %s13, 1
    %s21 = ssub.s32 %s13, %s20
    %p22 = scmp.eq.s32.totalorder %s21, 0
    %s24 = sadd.s32 %s23, 1
    %s25 = scalar_select %p22, %s23, %s24
    %p28 = pneg %p22
    %p29 = scmp.eq.s32.totalorder %s13, 1
    %p30 = por %p28, %p29
    %p31 = scmp.ne.s32.totalorder %s23, %s26
    %p32 = scmp.eq.s32.totalorder %s13, 0
    %p33 = por %p31, %p32
    %p34 = scmp.ne.s32.totalorder %s23, %s26
    %p35 = scmp.eq.s32.totalorder %s18, 1
    %p36 = por %p34, %p35
    %p37 = scmp.ne.s32.totalorder %s26, %s27
    %p38 = scmp.eq.s32.totalorder %s18, 0
    %p39 = por %p37, %p38
    %p40 = scmp.ne.s32.totalorder %s26, %s27
    %p41 = scmp.eq.s32.totalorder %s19, 1
    %p42 = por %p40, %p41
    %p44 = scmp.ne.s32.totalorder %s27, %s43
    %p45 = scmp.eq.s32.totalorder %s19, 0
    %p46 = por %p44, %p45
    %s48 = sadd.s32 %s47, 1
    %p51 = scmp.eq.s32.totalorder %s13, 1
    %p52 = scmp.ne.s32.totalorder %s47, %s49
    %p53 = scmp.eq.s32.totalorder %s13, 0
    %p54 = por %p52, %p53
    %p55 = scmp.ne.s32.totalorder %s47, %s49
    %p56 = scmp.eq.s32.totalorder %s18, 1
    %p57 = por %p55, %p56
    %p58 = scmp.ne.s32.totalorder %s49, %s50
    %p59 = scmp.eq.s32.totalorder %s18, 0
    %p60 = por %p58, %p59
    %p61 = scmp.ne.s32.totalorder %s49, %s50
    %p62 = scmp.eq.s32.totalorder %s19, 1
    %p63 = por %p61, %p62
    %p65 = scmp.ne.s32.totalorder %s50, %s64
    %p66 = scmp.eq.s32.totalorder %s19, 0
    %p67 = por %p65, %p66
    %s69 = sadd.s32 %s68, 1
    %p72 = scmp.eq.s32.totalorder %s13, 1
    %p73 = scmp.ne.s32.totalorder %s68, %s70
    %p74 = scmp.eq.s32.totalorder %s13, 0
    %p75 = por %p73, %p74
    %p76 = scmp.ne.s32.totalorder %s68, %s70
    %p77 = scmp.eq.s32.totalorder %s18, 1
    %p78 = por %p76, %p77
    %p79 = scmp.ne.s32.totalorder %s70, %s71
    %p80 = scmp.eq.s32.totalorder %s18, 0
    %p81 = por %p79, %p80
    %p82 = scmp.ne.s32.totalorder %s70, %s71
    %p83 = scmp.eq.s32.totalorder %s19, 1
    %p84 = por %p82, %p83
    %p86 = scmp.ne.s32.totalorder %s71, %s85
    %p87 = scmp.eq.s32.totalorder %s19, 0
    %p88 = por %p86, %p87
    %s90 = sadd.s32 %s89, 1
    %p93 = scmp.eq.s32.totalorder %s13, 1
    %p94 = scmp.ne.s32.totalorder %s89, %s91
    %p95 = scmp.eq.s32.totalorder %s13, 0
    %p96 = por %p94, %p95
    %p97 = scmp.ne.s32.totalorder %s89, %s91
    %p98 = scmp.eq.s32.totalorder %s18, 1
    %p99 = por %p97, %p98
    %p100 = scmp.ne.s32.totalorder %s91, %s92
    %p101 = scmp.eq.s32.totalorder %s18, 0
    %p102 = por %p100, %p101
    %p103 = scmp.ne.s32.totalorder %s91, %s92
    %p104 = scmp.eq.s32.totalorder %s19, 1
    %p105 = por %p103, %p104
    %p107 = scmp.ne.s32.totalorder %s92, %s106
    %p108 = scmp.eq.s32.totalorder %s19, 0
    %p109 = por %p107, %p108
    %s111 = sadd.s32 %s110, 1
    %p114 = scmp.eq.s32.totalorder %s13, 1
    %p115 = scmp.ne.s32.totalorder %s110, %s112
    %p116 = scmp.eq.s32.totalorder %s13, 0
    %p117 = por %p115, %p116
    %p118 = scmp.ne.s32.totalorder %s110, %s112
    %p119 = scmp.eq.s32.totalorder %s18, 1
    %p120 = por %p118, %p119
    %p121 = scmp.ne.s32.totalorder %s112, %s113
    %p122 = scmp.eq.s32.totalorder %s18, 0
    %p123 = por %p121, %p122
    %p124 = scmp.ne.s32.totalorder %s112, %s113
    %p125 = scmp.eq.s32.totalorder %s19, 1
    %p126 = por %p124, %p125
    %p128 = scmp.ne.s32.totalorder %s113, %s127
    %p129 = scmp.eq.s32.totalorder %s19, 0
    %p130 = por %p128, %p129
    %s132 = sadd.s32 %s131, 1
    %p135 = scmp.eq.s32.totalorder %s13, 1
    %p136 = scmp.ne.s32.totalorder %s131, %s133
    %p137 = scmp.eq.s32.totalorder %s13, 0
    %p138 = por %p136, %p137
    %p139 = scmp.ne.s32.totalorder %s131, %s133
    %p140 = scmp.eq.s32.totalorder %s18, 1
    %p141 = por %p139, %p140
    %p142 = scmp.ne.s32.totalorder %s133, %s134
    %p143 = scmp.eq.s32.totalorder %s18, 0
    %p144 = por %p142, %p143
    %p145 = scmp.ne.s32.totalorder %s133, %s134
    %p146 = scmp.eq.s32.totalorder %s19, 1
    %p147 = por %p145, %p146
    %p149 = scmp.ne.s32.totalorder %s134, %s148
    %p150 = scmp.eq.s32.totalorder %s19, 0
    %p151 = por %p149, %p150
    %s153 = sadd.s32 %s152, 1
    %p156 = scmp.eq.s32.totalorder %s13, 1
    %p157 = scmp.ne.s32.totalorder %s152, %s154
    %p158 = scmp.eq.s32.totalorder %s13, 0
    %p159 = por %p157, %p158
    %p160 = scmp.ne.s32.totalorder %s152, %s154
    %p161 = scmp.eq.s32.totalorder %s18, 1
    %p162 = por %p160, %p161
    %p163 = scmp.ne.s32.totalorder %s154, %s155
    %p164 = scmp.eq.s32.totalorder %s18, 0
    %p165 = por %p163, %p164
    %p166 = scmp.ne.s32.totalorder %s154, %s155
    %p167 = scmp.eq.s32.totalorder %s19, 1
    %p168 = por %p166, %p167
    %p170 = scmp.ne.s32.totalorder %s155, %s169
    %p171 = scmp.eq.s32.totalorder %s19, 0
    %p172 = por %p170, %p171
    %s173 = ssub.s32 %s13, %s20
    %p174 = scmp.eq.s32.totalorder %s173, 0
    %s176 = sadd.s32 %s175, 1
    %s177 = scalar_select %p174, %s175, %s176
    %p180 = pneg %p174
    %p181 = scmp.eq.s32.totalorder %s13, 1
    %p182 = por %p180, %p181
    %p183 = scmp.ne.s32.totalorder %s175, %s178
    %p184 = scmp.eq.s32.totalorder %s13, 0
    %p185 = por %p183, %p184
    %p186 = scmp.ne.s32.totalorder %s175, %s178
    %p187 = scmp.eq.s32.totalorder %s18, 1
    %p188 = por %p186, %p187
    %p189 = scmp.ne.s32.totalorder %s178, %s179
    %p190 = scmp.eq.s32.totalorder %s18, 0
    %p191 = por %p189, %p190
    %p192 = scmp.ne.s32.totalorder %s178, %s179
    %p193 = scmp.eq.s32.totalorder %s19, 1
    %p194 = por %p192, %p193
    %p196 = scmp.ne.s32.totalorder %s179, %s195
    %p197 = scmp.eq.s32.totalorder %s19, 0
    %p198 = por %p196, %p197
    %p199 = scmp.le.s32.totalorder 1, %s13
    %p200 = scmp.lt.s32.totalorder %s13, 3
    %p201 = pnand %p199, %p200
    %p202 = pneg %p201
    // Predicated region
    $region9: #{srcnn_forward.1} parent=5 // pred_check
      _
    $region10: #{srcnn_forward.1} parent=5 // pred_check_branch
      %204 = sbr.rel (%p201) target = $region12
    $region11: #{srcnn_forward.1} parent=5 // pred_region
      %s205 = ssub.s32 %s13, 1
      // Predicated region
      $region13: #{srcnn_forward.1} parent=11 // pred_check
        %p206 = pneg %p60
      $region14: #{srcnn_forward.1} parent=11 // pred_check_branch
        %208 = sbr.rel (%p206) target = $region16
      $region15: #{srcnn_forward.1} parent=11 // pred_region
        _
      $region16: #{srcnn_forward.1} parent=11 // pred_fallthru
        _
      // Predicated region
      $region17: #{srcnn_forward.1} parent=11 // pred_check
        %p209 = pneg %p81
      $region18: #{srcnn_forward.1} parent=11 // pred_check_branch
        %211 = sbr.rel (%p209) target = $region20
      $region19: #{srcnn_forward.1} parent=11 // pred_region
        _
      $region20: #{srcnn_forward.1} parent=11 // pred_fallthru
        _
      // Predicated region
      $region21: #{srcnn_forward.1} parent=11 // pred_check
        %p212 = pneg %p102
      $region22: #{srcnn_forward.1} parent=11 // pred_check_branch
        %214 = sbr.rel (%p212) target = $region24
      $region23: #{srcnn_forward.1} parent=11 // pred_region
        _
      $region24: #{srcnn_forward.1} parent=11 // pred_fallthru
        _
      // Predicated region
      $region25: #{srcnn_forward.1} parent=11 // pred_check
        %p215 = pneg %p123
      $region26: #{srcnn_forward.1} parent=11 // pred_check_branch
        %217 = sbr.rel (%p215) target = $region28
      $region27: #{srcnn_forward.1} parent=11 // pred_region
        _
      $region28: #{srcnn_forward.1} parent=11 // pred_fallthru
        _
      // Predicated region
      $region29: #{srcnn_forward.1} parent=11 // pred_check
        %p218 = pneg %p144
      $region30: #{srcnn_forward.1} parent=11 // pred_check_branch
        %220 = sbr.rel (%p218) target = $region32
      $region31: #{srcnn_forward.1} parent=11 // pred_region
        _
      $region32: #{srcnn_forward.1} parent=11 // pred_fallthru
        _
      // Predicated region
      $region33: #{srcnn_forward.1} parent=11 // pred_check
        %p221 = pneg %p165
      $region34: #{srcnn_forward.1} parent=11 // pred_check_branch
        %223 = sbr.rel (%p221) target = $region36
      $region35: #{srcnn_forward.1} parent=11 // pred_region
        _
      $region36: #{srcnn_forward.1} parent=11 // pred_fallthru
        _
    $region12: #{srcnn_forward.1} parent=5 // pred_fallthru
      _
    %p224 = scmp.lt.s32.totalorder %s13, 2
    // Predicated region
    $region37: #{srcnn_forward.1} parent=5 // pred_check
      %p225 = pneg %p224
    $region38: #{srcnn_forward.1} parent=5 // pred_check_branch
      %227 = sbr.rel (%p225) target = $region40
    $region39: #{srcnn_forward.1} parent=5 // pred_region
      // Predicated region
      $region41: #{srcnn_forward.1} parent=39 // pred_check
        %p228 = pneg %p33
      $region42: #{srcnn_forward.1} parent=39 // pred_check_branch
        %230 = sbr.rel (%p228) target = $region44
      $region43: #{srcnn_forward.1} parent=39 // pred_region
        %p231 = scmp.lt.s32.totalorder %s13, 1
        %s232 = scalar_select %p231, %s13, 1
        %s233 = smul.addr %s232, 2
        %s234 = smul.addr %s233, 4
        %s235 = scalar_lea.vmem %s0, %s234
      $region44: #{srcnn_forward.1} parent=39 // pred_fallthru
        _
    $region40: #{srcnn_forward.1} parent=5 // pred_fallthru
      _
    %p236 = scmp.le.s32.totalorder 1, %s13
    %p237 = scmp.lt.s32.totalorder %s13, 3
    %p238 = pnand %p236, %p237
    %p239 = pneg %p238
    // Predicated region
    $region45: #{srcnn_forward.1} parent=5 // pred_check
      _
    $region46: #{srcnn_forward.1} parent=5 // pred_check_branch
      %241 = sbr.rel (%p238) target = $region48
    $region47: #{srcnn_forward.1} parent=5 // pred_region
      %s242 = ssub.s32 %s13, 1
      %p243 = scmp.lt.s32.totalorder %s18, 1
      %s244 = scalar_select %p243, %s18, 1
      %s245 = smul.addr %s244, 2
      %s246 = smul.addr %s245, 4
      %s247 = scalar_lea.vmem %s0, %s246
      %p248 = pneg %p39
      %p249 = pneg %p36
      %p250 = pneg %p60
      %p251 = pneg %p57
      %p252 = pneg %p81
      %p253 = pneg %p78
      %p254 = pneg %p102
      %p255 = pneg %p99
      %p256 = pneg %p123
      %p257 = pneg %p120
      %p258 = pneg %p144
      %p259 = pneg %p141
      %p260 = pneg %p165
      %p261 = pneg %p162
      %p262 = pneg %p191
      %p263 = pneg %p188
      %p264 = scmp.lt.s32.totalorder %s18, 1
      %s265 = scalar_select %p264, %s18, 1
      %s266 = smul.addr %s265, 2
      %s267 = smul.addr %s266, 4
      %s268 = scalar_lea.vmem %s7, %s267
      %p269 = scmp.lt.s32.totalorder %s18, 1
      %s270 = scalar_select %p269, %s18, 1
      %s271 = smul.addr %s270, 2
      %s272 = smul.addr %s271, 4
      %s273 = scalar_lea.vmem %s0, %s272
      %p274 = scmp.lt.s32.totalorder %s18, 1
      %s275 = scalar_select %p274, %s18, 1
      %s276 = smul.addr %s275, 2
      %s277 = smul.addr %s276, 4
      %s278 = scalar_lea.vmem %s7, %s277
      %v279 = vld [vmem:[%s273] sm:$0x77]
      %v280 = vld [vmem:[%s1] sm:$0xff]
      %v282 = vcombine.high %v279, %v279
      %284 = vrot.lane.b32.xlu0 %v279, 127
      %v285 = vpop.permute.xlu0 %284
      %286 = vrot.lane.b32.xlu0 %v282, 127
      %v287 = vpop.permute.xlu0 %286
      %v288 = vlaneseq
      %v289 = vand.u32 %v288, 127
      %vm290 = vcmp.lt.s32.totalorder %v289, 127
      %v291 = vsel %vm290, %v285, %v287
      %v292 = vsel %vm290, %v287, %v285
      %s293 = scalar_lea.vmem %s1, 8
      %v294 = vld [vmem:[%s293] sm:$0xff]
      %vm295 = vcmask 23552
      %v297 = vsel %vm295, %v294, 0
      %vm299 = vcmask 1042432
      %v301 = vsel %vm299, %v291, 0
      %v304 = vsel %vm299, %v292, 0
      %306 = vmatprep.subr.mxu0 %v304
      %307 = vmatpush1.msra.mxu0 %v301
      %308 = vmatprep.subr.mxu0 0.0
      %309 = vmatpush1.msra.mxu0 0.0
      %310 = vmatprep.subr.mxu0 0.0
      %311 = vmatpush1.msra.mxu0 0.0
      %312 = vmatprep.subr.mxu0 0.0
      %313 = vmatpush1.msra.mxu0 0.0
      %314 = vmatprep.subr.mxu0 0.0
      %315 = vmatpush1.msra.mxu0 0.0
      %316 = vmatprep.subr.mxu0 0.0
      %317 = vmatpush1.msra.mxu0 0.0
      %318 = vmatprep.subr.mxu0 0.0
      %319 = vmatpush1.msra.mxu0 0.0
      %320 = vmatprep.subr.mxu0 0.0
      %321 = vmatpush1.msra.mxu0 0.0
      %322 = vmatprep.subr.mxu0 0.0
      %323 = vmatpush1.msra.mxu0 0.0
      %324 = vmatprep.subr.mxu0 0.0
      %325 = vmatpush1.msra.mxu0 0.0
      %326 = vmatprep.subr.mxu0 0.0
      %327 = vmatpush1.msra.mxu0 0.0
      %328 = vmatprep.subr.mxu0 0.0
      %329 = vmatpush1.msra.mxu0 0.0
      %330 = vmatprep.subr.mxu0 0.0
      %331 = vmatpush1.msra.mxu0 0.0
      %332 = vmatprep.subr.mxu0 0.0
      %333 = vmatpush1.msra.mxu0 0.0
      %334 = vmatprep.subr.mxu0 0.0
      %335 = vmatpush1.msra.mxu0 0.0
      %336 = vmatprep.subr.mxu0 0.0
      %337 = vmatpush1.msra.mxu0 0.0
      %338 = vmatprep.subr.mxu0 0.0
      %339 = vmatpush1.msra.mxu0 0.0
      %340 = vmatprep.subr.mxu0 0.0
      %341 = vmatpush1.msra.mxu0 0.0
      %342 = vmatprep.subr.mxu0 0.0
      %343 = vmatpush1.msra.mxu0 0.0
      %344 = vmatprep.subr.mxu0 0.0
      %345 = vmatpush1.msra.mxu0 0.0
      %346 = vmatprep.subr.mxu0 0.0
      %347 = vmatpush1.msra.mxu0 0.0
      %348 = vmatprep.subr.mxu0 0.0
      %349 = vmatpush1.msra.mxu0 0.0
      %350 = vmatprep.subr.mxu0 0.0
      %351 = vmatpush1.msra.mxu0 0.0
      %352 = vmatprep.subr.mxu0 0.0
      %353 = vmatpush1.msra.mxu0 0.0
      %354 = vmatprep.subr.mxu0 0.0
      %355 = vmatpush1.msra.mxu0 0.0
      %356 = vmatprep.subr.mxu0 0.0
      %357 = vmatpush1.msra.mxu0 0.0
      %358 = vmatprep.subr.mxu0 0.0
      %359 = vmatpush1.msra.mxu0 0.0
      %360 = vmatprep.subr.mxu0 0.0
      %361 = vmatpush1.msra.mxu0 0.0
      %362 = vmatprep.subr.mxu0 0.0
      %363 = vmatpush1.msra.mxu0 0.0
      %364 = vmatprep.subr.mxu0 0.0
      %365 = vmatpush1.msra.mxu0 0.0
      %366 = vmatprep.subr.mxu0 0.0
      %367 = vmatpush1.msra.mxu0 0.0
      %368 = vmatprep.subr.mxu0 0.0
      %369 = vmatpush1.msra.mxu0 0.0
      %370 = vmatprep.mubr.f32.mxu0 0.0
      %371 = vmatmul.mubr.f32.gmra.mrb[0].mxu0 %v297
      %v372 = vpop.f32.mrb[0].mxu0
      %v373 = vadd.f32 0.0, %v372
      %v374 = vpop.f32.mrb[0].mxu0
      %v375 = vadd.f32 0.0, %v374
      %376 = vdwg.mxu0
      %v378 = vsel %vm295, %v280, 0
      %v380 = vsel %vm299, %v279, 0
      %v382 = vsel %vm299, %v282, 0
      %384 = vmatprep.subr.mxu0 %v382
      %385 = vmatpush1.msra.mxu0 %v380
      %386 = vmatprep.subr.mxu0 0.0
      %387 = vmatpush1.msra.mxu0 0.0
      %388 = vmatprep.subr.mxu0 0.0
      %389 = vmatpush1.msra.mxu0 0.0
      %390 = vmatprep.subr.mxu0 0.0
      %391 = vmatpush1.msra.mxu0 0.0
      %392 = vmatprep.subr.mxu0 0.0
      %393 = vmatpush1.msra.mxu0 0.0
      %394 = vmatprep.subr.mxu0 0.0
      %395 = vmatpush1.msra.mxu0 0.0
      %396 = vmatprep.subr.mxu0 0.0
      %397 = vmatpush1.msra.mxu0 0.0
      %398 = vmatprep.subr.mxu0 0.0
      %399 = vmatpush1.msra.mxu0 0.0
      %400 = vmatprep.subr.mxu0 0.0
      %401 = vmatpush1.msra.mxu0 0.0
      %402 = vmatprep.subr.mxu0 0.0
      %403 = vmatpush1.msra.mxu0 0.0
      %404 = vmatprep.subr.mxu0 0.0
      %405 = vmatpush1.msra.mxu0 0.0
      %406 = vmatprep.subr.mxu0 0.0
      %407 = vmatpush1.msra.mxu0 0.0
      %408 = vmatprep.subr.mxu0 0.0
      %409 = vmatpush1.msra.mxu0 0.0
      %410 = vmatprep.subr.mxu0 0.0
      %411 = vmatpush1.msra.mxu0 0.0
      %412 = vmatprep.subr.mxu0 0.0
      %413 = vmatpush1.msra.mxu0 0.0
      %414 = vmatprep.subr.mxu0 0.0
      %415 = vmatpush1.msra.mxu0 0.0
      %416 = vmatprep.subr.mxu0 0.0
      %417 = vmatpush1.msra.mxu0 0.0
      %418 = vmatprep.subr.mxu0 0.0
      %419 = vmatpush1.msra.mxu0 0.0
      %420 = vmatprep.subr.mxu0 0.0
      %421 = vmatpush1.msra.mxu0 0.0
      %422 = vmatprep.subr.mxu0 0.0
      %423 = vmatpush1.msra.mxu0 0.0
      %424 = vmatprep.subr.mxu0 0.0
      %425 = vmatpush1.msra.mxu0 0.0
      %426 = vmatprep.subr.mxu0 0.0
      %427 = vmatpush1.msra.mxu0 0.0
      %428 = vmatprep.subr.mxu0 0.0
      %429 = vmatpush1.msra.mxu0 0.0
      %430 = vmatprep.subr.mxu0 0.0
      %431 = vmatpush1.msra.mxu0 0.0
      %432 = vmatprep.subr.mxu0 0.0
      %433 = vmatpush1.msra.mxu0 0.0
      %434 = vmatprep.subr.mxu0 0.0
      %435 = vmatpush1.msra.mxu0 0.0
      %436 = vmatprep.subr.mxu0 0.0
      %437 = vmatpush1.msra.mxu0 0.0
      %438 = vmatprep.subr.mxu0 0.0
      %439 = vmatpush1.msra.mxu0 0.0
      %440 = vmatprep.subr.mxu0 0.0
      %441 = vmatpush1.msra.mxu0 0.0
      %442 = vmatprep.subr.mxu0 0.0
      %443 = vmatpush1.msra.mxu0 0.0
      %444 = vmatprep.subr.mxu0 0.0
      %445 = vmatpush1.msra.mxu0 0.0
      %446 = vmatprep.subr.mxu0 0.0
      %447 = vmatpush1.msra.mxu0 0.0
      %448 = vmatprep.mubr.f32.mxu0 0.0
      %449 = vmatmul.mubr.f32.gmra.mrb[0].mxu0 %v378
      %v450 = vpop.f32.mrb[0].mxu0
      %v451 = vadd.f32 %v373, %v450
      %v452 = vpop.f32.mrb[0].mxu0
      %v453 = vadd.f32 %v375, %v452
      %454 = vdwg.mxu0
      %455 = vrot.lane.b32.xlu0 %v279, 126
      %v456 = vpop.permute.xlu0 %455
      %457 = vrot.lane.b32.xlu0 %v282, 126
      %v458 = vpop.permute.xlu0 %457
      %vm459 = vcmp.lt.s32.totalorder %v289, 126
      %v460 = vsel %vm459, %v456, %v458
      %v461 = vsel %vm459, %v458, %v456
      %s462 = scalar_lea.vmem %s1, 16
      %v463 = vld [vmem:[%s462] sm:$0xff]
      %v465 = vsel %vm295, %v463, 0
      %v468 = vsel %vm299, %v460, 0
      %v471 = vsel %vm299, %v461, 0
      %473 = vmatprep.subr.mxu0 %v471
      %474 = vmatpush1.msra.mxu0 %v468
      %475 = vmatprep.subr.mxu0 0.0
      %476 = vmatpush1.msra.mxu0 0.0
      %477 = vmatprep.subr.mxu0 0.0
      %478 = vmatpush1.msra.mxu0 0.0
      %479 = vmatprep.subr.mxu0 0.0
      %480 = vmatpush1.msra.mxu0 0.0
      %481 = vmatprep.subr.mxu0 0.0
      %482 = vmatpush1.msra.mxu0 0.0
      %483 = vmatprep.subr.mxu0 0.0
      %484 = vmatpush1.msra.mxu0 0.0
      %485 = vmatprep.subr.mxu0 0.0
      %486 = vmatpush1.msra.mxu0 0.0
      %487 = vmatprep.subr.mxu0 0.0
      %488 = vmatpush1.msra.mxu0 0.0
      %489 = vmatprep.subr.mxu0 0.0
      %490 = vmatpush1.msra.mxu0 0.0
      %491 = vmatprep.subr.mxu0 0.0
      %492 = vmatpush1.msra.mxu0 0.0
      %493 = vmatprep.subr.mxu0 0.0
      %494 = vmatpush1.msra.mxu0 0.0
      %495 = vmatprep.subr.mxu0 0.0
      %496 = vmatpush1.msra.mxu0 0.0
      %497 = vmatprep.subr.mxu0 0.0
      %498 = vmatpush1.msra.mxu0 0.0
      %499 = vmatprep.subr.mxu0 0.0
      %500 = vmatpush1.msra.mxu0 0.0
      %501 = vmatprep.subr.mxu0 0.0
      %502 = vmatpush1.msra.mxu0 0.0
      %503 = vmatprep.subr.mxu0 0.0
      %504 = vmatpush1.msra.mxu0 0.0
      %505 = vmatprep.subr.mxu0 0.0
      %506 = vmatpush1.msra.mxu0 0.0
      %507 = vmatprep.subr.mxu0 0.0
      %508 = vmatpush1.msra.mxu0 0.0
      %509 = vmatprep.subr.mxu0 0.0
      %510 = vmatpush1.msra.mxu0 0.0
      %511 = vmatprep.subr.mxu0 0.0
      %512 = vmatpush1.msra.mxu0 0.0
      %513 = vmatprep.subr.mxu0 0.0
      %514 = vmatpush1.msra.mxu0 0.0
      %515 = vmatprep.subr.mxu0 0.0
      %516 = vmatpush1.msra.mxu0 0.0
      %517 = vmatprep.subr.mxu0 0.0
      %518 = vmatpush1.msra.mxu0 0.0
      %519 = vmatprep.subr.mxu0 0.0
      %520 = vmatpush1.msra.mxu0 0.0
      %521 = vmatprep.subr.mxu0 0.0
      %522 = vmatpush1.msra.mxu0 0.0
      %523 = vmatprep.subr.mxu0 0.0
      %524 = vmatpush1.msra.mxu0 0.0
      %525 = vmatprep.subr.mxu0 0.0
      %526 = vmatpush1.msra.mxu0 0.0
      %527 = vmatprep.subr.mxu0 0.0
      %528 = vmatpush1.msra.mxu0 0.0
      %529 = vmatprep.subr.mxu0 0.0
      %530 = vmatpush1.msra.mxu0 0.0
      %531 = vmatprep.subr.mxu0 0.0
      %532 = vmatpush1.msra.mxu0 0.0
      %533 = vmatprep.subr.mxu0 0.0
      %534 = vmatpush1.msra.mxu0 0.0
      %535 = vmatprep.subr.mxu0 0.0
      %536 = vmatpush1.msra.mxu0 0.0
      %537 = vmatprep.mubr.f32.mxu0 0.0
      %538 = vmatmul.mubr.f32.gmra.mrb[0].mxu0 %v465
      %v539 = vpop.f32.mrb[0].mxu0
      %v540 = vadd.f32 0.0, %v539
      %v541 = vpop.f32.mrb[0].mxu0
      %v542 = vadd.f32 0.0, %v541
      %543 = vdwg.mxu0
      %v544 = vadd.f32 %v451, %v540
      %v545 = vadd.f32 %v453, %v542
      %546 = vrot.lane.b32.xlu0 %v279, 125
      %v547 = vpop.permute.xlu0 %546
      %548 = vrot.lane.b32.xlu0 %v282, 125
      %v549 = vpop.permute.xlu0 %548
      %vm550 = vcmp.lt.s32.totalorder %v289, 125
      %v551 = vsel %vm550, %v547, %v549
      %v552 = vsel %vm550, %v549, %v547
      %s553 = scalar_lea.vmem %s1, 24
      %v554 = vld [vmem:[%s553] sm:$0xff]
      %v556 = vsel %vm295, %v554, 0
      %v559 = vsel %vm299, %v551, 0
      %v562 = vsel %vm299, %v552, 0
      %564 = vmatprep.subr.mxu0 %v562
      %565 = vmatpush1.msra.mxu0 %v559
      %566 = vmatprep.subr.mxu0 0.0
      %567 = vmatpush1.msra.mxu0 0.0
      %568 = vmatprep.subr.mxu0 0.0
      %569 = vmatpush1.msra.mxu0 0.0
      %570 = vmatprep.subr.mxu0 0.0
      %571 = vmatpush1.msra.mxu0 0.0
      %572 = vmatprep.subr.mxu0 0.0
      %573 = vmatpush1.msra.mxu0 0.0
      %574 = vmatprep.subr.mxu0 0.0
      %575 = vmatpush1.msra.mxu0 0.0
      %576 = vmatprep.subr.mxu0 0.0
      %577 = vmatpush1.msra.mxu0 0.0
      %578 = vmatprep.subr.mxu0 0.0
      %579 = vmatpush1.msra.mxu0 0.0
      %580 = vmatprep.subr.mxu0 0.0
      %581 = vmatpush1.msra.mxu0 0.0
      %582 = vmatprep.subr.mxu0 0.0
      %583 = vmatpush1.msra.mxu0 0.0
      %584 = vmatprep.subr.mxu0 0.0
      %585 = vmatpush1.msra.mxu0 0.0
      %586 = vmatprep.subr.mxu0 0.0
      %587 = vmatpush1.msra.mxu0 0.0
      %588 = vmatprep.subr.mxu0 0.0
      %589 = vmatpush1.msra.mxu0 0.0
      %590 = vmatprep.subr.mxu0 0.0
      %591 = vmatpush1.msra.mxu0 0.0
      %592 = vmatprep.subr.mxu0 0.0
      %593 = vmatpush1.msra.mxu0 0.0
      %594 = vmatprep.subr.mxu0 0.0
      %595 = vmatpush1.msra.mxu0 0.0
      %596 = vmatprep.subr.mxu0 0.0
      %597 = vmatpush1.msra.mxu0 0.0
      %598 = vmatprep.subr.mxu0 0.0
      %599 = vmatpush1.msra.mxu0 0.0
      %600 = vmatprep.subr.mxu0 0.0
      %601 = vmatpush1.msra.mxu0 0.0
      %602 = vmatprep.subr.mxu0 0.0
      %603 = vmatpush1.msra.mxu0 0.0
      %604 = vmatprep.subr.mxu0 0.0
      %605 = vmatpush1.msra.mxu0 0.0
      %606 = vmatprep.subr.mxu0 0.0
      %607 = vmatpush1.msra.mxu0 0.0
      %608 = vmatprep.subr.mxu0 0.0
      %609 = vmatpush1.msra.mxu0 0.0
      %610 = vmatprep.subr.mxu0 0.0
      %611 = vmatpush1.msra.mxu0 0.0
      %612 = vmatprep.subr.mxu0 0.0
      %613 = vmatpush1.msra.mxu0 0.0
      %614 = vmatprep.subr.mxu0 0.0
      %615 = vmatpush1.msra.mxu0 0.0
      %616 = vmatprep.subr.mxu0 0.0
      %617 = vmatpush1.msra.mxu0 0.0
      %618 = vmatprep.subr.mxu0 0.0
      %619 = vmatpush1.msra.mxu0 0.0
      %620 = vmatprep.subr.mxu0 0.0
      %621 = vmatpush1.msra.mxu0 0.0
      %622 = vmatprep.subr.mxu0 0.0
      %623 = vmatpush1.msra.mxu0 0.0
      %624 = vmatprep.subr.mxu0 0.0
      %625 = vmatpush1.msra.mxu0 0.0
      %626 = vmatprep.subr.mxu0 0.0
      %627 = vmatpush1.msra.mxu0 0.0
      %628 = vmatprep.mubr.f32.mxu0 0.0
      %629 = vmatmul.mubr.f32.gmra.mrb[0].mxu0 %v556
      %v630 = vpop.f32.mrb[0].mxu0
      %v631 = vadd.f32 0.0, %v630
      %v632 = vpop.f32.mrb[0].mxu0
      %v633 = vadd.f32 0.0, %v632
      %634 = vdwg.mxu0
      %v635 = vadd.f32 %v544, %v631
      %v636 = vadd.f32 %v545, %v633
      %637 = vrot.lane.b32.xlu0 %v279, 124
      %v638 = vpop.permute.xlu0 %637
      %639 = vrot.lane.b32.xlu0 %v282, 124
      %v640 = vpop.permute.xlu0 %639
      %vm641 = vcmp.lt.s32.totalorder %v289, 124
      %v642 = vsel %vm641, %v638, %v640
      %v643 = vsel %vm641, %v640, %v638
      %s644 = scalar_lea.vmem %s1, 32
      %v645 = vld [vmem:[%s644] sm:$0xff]
      %v647 = vsel %vm295, %v645, 0
      %v650 = vsel %vm299, %v642, 0
      %v653 = vsel %vm299, %v643, 0
      %655 = vmatprep.subr.mxu0 %v653
      %656 = vmatpush1.msra.mxu0 %v650
      %657 = vmatprep.subr.mxu0 0.0
      %658 = vmatpush1.msra.mxu0 0.0
      %659 = vmatprep.subr.mxu0 0.0
      %660 = vmatpush1.msra.mxu0 0.0
      %661 = vmatprep.subr.mxu0 0.0
      %662 = vmatpush1.msra.mxu0 0.0
      %663 = vmatprep.subr.mxu0 0.0
      %664 = vmatpush1.msra.mxu0 0.0
      %665 = vmatprep.subr.mxu0 0.0
      %666 = vmatpush1.msra.mxu0 0.0
      %667 = vmatprep.subr.mxu0 0.0
      %668 = vmatpush1.msra.mxu0 0.0
      %669 = vmatprep.subr.mxu0 0.0
      %670 = vmatpush1.msra.mxu0 0.0
      %671 = vmatprep.subr.mxu0 0.0
      %672 = vmatpush1.msra.mxu0 0.0
      %673 = vmatprep.subr.mxu0 0.0
      %674 = vmatpush1.msra.mxu0 0.0
      %675 = vmatprep.subr.mxu0 0.0
      %676 = vmatpush1.msra.mxu0 0.0
      %677 = vmatprep.subr.mxu0 0.0
      %678 = vmatpush1.msra.mxu0 0.0
      %679 = vmatprep.subr.mxu0 0.0
      %680 = vmatpush1.msra.mxu0 0.0
      %681 = vmatprep.subr.mxu0 0.0
      %682 = vmatpush1.msra.mxu0 0.0
      %683 = vmatprep.subr.mxu0 0.0
      %684 = vmatpush1.msra.mxu0 0.0
      %685 = vmatprep.subr.mxu0 0.0
      %686 = vmatpush1.msra.mxu0 0.0
      %687 = vmatprep.subr.mxu0 0.0
      %688 = vmatpush1.msra.mxu0 0.0
      %689 = vmatprep.subr.mxu0 0.0
      %690 = vmatpush1.msra.mxu0 0.0
      %691 = vmatprep.subr.mxu0 0.0
      %692 = vmatpush1.msra.mxu0 0.0
      %693 = vmatprep.subr.mxu0 0.0
      %694 = vmatpush1.msra.mxu0 0.0
      %695 = vmatprep.subr.mxu0 0.0
      %696 = vmatpush1.msra.mxu0 0.0
      %697 = vmatprep.subr.mxu0 0.0
      %698 = vmatpush1.msra.mxu0 0.0
      %699 = vmatprep.subr.mxu0 0.0
      %700 = vmatpush1.msra.mxu0 0.0
      %701 = vmatprep.subr.mxu0 0.0
      %702 = vmatpush1.msra.mxu0 0.0
      %703 = vmatprep.subr.mxu0 0.0
      %704 = vmatpush1.msra.mxu0 0.0
      %705 = vmatprep.subr.mxu0 0.0
      %706 = vmatpush1.msra.mxu0 0.0
      %707 = vmatprep.subr.mxu0 0.0
      %708 = vmatpush1.msra.mxu0 0.0
      %709 = vmatprep.subr.mxu0 0.0
      %710 = vmatpush1.msra.mxu0 0.0
      %711 = vmatprep.subr.mxu0 0.0
      %712 = vmatpush1.msra.mxu0 0.0
      %713 = vmatprep.subr.mxu0 0.0
      %714 = vmatpush1.msra.mxu0 0.0
      %715 = vmatprep.subr.mxu0 0.0
      %716 = vmatpush1.msra.mxu0 0.0
      %717 = vmatprep.subr.mxu0 0.0
      %718 = vmatpush1.msra.mxu0 0.0
      %719 = vmatprep.mubr.f32.mxu0 0.0
      %720 = vmatmul.mubr.f32.gmra.mrb[0].mxu0 %v647
      %v721 = vpop.f32.mrb[0].mxu0
      %v722 = vadd.f32 0.0, %v721
      %v723 = vpop.f32.mrb[0].mxu0
      %v724 = vadd.f32 0.0, %v723
      %725 = vdwg.mxu0
      %v726 = vadd.f32 %v635, %v722
      %v727 = vadd.f32 %v636, %v724
      %728 = vrot.lane.b32.xlu0 %v279, 112
      %v729 = vpop.permute.xlu0 %728
      %730 = vrot.lane.b32.xlu0 %v282, 112
      %v731 = vpop.permute.xlu0 %730
      %vm732 = vcmp.lt.s32.totalorder %v289, 112
      %v733 = vsel %vm732, %v729, %v731
      %v734 = vsel %vm732, %v731, %v729
      %s735 = scalar_lea.vmem %s1, 40
      %v736 = vld [vmem:[%s735] sm:$0xff]
      %v738 = vsel %vm295, %v736, 0
      %v741 = vsel %vm299, %v733, 0
      %v744 = vsel %vm299, %v734, 0
      %746 = vmatprep.subr.mxu0 %v744
      %747 = vmatpush1.msra.mxu0 %v741
      %748 = vmatprep.subr.mxu0 0.0
      %749 = vmatpush1.msra.mxu0 0.0
      %750 = vmatprep.subr.mxu0 0.0
      %751 = vmatpush1.msra.mxu0 0.0
      %752 = vmatprep.subr.mxu0 0.0
      %753 = vmatpush1.msra.mxu0 0.0
      %754 = vmatprep.subr.mxu0 0.0
      %755 = vmatpush1.msra.mxu0 0.0
      %756 = vmatprep.subr.mxu0 0.0
      %757 = vmatpush1.msra.mxu0 0.0
      %758 = vmatprep.subr.mxu0 0.0
      %759 = vmatpush1.msra.mxu0 0.0
      %760 = vmatprep.subr.mxu0 0.0
      %761 = vmatpush1.msra.mxu0 0.0
      %762 = vmatprep.subr.mxu0 0.0
      %763 = vmatpush1.msra.mxu0 0.0
      %764 = vmatprep.subr.mxu0 0.0
      %765 = vmatpush1.msra.mxu0 0.0
      %766 = vmatprep.subr.mxu0 0.0
      %767 = vmatpush1.msra.mxu0 0.0
      %768 = vmatprep.subr.mxu0 0.0
      %769 = vmatpush1.msra.mxu0 0.0
      %770 = vmatprep.subr.mxu0 0.0
      %771 = vmatpush1.msra.mxu0 0.0
      %772 = vmatprep.subr.mxu0 0.0
      %773 = vmatpush1.msra.mxu0 0.0
      %774 = vmatprep.subr.mxu0 0.0
      %775 = vmatpush1.msra.mxu0 0.0
      %776 = vmatprep.subr.mxu0 0.0
      %777 = vmatpush1.msra.mxu0 0.0
      %778 = vmatprep.subr.mxu0 0.0
      %779 = vmatpush1.msra.mxu0 0.0
      %780 = vmatprep.subr.mxu0 0.0
      %781 = vmatpush1.msra.mxu0 0.0
      %782 = vmatprep.subr.mxu0 0.0
      %783 = vmatpush1.msra.mxu0 0.0
      %784 = vmatprep.subr.mxu0 0.0
      %785 = vmatpush1.msra.mxu0 0.0
      %786 = vmatprep.subr.mxu0 0.0
      %787 = vmatpush1.msra.mxu0 0.0
      %788 = vmatprep.subr.mxu0 0.0
      %789 = vmatpush1.msra.mxu0 0.0
      %790 = vmatprep.subr.mxu0 0.0
      %791 = vmatpush1.msra.mxu0 0.0
      %792 = vmatprep.subr.mxu0 0.0
      %793 = vmatpush1.msra.mxu0 0.0
      %794 = vmatprep.subr.mxu0 0.0
      %795 = vmatpush1.msra.mxu0 0.0
      %796 = vmatprep.subr.mxu0 0.0
      %797 = vmatpush1.msra.mxu0 0.0
      %798 = vmatprep.subr.mxu0 0.0
      %799 = vmatpush1.msra.mxu0 0.0
      %800 = vmatprep.subr.mxu0 0.0
      %801 = vmatpush1.msra.mxu0 0.0
      %802 = vmatprep.subr.mxu0 0.0
      %803 = vmatpush1.msra.mxu0 0.0
      %804 = vmatprep.subr.mxu0 0.0
      %805 = vmatpush1.msra.mxu0 0.0
      %806 = vmatprep.subr.mxu0 0.0
      %807 = vmatpush1.msra.mxu0 0.0
      %808 = vmatprep.subr.mxu0 0.0
      %809 = vmatpush1.msra.mxu0 0.0
      %810 = vmatprep.mubr.f32.mxu0 0.0
      %811 = vmatmul.mubr.f32.gmra.mrb[0].mxu0 %v738
      %v812 = vpop.f32.mrb[0].mxu0
      %v813 = vadd.f32 0.0, %v812
      %v814 = vpop.f32.mrb[0].mxu0
      %v815 = vadd.f32 0.0, %v814
      %816 = vdwg.mxu0
      %v817 = vadd.f32 %v726, %v813
      %v818 = vadd.f32 %v727, %v815
      %819 = vrot.lane.b32.xlu0 %v279, 111
      %v820 = vpop.permute.xlu0 %819
      %821 = vrot.lane.b32.xlu0 %v282, 111
      %v822 = vpop.permute.xlu0 %821
      %vm823 = vcmp.lt.s32.totalorder %v289, 111
      %v824 = vsel %vm823, %v820, %v822
      %v825 = vsel %vm823, %v822, %v820
      %s826 = scalar_lea.vmem %s1, 48
      %v827 = vld [vmem:[%s826] sm:$0xff]
      %v829 = vsel %vm295, %v827, 0
      %v832 = vsel %vm299, %v824, 0
      %v835 = vsel %vm299, %v825, 0
      %837 = vmatprep.subr.mxu0 %v835
      %838 = vmatpush1.msra.mxu0 %v832
      %839 = vmatprep.subr.mxu0 0.0
      %840 = vmatpush1.msra.mxu0 0.0
      %841 = vmatprep.subr.mxu0 0.0
      %842 = vmatpush1.msra.mxu0 0.0
      %843 = vmatprep.subr.mxu0 0.0
      %844 = vmatpush1.msra.mxu0 0.0
      %845 = vmatprep.subr.mxu0 0.0
      %846 = vmatpush1.msra.mxu0 0.0
      %847 = vmatprep.subr.mxu0 0.0
      %848 = vmatpush1.msra.mxu0 0.0
      %849 = vmatprep.subr.mxu0 0.0
      %850 = vmatpush1.msra.mxu0 0.0
      %851 = vmatprep.subr.mxu0 0.0
      %852 = vmatpush1.msra.mxu0 0.0
      %853 = vmatprep.subr.mxu0 0.0
      %854 = vmatpush1.msra.mxu0 0.0
      %855 = vmatprep.subr.mxu0 0.0
      %856 = vmatpush1.msra.mxu0 0.0
      %857 = vmatprep.subr.mxu0 0.0
      %858 = vmatpush1.msra.mxu0 0.0
      %859 = vmatprep.subr.mxu0 0.0
      %860 = vmatpush1.msra.mxu0 0.0
      %861 = vmatprep.subr.mxu0 0.0
      %862 = vmatpush1.msra.mxu0 0.0
      %863 = vmatprep.subr.mxu0 0.0
      %864 = vmatpush1.msra.mxu0 0.0
      %865 = vmatprep.subr.mxu0 0.0
      %866 = vmatpush1.msra.mxu0 0.0
      %867 = vmatprep.subr.mxu0 0.0
      %868 = vmatpush1.msra.mxu0 0.0
      %869 = vmatprep.subr.mxu0 0.0
      %870 = vmatpush1.msra.mxu0 0.0
      %871 = vmatprep.subr.mxu0 0.0
      %872 = vmatpush1.msra.mxu0 0.0
      %873 = vmatprep.subr.mxu0 0.0
      %874 = vmatpush1.msra.mxu0 0.0
      %875 = vmatprep.subr.mxu0 0.0
      %876 = vmatpush1.msra.mxu0 0.0
      %877 = vmatprep.subr.mxu0 0.0
      %878 = vmatpush1.msra.mxu0 0.0
      %879 = vmatprep.subr.mxu0 0.0
      %880 = vmatpush1.msra.mxu0 0.0
      %881 = vmatprep.subr.mxu0 0.0
      %882 = vmatpush1.msra.mxu0 0.0
      %883 = vmatprep.subr.mxu0 0.0
      %884 = vmatpush1.msra.mxu0 0.0
      %885 = vmatprep.subr.mxu0 0.0
      %886 = vmatpush1.msra.mxu0 0.0
      %887 = vmatprep.subr.mxu0 0.0
      %888 = vmatpush1.msra.mxu0 0.0
      %889 = vmatprep.subr.mxu0 0.0
      %890 = vmatpush1.msra.mxu0 0.0
      %891 = vmatprep.subr.mxu0 0.0
      %892 = vmatpush1.msra.mxu0 0.0
      %893 = vmatprep.subr.mxu0 0.0
      %894 = vmatpush1.msra.mxu0 0.0
      %895 = vmatprep.subr.mxu0 0.0
      %896 = vmatpush1.msra.mxu0 0.0
      %897 = vmatprep.subr.mxu0 0.0
      %898 = vmatpush1.msra.mxu0 0.0
      %899 = vmatprep.subr.mxu0 0.0
      %900 = vmatpush1.msra.mxu0 0.0
      %901 = vmatprep.mubr.f32.mxu0 0.0
      %902 = vmatmul.mubr.f32.gmra.mrb[0].mxu0 %v829
      %v903 = vpop.f32.mrb[0].mxu0
      %v904 = vadd.f32 0.0, %v903
      %v905 = vpop.f32.mrb[0].mxu0
      %v906 = vadd.f32 0.0, %v905
      %907 = vdwg.mxu0
      %v908 = vadd.f32 %v817, %v904
      %v909 = vadd.f32 %v818, %v906
      %910 = vrot.lane.b32.xlu0 %v279, 110
      %v911 = vpop.permute.xlu0 %910
      %912 = vrot.lane.b32.xlu0 %v282, 110
      %v913 = vpop.permute.xlu0 %912
      %vm914 = vcmp.lt.s32.totalorder %v289, 110
      %v915 = vsel %vm914, %v911, %v913
      %v916 = vsel %vm914, %v913, %v911
      %s917 = scalar_lea.vmem %s1, 56
      %v918 = vld [vmem:[%s917] sm:$0xff]
      %v920 = vsel %vm295, %v918, 0
      %v923 = vsel %vm299, %v915, 0
      %v926 = vsel %vm299, %v916, 0
      %928 = vmatprep.subr.mxu0 %v926
      %929 = vmatpush1.msra.mxu0 %v923
      %930 = vmatprep.subr.mxu0 0.0
      %931 = vmatpush1.msra.mxu0 0.0
      %932 = vmatprep.subr.mxu0 0.0
      %933 = vmatpush1.msra.mxu0 0.0
      %934 = vmatprep.subr.mxu0 0.0
      %935 = vmatpush1.msra.mxu0 0.0
      %936 = vmatprep.subr.mxu0 0.0
      %937 = vmatpush1.msra.mxu0 0.0
      %938 = vmatprep.subr.mxu0 0.0
      %939 = vmatpush1.msra.mxu0 0.0
      %940 = vmatprep.subr.mxu0 0.0
      %941 = vmatpush1.msra.mxu0 0.0
      %942 = vmatprep.subr.mxu0 0.0
      %943 = vmatpush1.msra.mxu0 0.0
      %944 = vmatprep.subr.mxu0 0.0
      %945 = vmatpush1.msra.mxu0 0.0
      %946 = vmatprep.subr.mxu0 0.0
      %947 = vmatpush1.msra.mxu0 0.0
      %948 = vmatprep.subr.mxu0 0.0
      %949 = vmatpush1.msra.mxu0 0.0
      %950 = vmatprep.subr.mxu0 0.0
      %951 = vmatpush1.msra.mxu0 0.0
      %952 = vmatprep.subr.mxu0 0.0
      %953 = vmatpush1.msra.mxu0 0.0
      %954 = vmatprep.subr.mxu0 0.0
      %955 = vmatpush1.msra.mxu0 0.0
      %956 = vmatprep.subr.mxu0 0.0
      %957 = vmatpush1.msra.mxu0 0.0
      %958 = vmatprep.subr.mxu0 0.0
      %959 = vmatpush1.msra.mxu0 0.0
      %960 = vmatprep.subr.mxu0 0.0
      %961 = vmatpush1.msra.mxu0 0.0
      %962 = vmatprep.subr.mxu0 0.0
      %963 = vmatpush1.msra.mxu0 0.0
      %964 = vmatprep.subr.mxu0 0.0
      %965 = vmatpush1.msra.mxu0 0.0
      %966 = vmatprep.subr.mxu0 0.0
      %967 = vmatpush1.msra.mxu0 0.0
      %968 = vmatprep.subr.mxu0 0.0
      %969 = vmatpush1.msra.mxu0 0.0
      %970 = vmatprep.subr.mxu0 0.0
      %971 = vmatpush1.msra.mxu0 0.0
      %972 = vmatprep.subr.mxu0 0.0
      %973 = vmatpush1.msra.mxu0 0.0
      %974 = vmatprep.subr.mxu0 0.0
      %975 = vmatpush1.msra.mxu0 0.0
      %976 = vmatprep.subr.mxu0 0.0
      %977 = vmatpush1.msra.mxu0 0.0
      %978 = vmatprep.subr.mxu0 0.0
      %979 = vmatpush1.msra.mxu0 0.0
      %980 = vmatprep.subr.mxu0 0.0
      %981 = vmatpush1.msra.mxu0 0.0
      %982 = vmatprep.subr.mxu0 0.0
      %983 = vmatpush1.msra.mxu0 0.0
      %984 = vmatprep.subr.mxu0 0.0
      %985 = vmatpush1.msra.mxu0 0.0
      %986 = vmatprep.subr.mxu0 0.0
      %987 = vmatpush1.msra.mxu0 0.0
      %988 = vmatprep.subr.mxu0 0.0
      %989 = vmatpush1.msra.mxu0 0.0
      %990 = vmatprep.subr.mxu0 0.0
      %991 = vmatpush1.msra.mxu0 0.0
      %992 = vmatprep.mubr.f32.mxu0 0.0
      %993 = vmatmul.mubr.f32.gmra.mrb[0].mxu0 %v920
      %v994 = vpop.f32.mrb[0].mxu0
      %v995 = vadd.f32 0.0, %v994
      %v996 = vpop.f32.mrb[0].mxu0
      %v997 = vadd.f32 0.0, %v996
      %998 = vdwg.mxu0
      %v999 = vadd.f32 %v908, %v995
      %v1000 = vadd.f32 %v909, %v997
      %1001 = vrot.lane.b32.xlu0 %v279, 109
      %v1002 = vpop.permute.xlu0 %1001
      %1003 = vrot.lane.b32.xlu0 %v282, 109
      %v1004 = vpop.permute.xlu0 %1003
      %vm1005 = vcmp.lt.s32.totalorder %v289, 109
      %v1006 = vsel %vm1005, %v1002, %v1004
      %v1007 = vsel %vm1005, %v1004, %v1002
      %s1008 = scalar_lea.vmem %s1, 64
      %v1009 = vld [vmem:[%s1008] sm:$0xff]
      %v1011 = vsel %vm295, %v1009, 0
      %v1014 = vsel %vm299, %v1006, 0
      %v1017 = vsel %vm299, %v1007, 0
      %1019 = vmatprep.subr.mxu0 %v1017
      %1020 = vmatpush1.msra.mxu0 %v1014
      %1021 = vmatprep.subr.mxu0 0.0
      %1022 = vmatpush1.msra.mxu0 0.0
      %1023 = vmatprep.subr.mxu0 0.0
      %1024 = vmatpush1.msra.mxu0 0.0
      %1025 = vmatprep.subr.mxu0 0.0
      %1026 = vmatpush1.msra.mxu0 0.0
      %1027 = vmatprep.subr.mxu0 0.0
      %1028 = vmatpush1.msra.mxu0 0.0
      %1029 = vmatprep.subr.mxu0 0.0
      %1030 = vmatpush1.msra.mxu0 0.0
      %1031 = vmatprep.subr.mxu0 0.0
      %1032 = vmatpush1.msra.mxu0 0.0
      %1033 = vmatprep.subr.mxu0 0.0
      %1034 = vmatpush1.msra.mxu0 0.0
      %1035 = vmatprep.subr.mxu0 0.0
      %1036 = vmatpush1.msra.mxu0 0.0
      %1037 = vmatprep.subr.mxu0 0.0
      %1038 = vmatpush1.msra.mxu0 0.0
      %1039 = vmatprep.subr.mxu0 0.0
      %1040 = vmatpush1.msra.mxu0 0.0
      %1041 = vmatprep.subr.mxu0 0.0
      %1042 = vmatpush1.msra.mxu0 0.0
      %1043 = vmatprep.subr.mxu0 0.0
      %1044 = vmatpush1.msra.mxu0 0.0
      %1045 = vmatprep.subr.mxu0 0.0
      %1046 = vmatpush1.msra.mxu0 0.0
      %1047 = vmatprep.subr.mxu0 0.0
      %1048 = vmatpush1.msra.mxu0 0.0
      %1049 = vmatprep.subr.mxu0 0.0
      %1050 = vmatpush1.msra.mxu0 0.0
      %1051 = vmatprep.subr.mxu0 0.0
      %1052 = vmatpush1.msra.mxu0 0.0
      %1053 = vmatprep.subr.mxu0 0.0
      %1054 = vmatpush1.msra.mxu0 0.0
      %1055 = vmatprep.subr.mxu0 0.0
      %1056 = vmatpush1.msra.mxu0 0.0
      %1057 = vmatprep.subr.mxu0 0.0
      %1058 = vmatpush1.msra.mxu0 0.0
      %1059 = vmatprep.subr.mxu0 0.0
      %1060 = vmatpush1.msra.mxu0 0.0
      %1061 = vmatprep.subr.mxu0 0.0
      %1062 = vmatpush1.msra.mxu0 0.0
      %1063 = vmatprep.subr.mxu0 0.0
      %1064 = vmatpush1.msra.mxu0 0.0
      %1065 = vmatprep.subr.mxu0 0.0
      %1066 = vmatpush1.msra.mxu0 0.0
      %1067 = vmatprep.subr.mxu0 0.0
      %1068 = vmatpush1.msra.mxu0 0.0
      %1069 = vmatprep.subr.mxu0 0.0
      %1070 = vmatpush1.msra.mxu0 0.0
      %1071 = vmatprep.subr.mxu0 0.0
      %1072 = vmatpush1.msra.mxu0 0.0
      %1073 = vmatprep.subr.mxu0 0.0
      %1074 = vmatpush1.msra.mxu0 0.0
      %1075 = vmatprep.subr.mxu0 0.0
      %1076 = vmatpush1.msra.mxu0 0.0
      %1077 = vmatprep.subr.mxu0 0.0
      %1078 = vmatpush1.msra.mxu0 0.0
      %1079 = vmatprep.subr.mxu0 0.0
      %1080 = vmatpush1.msra.mxu0 0.0
      %1081 = vmatprep.subr.mxu0 0.0
      %1082 = vmatpush1.msra.mxu0 0.0
      %1083 = vmatprep.mubr.f32.mxu0 0.0
      %1084 = vmatmul.mubr.f32.gmra.mrb[0].mxu0 %v1011
      %v1085 = vpop.f32.mrb[0].mxu0
      %v1086 = vadd.f32 0.0, %v1085
      %v1087 = vpop.f32.mrb[0].mxu0
      %v1088 = vadd.f32 0.0, %v1087
      %1089 = vdwg.mxu0
      %v1090 = vadd.f32 %v999, %v1086
      %v1091 = vadd.f32 %v1000, %v1088
      %1092 = vrot.lane.b32.xlu0 %v279, 108
      %v1093 = vpop.permute.xlu0 %1092
      %1094 = vrot.lane.b32.xlu0 %v282, 108
      %v1095 = vpop.permute.xlu0 %1094
      %vm1096 = vcmp.lt.s32.totalorder %v289, 108
      %v1097 = vsel %vm1096, %v1093, %v1095
      %v1098 = vsel %vm1096, %v1095, %v1093
      %s1099 = scalar_lea.vmem %s1, 72
      %v1100 = vld [vmem:[%s1099] sm:$0xff]
      %v1102 = vsel %vm295, %v1100, 0
      %v1105 = vsel %vm299, %v1097, 0
      %v1108 = vsel %vm299, %v1098, 0
      %1110 = vmatprep.subr.mxu0 %v1108
      %1111 = vmatpush1.msra.mxu0 %v1105
      %1112 = vmatprep.subr.mxu0 0.0
      %1113 = vmatpush1.msra.mxu0 0.0
      %1114 = vmatprep.subr.mxu0 0.0
      %1115 = vmatpush1.msra.mxu0 0.0
      %1116 = vmatprep.subr.mxu0 0.0
      %1117 = vmatpush1.msra.mxu0 0.0
      %1118 = vmatprep.subr.mxu0 0.0
      %1119 = vmatpush1.msra.mxu0 0.0
      %1120 = vmatprep.subr.mxu0 0.0
      %1121 = vmatpush1.msra.mxu0 0.0
      %1122 = vmatprep.subr.mxu0 0.0
      %1123 = vmatpush1.msra.mxu0 0.0
      %1124 = vmatprep.subr.mxu0 0.0
      %1125 = vmatpush1.msra.mxu0 0.0
      %1126 = vmatprep.subr.mxu0 0.0
      %1127 = vmatpush1.msra.mxu0 0.0
      %1128 = vmatprep.subr.mxu0 0.0
      %1129 = vmatpush1.msra.mxu0 0.0
      %1130 = vmatprep.subr.mxu0 0.0
      %1131 = vmatpush1.msra.mxu0 0.0
      %1132 = vmatprep.subr.mxu0 0.0
      %1133 = vmatpush1.msra.mxu0 0.0
      %1134 = vmatprep.subr.mxu0 0.0
      %1135 = vmatpush1.msra.mxu0 0.0
      %1136 = vmatprep.subr.mxu0 0.0
      %1137 = vmatpush1.msra.mxu0 0.0
      %1138 = vmatprep.subr.mxu0 0.0
      %1139 = vmatpush1.msra.mxu0 0.0
      %1140 = vmatprep.subr.mxu0 0.0
      %1141 = vmatpush1.msra.mxu0 0.0
      %1142 = vmatprep.subr.mxu0 0.0
      %1143 = vmatpush1.msra.mxu0 0.0
      %1144 = vmatprep.subr.mxu0 0.0
      %1145 = vmatpush1.msra.mxu0 0.0
      %1146 = vmatprep.subr.mxu0 0.0
      %1147 = vmatpush1.msra.mxu0 0.0
      %1148 = vmatprep.subr.mxu0 0.0
      %1149 = vmatpush1.msra.mxu0 0.0
      %1150 = vmatprep.subr.mxu0 0.0
      %1151 = vmatpush1.msra.mxu0 0.0
      %1152 = vmatprep.subr.mxu0 0.0
      %1153 = vmatpush1.msra.mxu0 0.0
      %1154 = vmatprep.subr.mxu0 0.0
      %1155 = vmatpush1.msra.mxu0 0.0
      %1156 = vmatprep.subr.mxu0 0.0
      %1157 = vmatpush1.msra.mxu0 0.0
      %1158 = vmatprep.subr.mxu0 0.0
      %1159 = vmatpush1.msra.mxu0 0.0
      %1160 = vmatprep.subr.mxu0 0.0
      %1161 = vmatpush1.msra.mxu0 0.0
      %1162 = vmatprep.subr.mxu0 0.0
      %1163 = vmatpush1.msra.mxu0 0.0
      %1164 = vmatprep.subr.mxu0 0.0
      %1165 = vmatpush1.msra.mxu0 0.0
      %1166 = vmatprep.subr.mxu0 0.0
      %1167 = vmatpush1.msra.mxu0 0.0
      %1168 = vmatprep.subr.mxu0 0.0
      %1169 = vmatpush1.msra.mxu0 0.0
      %1170 = vmatprep.subr.mxu0 0.0
      %1171 = vmatpush1.msra.mxu0 0.0
      %1172 = vmatprep.subr.mxu0 0.0
      %1173 = vmatpush1.msra.mxu0 0.0
      %1174 = vmatprep.mubr.f32.mxu0 0.0
      %1175 = vmatmul.mubr.f32.gmra.mrb[0].mxu0 %v1102
      %v1176 = vpop.f32.mrb[0].mxu0
      %v1177 = vadd.f32 0.0, %v1176
      %v1178 = vpop.f32.mrb[0].mxu0
      %v1179 = vadd.f32 0.0, %v1178
      %1180 = vdwg.mxu0
      %v1181 = vadd.f32 %v1090, %v1177
      %v1182 = vadd.f32 %v1091, %v1179
      %1183 = vrot.lane.b32.xlu0 %v279, 96
      %v1184 = vpop.permute.xlu0 %1183
      %1185 = vrot.lane.b32.xlu0 %v282, 96
      %v1186 = vpop.permute.xlu0 %1185
      %vm1187 = vcmp.lt.s32.totalorder %v289, 96
      %v1188 = vsel %vm1187, %v1184, %v1186
      %v1189 = vsel %vm1187, %v1186, %v1184
      %s1190 = scalar_lea.vmem %s1, 80
      %v1191 = vld [vmem:[%s1190] sm:$0xff]
      %v1193 = vsel %vm295, %v1191, 0
      %v1196 = vsel %vm299, %v1188, 0
      %v1199 = vsel %vm299, %v1189, 0
      %1201 = vmatprep.subr.mxu0 %v1199
      %1202 = vmatpush1.msra.mxu0 %v1196
      %1203 = vmatprep.subr.mxu0 0.0
      %1204 = vmatpush1.msra.mxu0 0.0
      %1205 = vmatprep.subr.mxu0 0.0
      %1206 = vmatpush1.msra.mxu0 0.0
      %1207 = vmatprep.subr.mxu0 0.0
      %1208 = vmatpush1.msra.mxu0 0.0
      %1209 = vmatprep.subr.mxu0 0.0
      %1210 = vmatpush1.msra.mxu0 0.0
      %1211 = vmatprep.subr.mxu0 0.0
      %1212 = vmatpush1.msra.mxu0 0.0
      %1213 = vmatprep.subr.mxu0 0.0
      %1214 = vmatpush1.msra.mxu0 0.0
      %1215 = vmatprep.subr.mxu0 0.0
      %1216 = vmatpush1.msra.mxu0 0.0
      %1217 = vmatprep.subr.mxu0 0.0
      %1218 = vmatpush1.msra.mxu0 0.0
      %1219 = vmatprep.subr.mxu0 0.0
      %1220 = vmatpush1.msra.mxu0 0.0
      %1221 = vmatprep.subr.mxu0 0.0
      %1222 = vmatpush1.msra.mxu0 0.0
      %1223 = vmatprep.subr.mxu0 0.0
      %1224 = vmatpush1.msra.mxu0 0.0
      %1225 = vmatprep.subr.mxu0 0.0
      %1226 = vmatpush1.msra.mxu0 0.0
      %1227 = vmatprep.subr.mxu0 0.0
      %1228 = vmatpush1.msra.mxu0 0.0
      %1229 = vmatprep.subr.mxu0 0.0
      %1230 = vmatpush1.msra.mxu0 0.0
      %1231 = vmatprep.subr.mxu0 0.0
      %1232 = vmatpush1.msra.mxu0 0.0
      %1233 = vmatprep.subr.mxu0 0.0
      %1234 = vmatpush1.msra.mxu0 0.0
      %1235 = vmatprep.subr.mxu0 0.0
      %1236 = vmatpush1.msra.mxu0 0.0
      %1237 = vmatprep.subr.mxu0 0.0
      %1238 = vmatpush1.msra.mxu0 0.0
      %1239 = vmatprep.subr.mxu0 0.0
      %1240 = vmatpush1.msra.mxu0 0.0
      %1241 = vmatprep.subr.mxu0 0.0
      %1242 = vmatpush1.msra.mxu0 0.0
      %1243 = vmatprep.subr.mxu0 0.0
      %1244 = vmatpush1.msra.mxu0 0.0
      %1245 = vmatprep.subr.mxu0 0.0
      %1246 = vmatpush1.msra.mxu0 0.0
      %1247 = vmatprep.subr.mxu0 0.0
      %1248 = vmatpush1.msra.mxu0 0.0
      %1249 = vmatprep.subr.mxu0 0.0
      %1250 = vmatpush1.msra.mxu0 0.0
      %1251 = vmatprep.subr.mxu0 0.0
      %1252 = vmatpush1.msra.mxu0 0.0
      %1253 = vmatprep.subr.mxu0 0.0
      %1254 = vmatpush1.msra.mxu0 0.0
      %1255 = vmatprep.subr.mxu0 0.0
      %1256 = vmatpush1.msra.mxu0 0.0
      %1257 = vmatprep.subr.mxu0 0.0
      %1258 = vmatpush1.msra.mxu0 0.0
      %1259 = vmatprep.subr.mxu0 0.0
      %1260 = vmatpush1.msra.mxu0 0.0
      %1261 = vmatprep.subr.mxu0 0.0
      %1262 = vmatpush1.msra.mxu0 0.0
      %1263 = vmatprep.subr.mxu0 0.0
      %1264 = vmatpush1.msra.mxu0 0.0
      %1265 = vmatprep.mubr.f32.mxu0 0.0
      %1266 = vmatmul.mubr.f32.gmra.mrb[0].mxu0 %v1193
      %v1267 = vpop.f32.mrb[0].mxu0
      %v1268 = vadd.f32 0.0, %v1267
      %v1269 = vpop.f32.mrb[0].mxu0
      %v1270 = vadd.f32 0.0, %v1269
      %1271 = vdwg.mxu0
      %v1272 = vadd.f32 %v1181, %v1268
      %v1273 = vadd.f32 %v1182, %v1270
      %1274 = vrot.lane.b32.xlu0 %v279, 95
      %v1275 = vpop.permute.xlu0 %1274
      %1276 = vrot.lane.b32.xlu0 %v282, 95
      %v1277 = vpop.permute.xlu0 %1276
      %vm1278 = vcmp.lt.s32.totalorder %v289, 95
      %v1279 = vsel %vm1278, %v1275, %v1277
      %v1280 = vsel %vm1278, %v1277, %v1275
      %s1281 = scalar_lea.vmem %s1, 88
      %v1282 = vld [vmem:[%s1281] sm:$0xff]
      %v1284 = vsel %vm295, %v1282, 0
      %v1287 = vsel %vm299, %v1279, 0
      %v1290 = vsel %vm299, %v1280, 0
      %1292 = vmatprep.subr.mxu0 %v1290
      %1293 = vmatpush1.msra.mxu0 %v1287
      %1294 = vmatprep.subr.mxu0 0.0
      %1295 = vmatpush1.msra.mxu0 0.0
      %1296 = vmatprep.subr.mxu0 0.0
      %1297 = vmatpush1.msra.mxu0 0.0
      %1298 = vmatprep.subr.mxu0 0.0
      %1299 = vmatpush1.msra.mxu0 0.0
      %1300 = vmatprep.subr.mxu0 0.0
      %1301 = vmatpush1.msra.mxu0 0.0
      %1302 = vmatprep.subr.mxu0 0.0
      %1303 = vmatpush1.msra.mxu0 0.0
      %1304 = vmatprep.subr.mxu0 0.0
      %1305 = vmatpush1.msra.mxu0 0.0
      %1306 = vmatprep.subr.mxu0 0.0
      %1307 = vmatpush1.msra.mxu0 0.0
      %1308 = vmatprep.subr.mxu0 0.0
      %1309 = vmatpush1.msra.mxu0 0.0
      %1310 = vmatprep.subr.mxu0 0.0
      %1311 = vmatpush1.msra.mxu0 0.0
      %1312 = vmatprep.subr.mxu0 0.0
      %1313 = vmatpush1.msra.mxu0 0.0
      %1314 = vmatprep.subr.mxu0 0.0
      %1315 = vmatpush1.msra.mxu0 0.0
      %1316 = vmatprep.subr.mxu0 0.0
      %1317 = vmatpush1.msra.mxu0 0.0
      %1318 = vmatprep.subr.mxu0 0.0
      %1319 = vmatpush1.msra.mxu0 0.0
      %1320 = vmatprep.subr.mxu0 0.0
      %1321 = vmatpush1.msra.mxu0 0.0
      %1322 = vmatprep.subr.mxu0 0.0
      %1323 = vmatpush1.msra.mxu0 0.0
      %1324 = vmatprep.subr.mxu0 0.0
      %1325 = vmatpush1.msra.mxu0 0.0
      %1326 = vmatprep.subr.mxu0 0.0
      %1327 = vmatpush1.msra.mxu0 0.0
      %1328 = vmatprep.subr.mxu0 0.0
      %1329 = vmatpush1.msra.mxu0 0.0
      %1330 = vmatprep.subr.mxu0 0.0
      %1331 = vmatpush1.msra.mxu0 0.0
      %1332 = vmatprep.subr.mxu0 0.0
      %1333 = vmatpush1.msra.mxu0 0.0
      %1334 = vmatprep.subr.mxu0 0.0
      %1335 = vmatpush1.msra.mxu0 0.0
      %1336 = vmatprep.subr.mxu0 0.0
      %1337 = vmatpush1.msra.mxu0 0.0
      %1338 = vmatprep.subr.mxu0 0.0
      %1339 = vmatpush1.msra.mxu0 0.0
      %1340 = vmatprep.subr.mxu0 0.0
      %1341 = vmatpush1.msra.mxu0 0.0
      %1342 = vmatprep.subr.mxu0 0.0
      %1343 = vmatpush1.msra.mxu0 0.0
      %1344 = vmatprep.subr.mxu0 0.0
      %1345 = vmatpush1.msra.mxu0 0.0
      %1346 = vmatprep.subr.mxu0 0.0
      %1347 = vmatpush1.msra.mxu0 0.0
      %1348 = vmatprep.subr.mxu0 0.0
      %1349 = vmatpush1.msra.mxu0 0.0
      %1350 = vmatprep.subr.mxu0 0.0
      %1351 = vmatpush1.msra.mxu0 0.0
      %1352 = vmatprep.subr.mxu0 0.0
      %1353 = vmatpush1.msra.mxu0 0.0
      %1354 = vmatprep.subr.mxu0 0.0
      %1355 = vmatpush1.msra.mxu0 0.0
      %1356 = vmatprep.mubr.f32.mxu0 0.0
      %1357 = vmatmul.mubr.f32.gmra.mrb[0].mxu0 %v1284
      %v1358 = vpop.f32.mrb[0].mxu0
      %v1359 = vadd.f32 0.0, %v1358
      %v1360 = vpop.f32.mrb[0].mxu0
      %v1361 = vadd.f32 0.0, %v1360
      %1362 = vdwg.mxu0
      %v1363 = vadd.f32 %v1272, %v1359
      %v1364 = vadd.f32 %v1273, %v1361
      %1365 = vrot.lane.b32.xlu0 %v279, 94
      %v1366 = vpop.permute.xlu0 %1365
      %1367 = vrot.lane.b32.xlu0 %v282, 94
      %v1368 = vpop.permute.xlu0 %1367
      %vm1369 = vcmp.lt.s32.totalorder %v289, 94
      %v1370 = vsel %vm1369, %v1366, %v1368
      %v1371 = vsel %vm1369, %v1368, %v1366
      %s1372 = scalar_lea.vmem %s1, 96
      %v1373 = vld [vmem:[%s1372] sm:$0xff]
      %v1375 = vsel %vm295, %v1373, 0
      %v1378 = vsel %vm299, %v1370, 0
      %v1381 = vsel %vm299, %v1371, 0
      %1383 = vmatprep.subr.mxu0 %v1381
      %1384 = vmatpush1.msra.mxu0 %v1378
      %1385 = vmatprep.subr.mxu0 0.0
      %1386 = vmatpush1.msra.mxu0 0.0
      %1387 = vmatprep.subr.mxu0 0.0
      %1388 = vmatpush1.msra.mxu0 0.0
      %1389 = vmatprep.subr.mxu0 0.0
      %1390 = vmatpush1.msra.mxu0 0.0
      %1391 = vmatprep.subr.mxu0 0.0
      %1392 = vmatpush1.msra.mxu0 0.0
      %1393 = vmatprep.subr.mxu0 0.0
      %1394 = vmatpush1.msra.mxu0 0.0
      %1395 = vmatprep.subr.mxu0 0.0
      %1396 = vmatpush1.msra.mxu0 0.0
      %1397 = vmatprep.subr.mxu0 0.0
      %1398 = vmatpush1.msra.mxu0 0.0
      %1399 = vmatprep.subr.mxu0 0.0
      %1400 = vmatpush1.msra.mxu0 0.0
      %1401 = vmatprep.subr.mxu0 0.0
      %1402 = vmatpush1.msra.mxu0 0.0
      %1403 = vmatprep.subr.mxu0 0.0
      %1404 = vmatpush1.msra.mxu0 0.0
      %1405 = vmatprep.subr.mxu0 0.0
      %1406 = vmatpush1.msra.mxu0 0.0
      %1407 = vmatprep.subr.mxu0 0.0
      %1408 = vmatpush1.msra.mxu0 0.0
      %1409 = vmatprep.subr.mxu0 0.0
      %1410 = vmatpush1.msra.mxu0 0.0
      %1411 = vmatprep.subr.mxu0 0.0
      %1412 = vmatpush1.msra.mxu0 0.0
      %1413 = vmatprep.subr.mxu0 0.0
      %1414 = vmatpush1.msra.mxu0 0.0
      %1415 = vmatprep.subr.mxu0 0.0
      %1416 = vmatpush1.msra.mxu0 0.0
      %1417 = vmatprep.subr.mxu0 0.0
      %1418 = vmatpush1.msra.mxu0 0.0
      %1419 = vmatprep.subr.mxu0 0.0
      %1420 = vmatpush1.msra.mxu0 0.0
      %1421 = vmatprep.subr.mxu0 0.0
      %1422 = vmatpush1.msra.mxu0 0.0
      %1423 = vmatprep.subr.mxu0 0.0
      %1424 = vmatpush1.msra.mxu0 0.0
      %1425 = vmatprep.subr.mxu0 0.0
      %1426 = vmatpush1.msra.mxu0 0.0
      %1427 = vmatprep.subr.mxu0 0.0
      %1428 = vmatpush1.msra.mxu0 0.0
      %1429 = vmatprep.subr.mxu0 0.0
      %1430 = vmatpush1.msra.mxu0 0.0
      %1431 = vmatprep.subr.mxu0 0.0
      %1432 = vmatpush1.msra.mxu0 0.0
      %1433 = vmatprep.subr.mxu0 0.0
      %1434 = vmatpush1.msra.mxu0 0.0
      %1435 = vmatprep.subr.mxu0 0.0
      %1436 = vmatpush1.msra.mxu0 0.0
      %1437 = vmatprep.subr.mxu0 0.0
      %1438 = vmatpush1.msra.mxu0 0.0
      %1439 = vmatprep.subr.mxu0 0.0
      %1440 = vmatpush1.msra.mxu0 0.0
      %1441 = vmatprep.subr.mxu0 0.0
      %1442 = vmatpush1.msra.mxu0 0.0
      %1443 = vmatprep.subr.mxu0 0.0
      %1444 = vmatpush1.msra.mxu0 0.0
      %1445 = vmatprep.subr.mxu0 0.0
      %1446 = vmatpush1.msra.mxu0 0.0
      %1447 = vmatprep.mubr.f32.mxu0 0.0
      %1448 = vmatmul.mubr.f32.gmra.mrb[0].mxu0 %v1375
      %v1449 = vpop.f32.mrb[0].mxu0
      %v1450 = vadd.f32 0.0, %v1449
      %v1451 = vpop.f32.mrb[0].mxu0
      %v1452 = vadd.f32 0.0, %v1451
      %1453 = vdwg.mxu0
      %v1454 = vadd.f32 %v1363, %v1450
      %v1455 = vadd.f32 %v1364, %v1452
      %1456 = vrot.lane.b32.xlu0 %v279, 93
      %v1457 = vpop.permute.xlu0 %1456
      %1458 = vrot.lane.b32.xlu0 %v282, 93
      %v1459 = vpop.permute.xlu0 %1458
      %vm1460 = vcmp.lt.s32.totalorder %v289, 93
      %v1461 = vsel %vm1460, %v1457, %v1459
      %v1462 = vsel %vm1460, %v1459, %v1457
      %s1463 = scalar_lea.vmem %s1, 104
      %v1464 = vld [vmem:[%s1463] sm:$0xff]
      %v1466 = vsel %vm295, %v1464, 0
      %v1469 = vsel %vm299, %v1461, 0
      %v1472 = vsel %vm299, %v1462, 0
      %1474 = vmatprep.subr.mxu0 %v1472
      %1475 = vmatpush1.msra.mxu0 %v1469
      %1476 = vmatprep.subr.mxu0 0.0
      %1477 = vmatpush1.msra.mxu0 0.0
      %1478 = vmatprep.subr.mxu0 0.0
      %1479 = vmatpush1.msra.mxu0 0.0
      %1480 = vmatprep.subr.mxu0 0.0
      %1481 = vmatpush1.msra.mxu0 0.0
      %1482 = vmatprep.subr.mxu0 0.0
      %1483 = vmatpush1.msra.mxu0 0.0
      %1484 = vmatprep.subr.mxu0 0.0
      %1485 = vmatpush1.msra.mxu0 0.0
      %1486 = vmatprep.subr.mxu0 0.0
      %1487 = vmatpush1.msra.mxu0 0.0
      %1488 = vmatprep.subr.mxu0 0.0
      %1489 = vmatpush1.msra.mxu0 0.0
      %1490 = vmatprep.subr.mxu0 0.0
      %1491 = vmatpush1.msra.mxu0 0.0
      %1492 = vmatprep.subr.mxu0 0.0
      %1493 = vmatpush1.msra.mxu0 0.0
      %1494 = vmatprep.subr.mxu0 0.0
      %1495 = vmatpush1.msra.mxu0 0.0
      %1496 = vmatprep.subr.mxu0 0.0
      %1497 = vmatpush1.msra.mxu0 0.0
      %1498 = vmatprep.subr.mxu0 0.0
      %1499 = vmatpush1.msra.mxu0 0.0
      %1500 = vmatprep.subr.mxu0 0.0
      %1501 = vmatpush1.msra.mxu0 0.0
      %1502 = vmatprep.subr.mxu0 0.0
      %1503 = vmatpush1.msra.mxu0 0.0
      %1504 = vmatprep.subr.mxu0 0.0
      %1505 = vmatpush1.msra.mxu0 0.0
      %1506 = vmatprep.subr.mxu0 0.0
      %1507 = vmatpush1.msra.mxu0 0.0
      %1508 = vmatprep.subr.mxu0 0.0
      %1509 = vmatpush1.msra.mxu0 0.0
      %1510 = vmatprep.subr.mxu0 0.0
      %1511 = vmatpush1.msra.mxu0 0.0
      %1512 = vmatprep.subr.mxu0 0.0
      %1513 = vmatpush1.msra.mxu0 0.0
      %1514 = vmatprep.subr.mxu0 0.0
      %1515 = vmatpush1.msra.mxu0 0.0
      %1516 = vmatprep.subr.mxu0 0.0
      %1517 = vmatpush1.msra.mxu0 0.0
      %1518 = vmatprep.subr.mxu0 0.0
      %1519 = vmatpush1.msra.mxu0 0.0
      %1520 = vmatprep.subr.mxu0 0.0
      %1521 = vmatpush1.msra.mxu0 0.0
      %1522 = vmatprep.subr.mxu0 0.0
      %1523 = vmatpush1.msra.mxu0 0.0
      %1524 = vmatprep.subr.mxu0 0.0
      %1525 = vmatpush1.msra.mxu0 0.0
      %1526 = vmatprep.subr.mxu0 0.0
      %1527 = vmatpush1.msra.mxu0 0.0
      %1528 = vmatprep.subr.mxu0 0.0
      %1529 = vmatpush1.msra.mxu0 0.0
      %1530 = vmatprep.subr.mxu0 0.0
      %1531 = vmatpush1.msra.mxu0 0.0
      %1532 = vmatprep.subr.mxu0 0.0
      %1533 = vmatpush1.msra.mxu0 0.0
      %1534 = vmatprep.subr.mxu0 0.0
      %1535 = vmatpush1.msra.mxu0 0.0
      %1536 = vmatprep.subr.mxu0 0.0
      %1537 = vmatpush1.msra.mxu0 0.0
      %1538 = vmatprep.mubr.f32.mxu0 0.0
      %1539 = vmatmul.mubr.f32.gmra.mrb[0].mxu0 %v1466
      %v1540 = vpop.f32.mrb[0].mxu0
      %v1541 = vadd.f32 0.0, %v1540
      %v1542 = vpop.f32.mrb[0].mxu0
      %v1543 = vadd.f32 0.0, %v1542
      %1544 = vdwg.mxu0
      %v1545 = vadd.f32 %v1454, %v1541
      %v1546 = vadd.f32 %v1455, %v1543
      %1547 = vrot.lane.b32.xlu0 %v279, 92
      %v1548 = vpop.permute.xlu0 %1547
      %1549 = vrot.lane.b32.xlu0 %v282, 92
      %v1550 = vpop.permute.xlu0 %1549
      %vm1551 = vcmp.lt.s32.totalorder %v289, 92
      %v1552 = vsel %vm1551, %v1548, %v1550
      %v1553 = vsel %vm1551, %v1550, %v1548
      %s1554 = scalar_lea.vmem %s1, 112
      %v1555 = vld [vmem:[%s1554] sm:$0xff]
      %v1557 = vsel %vm295, %v1555, 0
      %v1560 = vsel %vm299, %v1552, 0
      %v1563 = vsel %vm299, %v1553, 0
      %1565 = vmatprep.subr.mxu0 %v1563
      %1566 = vmatpush1.msra.mxu0 %v1560
      %1567 = vmatprep.subr.mxu0 0.0
      %1568 = vmatpush1.msra.mxu0 0.0
      %1569 = vmatprep.subr.mxu0 0.0
      %1570 = vmatpush1.msra.mxu0 0.0
      %1571 = vmatprep.subr.mxu0 0.0
      %1572 = vmatpush1.msra.mxu0 0.0
      %1573 = vmatprep.subr.mxu0 0.0
      %1574 = vmatpush1.msra.mxu0 0.0
      %1575 = vmatprep.subr.mxu0 0.0
      %1576 = vmatpush1.msra.mxu0 0.0
      %1577 = vmatprep.subr.mxu0 0.0
      %1578 = vmatpush1.msra.mxu0 0.0
      %1579 = vmatprep.subr.mxu0 0.0
      %1580 = vmatpush1.msra.mxu0 0.0
      %1581 = vmatprep.subr.mxu0 0.0
      %1582 = vmatpush1.msra.mxu0 0.0
      %1583 = vmatprep.subr.mxu0 0.0
      %1584 = vmatpush1.msra.mxu0 0.0
      %1585 = vmatprep.subr.mxu0 0.0
      %1586 = vmatpush1.msra.mxu0 0.0
      %1587 = vmatprep.subr.mxu0 0.0
      %1588 = vmatpush1.msra.mxu0 0.0
      %1589 = vmatprep.subr.mxu0 0.0
      %1590 = vmatpush1.msra.mxu0 0.0
      %1591 = vmatprep.subr.mxu0 0.0
      %1592 = vmatpush1.msra.mxu0 0.0
      %1593 = vmatprep.subr.mxu0 0.0
      %1594 = vmatpush1.msra.mxu0 0.0
      %1595 = vmatprep.subr.mxu0 0.0
      %1596 = vmatpush1.msra.mxu0 0.0
      %1597 = vmatprep.subr.mxu0 0.0
      %1598 = vmatpush1.msra.mxu0 0.0
      %1599 = vmatprep.subr.mxu0 0.0
      %1600 = vmatpush1.msra.mxu0 0.0
      %1601 = vmatprep.subr.mxu0 0.0
      %1602 = vmatpush1.msra.mxu0 0.0
      %1603 = vmatprep.subr.mxu0 0.0
      %1604 = vmatpush1.msra.mxu0 0.0
      %1605 = vmatprep.subr.mxu0 0.0
      %1606 = vmatpush1.msra.mxu0 0.0
      %1607 = vmatprep.subr.mxu0 0.0
      %1608 = vmatpush1.msra.mxu0 0.0
      %1609 = vmatprep.subr.mxu0 0.0
      %1610 = vmatpush1.msra.mxu0 0.0
      %1611 = vmatprep.subr.mxu0 0.0
      %1612 = vmatpush1.msra.mxu0 0.0
      %1613 = vmatprep.subr.mxu0 0.0
      %1614 = vmatpush1.msra.mxu0 0.0
      %1615 = vmatprep.subr.mxu0 0.0
      %1616 = vmatpush1.msra.mxu0 0.0
      %1617 = vmatprep.subr.mxu0 0.0
      %1618 = vmatpush1.msra.mxu0 0.0
      %1619 = vmatprep.subr.mxu0 0.0
      %1620 = vmatpush1.msra.mxu0 0.0
      %1621 = vmatprep.subr.mxu0 0.0
      %1622 = vmatpush1.msra.mxu0 0.0
      %1623 = vmatprep.subr.mxu0 0.0
      %1624 = vmatpush1.msra.mxu0 0.0
      %1625 = vmatprep.subr.mxu0 0.0
      %1626 = vmatpush1.msra.mxu0 0.0
      %1627 = vmatprep.subr.mxu0 0.0
      %1628 = vmatpush1.msra.mxu0 0.0
      %1629 = vmatprep.mubr.f32.mxu0 0.0
      %1630 = vmatmul.mubr.f32.gmra.mrb[0].mxu0 %v1557
      %v1631 = vpop.f32.mrb[0].mxu0
      %v1632 = vadd.f32 0.0, %v1631
      %v1633 = vpop.f32.mrb[0].mxu0
      %v1634 = vadd.f32 0.0, %v1633
      %1635 = vdwg.mxu0
      %v1636 = vadd.f32 %v1545, %v1632
      %v1637 = vadd.f32 %v1546, %v1634
      %1638 = vrot.lane.b32.xlu0 %v279, 80
      %v1639 = vpop.permute.xlu0 %1638
      %1640 = vrot.lane.b32.xlu0 %v282, 80
      %v1641 = vpop.permute.xlu0 %1640
      %vm1642 = vcmp.lt.s32.totalorder %v289, 80
      %v1643 = vsel %vm1642, %v1639, %v1641
      %v1644 = vsel %vm1642, %v1641, %v1639
      %s1645 = scalar_lea.vmem %s1, 120
      %v1646 = vld [vmem:[%s1645] sm:$0xff]
      %v1648 = vsel %vm295, %v1646, 0
      %v1651 = vsel %vm299, %v1643, 0
      %v1654 = vsel %vm299, %v1644, 0
      %1656 = vmatprep.subr.mxu0 %v1654
      %1657 = vmatpush1.msra.mxu0 %v1651
      %1658 = vmatprep.subr.mxu0 0.0
      %1659 = vmatpush1.msra.mxu0 0.0
      %1660 = vmatprep.subr.mxu0 0.0
      %1661 = vmatpush1.msra.mxu0 0.0
      %1662 = vmatprep.subr.mxu0 0.0
      %1663 = vmatpush1.msra.mxu0 0.0
      %1664 = vmatprep.subr.mxu0 0.0
      %1665 = vmatpush1.msra.mxu0 0.0
      %1666 = vmatprep.subr.mxu0 0.0
      %1667 = vmatpush1.msra.mxu0 0.0
      %1668 = vmatprep.subr.mxu0 0.0
      %1669 = vmatpush1.msra.mxu0 0.0
      %1670 = vmatprep.subr.mxu0 0.0
      %1671 = vmatpush1.msra.mxu0 0.0
      %1672 = vmatprep.subr.mxu0 0.0
      %1673 = vmatpush1.msra.mxu0 0.0
      %1674 = vmatprep.subr.mxu0 0.0
      %1675 = vmatpush1.msra.mxu0 0.0
      %1676 = vmatprep.subr.mxu0 0.0
      %1677 = vmatpush1.msra.mxu0 0.0
      %1678 = vmatprep.subr.mxu0 0.0
      %1679 = vmatpush1.msra.mxu0 0.0
      %1680 = vmatprep.subr.mxu0 0.0
      %1681 = vmatpush1.msra.mxu0 0.0
      %1682 = vmatprep.subr.mxu0 0.0
      %1683 = vmatpush1.msra.mxu0 0.0
      %1684 = vmatprep.subr.mxu0 0.0
      %1685 = vmatpush1.msra.mxu0 0.0
      %1686 = vmatprep.subr.mxu0 0.0
      %1687 = vmatpush1.msra.mxu0 0.0
      %1688 = vmatprep.subr.mxu0 0.0
      %1689 = vmatpush1.msra.mxu0 0.0
      %1690 = vmatprep.subr.mxu0 0.0
      %1691 = vmatpush1.msra.mxu0 0.0
      %1692 = vmatprep.subr.mxu0 0.0
      %1693 = vmatpush1.msra.mxu0 0.0
      %1694 = vmatprep.subr.mxu0 0.0
      %1695 = vmatpush1.msra.mxu0 0.0
      %1696 = vmatprep.subr.mxu0 0.0
      %1697 = vmatpush1.msra.mxu0 0.0
      %1698 = vmatprep.subr.mxu0 0.0
      %1699 = vmatpush1.msra.mxu0 0.0
      %1700 = vmatprep.subr.mxu0 0.0
      %1701 = vmatpush1.msra.mxu0 0.0
      %1702 = vmatprep.subr.mxu0 0.0
      %1703 = vmatpush1.msra.mxu0 0.0
      %1704 = vmatprep.subr.mxu0 0.0
      %1705 = vmatpush1.msra.mxu0 0.0
      %1706 = vmatprep.subr.mxu0 0.0
      %1707 = vmatpush1.msra.mxu0 0.0
      %1708 = vmatprep.subr.mxu0 0.0
      %1709 = vmatpush1.msra.mxu0 0.0
      %1710 = vmatprep.subr.mxu0 0.0
      %1711 = vmatpush1.msra.mxu0 0.0
      %1712 = vmatprep.subr.mxu0 0.0
      %1713 = vmatpush1.msra.mxu0 0.0
      %1714 = vmatprep.subr.mxu0 0.0
      %1715 = vmatpush1.msra.mxu0 0.0
      %1716 = vmatprep.subr.mxu0 0.0
      %1717 = vmatpush1.msra.mxu0 0.0
      %1718 = vmatprep.subr.mxu0 0.0
      %1719 = vmatpush1.msra.mxu0 0.0
      %1720 = vmatprep.mubr.f32.mxu0 0.0
      %1721 = vmatmul.mubr.f32.gmra.mrb[0].mxu0 %v1648
      %v1722 = vpop.f32.mrb[0].mxu0
      %v1723 = vadd.f32 0.0, %v1722
      %v1724 = vpop.f32.mrb[0].mxu0
      %v1725 = vadd.f32 0.0, %v1724
      %1726 = vdwg.mxu0
      %v1727 = vadd.f32 %v1636, %v1723
      %v1728 = vadd.f32 %v1637, %v1725
      %1729 = vrot.lane.b32.xlu0 %v279, 79
      %v1730 = vpop.permute.xlu0 %1729
      %1731 = vrot.lane.b32.xlu0 %v282, 79
      %v1732 = vpop.permute.xlu0 %1731
      %vm1733 = vcmp.lt.s32.totalorder %v289, 79
      %v1734 = vsel %vm1733, %v1730, %v1732
      %v1735 = vsel %vm1733, %v1732, %v1730
      %s1736 = scalar_lea.vmem %s1, 128
      %v1737 = vld [vmem:[%s1736] sm:$0xff]
      %v1739 = vsel %vm295, %v1737, 0
      %v1742 = vsel %vm299, %v1734, 0
      %v1745 = vsel %vm299, %v1735, 0
      %1747 = vmatprep.subr.mxu0 %v1745
      %1748 = vmatpush1.msra.mxu0 %v1742
      %1749 = vmatprep.subr.mxu0 0.0
      %1750 = vmatpush1.msra.mxu0 0.0
      %1751 = vmatprep.subr.mxu0 0.0
      %1752 = vmatpush1.msra.mxu0 0.0
      %1753 = vmatprep.subr.mxu0 0.0
      %1754 = vmatpush1.msra.mxu0 0.0
      %1755 = vmatprep.subr.mxu0 0.0
      %1756 = vmatpush1.msra.mxu0 0.0
      %1757 = vmatprep.subr.mxu0 0.0
      %1758 = vmatpush1.msra.mxu0 0.0
      %1759 = vmatprep.subr.mxu0 0.0
      %1760 = vmatpush1.msra.mxu0 0.0
      %1761 = vmatprep.subr.mxu0 0.0
      %1762 = vmatpush1.msra.mxu0 0.0
      %1763 = vmatprep.subr.mxu0 0.0
      %1764 = vmatpush1.msra.mxu0 0.0
      %1765 = vmatprep.subr.mxu0 0.0
      %1766 = vmatpush1.msra.mxu0 0.0
      %1767 = vmatprep.subr.mxu0 0.0
      %1768 = vmatpush1.msra.mxu0 0.0
      %1769 = vmatprep.subr.mxu0 0.0
      %1770 = vmatpush1.msra.mxu0 0.0
      %1771 = vmatprep.subr.mxu0 0.0
      %1772 = vmatpush1.msra.mxu0 0.0
      %1773 = vmatprep.subr.mxu0 0.0
      %1774 = vmatpush1.msra.mxu0 0.0
      %1775 = vmatprep.subr.mxu0 0.0
      %1776 = vmatpush1.msra.mxu0 0.0
      %1777 = vmatprep.subr.mxu0 0.0
      %1778 = vmatpush1.msra.mxu0 0.0
      %1779 = vmatprep.subr.mxu0 0.0
      %1780 = vmatpush1.msra.mxu0 0.0
      %1781 = vmatprep.subr.mxu0 0.0
      %1782 = vmatpush1.msra.mxu0 0.0
      %1783 = vmatprep.subr.mxu0 0.0
      %1784 = vmatpush1.msra.mxu0 0.0
      %1785 = vmatprep.subr.mxu0 0.0
      %1786 = vmatpush1.msra.mxu0 0.0
      %1787 = vmatprep.subr.mxu0 0.0
      %1788 = vmatpush1.msra.mxu0 0.0
      %1789 = vmatprep.subr.mxu0 0.0
      %1790 = vmatpush1.msra.mxu0 0.0
      %1791 = vmatprep.subr.mxu0 0.0
      %1792 = vmatpush1.msra.mxu0 0.0
      %1793 = vmatprep.subr.mxu0 0.0
      %1794 = vmatpush1.msra.mxu0 0.0
      %1795 = vmatprep.subr.mxu0 0.0
      %1796 = vmatpush1.msra.mxu0 0.0
      %1797 = vmatprep.subr.mxu0 0.0
      %1798 = vmatpush1.msra.mxu0 0.0
      %1799 = vmatprep.subr.mxu0 0.0
      %1800 = vmatpush1.msra.mxu0 0.0
      %1801 = vmatprep.subr.mxu0 0.0
      %1802 = vmatpush1.msra.mxu0 0.0
      %1803 = vmatprep.subr.mxu0 0.0
      %1804 = vmatpush1.msra.mxu0 0.0
      %1805 = vmatprep.subr.mxu0 0.0
      %1806 = vmatpush1.msra.mxu0 0.0
      %1807 = vmatprep.subr.mxu0 0.0
      %1808 = vmatpush1.msra.mxu0 0.0
      %1809 = vmatprep.subr.mxu0 0.0
      %1810 = vmatpush1.msra.mxu0 0.0
      %1811 = vmatprep.mubr.f32.mxu0 0.0
      %1812 = vmatmul.mubr.f32.gmra.mrb[0].mxu0 %v1739
      %v1813 = vpop.f32.mrb[0].mxu0
      %v1814 = vadd.f32 0.0, %v1813
      %v1815 = vpop.f32.mrb[0].mxu0
      %v1816 = vadd.f32 0.0, %v1815
      %1817 = vdwg.mxu0
      %v1818 = vadd.f32 %v1727, %v1814
      %v1819 = vadd.f32 %v1728, %v1816
      %1820 = vrot.lane.b32.xlu0 %v279, 78
      %v1821 = vpop.permute.xlu0 %1820
      %1822 = vrot.lane.b32.xlu0 %v282, 78
      %v1823 = vpop.permute.xlu0 %1822
      %vm1824 = vcmp.lt.s32.totalorder %v289, 78
      %v1825 = vsel %vm1824, %v1821, %v1823
      %v1826 = vsel %vm1824, %v1823, %v1821
      %s1827 = scalar_lea.vmem %s1, 136
      %v1828 = vld [vmem:[%s1827] sm:$0xff]
      %v1830 = vsel %vm295, %v1828, 0
      %v1833 = vsel %vm299, %v1825, 0
      %v1836 = vsel %vm299, %v1826, 0
      %1838 = vmatprep.subr.mxu0 %v1836
      %1839 = vmatpush1.msra.mxu0 %v1833
      %1840 = vmatprep.subr.mxu0 0.0
      %1841 = vmatpush1.msra.mxu0 0.0
      %1842 = vmatprep.subr.mxu0 0.0
      %1843 = vmatpush1.msra.mxu0 0.0
      %1844 = vmatprep.subr.mxu0 0.0
      %1845 = vmatpush1.msra.mxu0 0.0
      %1846 = vmatprep.subr.mxu0 0.0
      %1847 = vmatpush1.msra.mxu0 0.0
      %1848 = vmatprep.subr.mxu0 0.0
      %1849 = vmatpush1.msra.mxu0 0.0
      %1850 = vmatprep.subr.mxu0 0.0
      %1851 = vmatpush1.msra.mxu0 0.0
      %1852 = vmatprep.subr.mxu0 0.0
      %1853 = vmatpush1.msra.mxu0 0.0
      %1854 = vmatprep.subr.mxu0 0.0
      %1855 = vmatpush1.msra.mxu0 0.0
      %1856 = vmatprep.subr.mxu0 0.0
      %1857 = vmatpush1.msra.mxu0 0.0
      %1858 = vmatprep.subr.mxu0 0.0
      %1859 = vmatpush1.msra.mxu0 0.0
      %1860 = vmatprep.subr.mxu0 0.0
      %1861 = vmatpush1.msra.mxu0 0.0
      %1862 = vmatprep.subr.mxu0 0.0
      %1863 = vmatpush1.msra.mxu0 0.0
      %1864 = vmatprep.subr.mxu0 0.0
      %1865 = vmatpush1.msra.mxu0 0.0
      %1866 = vmatprep.subr.mxu0 0.0
      %1867 = vmatpush1.msra.mxu0 0.0
      %1868 = vmatprep.subr.mxu0 0.0
      %1869 = vmatpush1.msra.mxu0 0.0
      %1870 = vmatprep.subr.mxu0 0.0
      %1871 = vmatpush1.msra.mxu0 0.0
      %1872 = vmatprep.subr.mxu0 0.0
      %1873 = vmatpush1.msra.mxu0 0.0
      %1874 = vmatprep.subr.mxu0 0.0
      %1875 = vmatpush1.msra.mxu0 0.0
      %1876 = vmatprep.subr.mxu0 0.0
      %1877 = vmatpush1.msra.mxu0 0.0
      %1878 = vmatprep.subr.mxu0 0.0
      %1879 = vmatpush1.msra.mxu0 0.0
      %1880 = vmatprep.subr.mxu0 0.0
      %1881 = vmatpush1.msra.mxu0 0.0
      %1882 = vmatprep.subr.mxu0 0.0
      %1883 = vmatpush1.msra.mxu0 0.0
      %1884 = vmatprep.subr.mxu0 0.0
      %1885 = vmatpush1.msra.mxu0 0.0
      %1886 = vmatprep.subr.mxu0 0.0
      %1887 = vmatpush1.msra.mxu0 0.0
      %1888 = vmatprep.subr.mxu0 0.0
      %1889 = vmatpush1.msra.mxu0 0.0
      %1890 = vmatprep.subr.mxu0 0.0
      %1891 = vmatpush1.msra.mxu0 0.0
      %1892 = vmatprep.subr.mxu0 0.0
      %1893 = vmatpush1.msra.mxu0 0.0
      %1894 = vmatprep.subr.mxu0 0.0
      %1895 = vmatpush1.msra.mxu0 0.0
      %1896 = vmatprep.subr.mxu0 0.0
      %1897 = vmatpush1.msra.mxu0 0.0
      %1898 = vmatprep.subr.mxu0 0.0
      %1899 = vmatpush1.msra.mxu0 0.0
      %1900 = vmatprep.subr.mxu0 0.0
      %1901 = vmatpush1.msra.mxu0 0.0
      %1902 = vmatprep.mubr.f32.mxu0 0.0
      %1903 = vmatmul.mubr.f32.gmra.mrb[0].mxu0 %v1830
      %v1904 = vpop.f32.mrb[0].mxu0
      %v1905 = vadd.f32 0.0, %v1904
      %v1906 = vpop.f32.mrb[0].mxu0
      %v1907 = vadd.f32 0.0, %v1906
      %1908 = vdwg.mxu0
      %v1909 = vadd.f32 %v1818, %v1905
      %v1910 = vadd.f32 %v1819, %v1907
      %1911 = vrot.lane.b32.xlu0 %v279, 77
      %v1912 = vpop.permute.xlu0 %1911
      %1913 = vrot.lane.b32.xlu0 %v282, 77
      %v1914 = vpop.permute.xlu0 %1913
      %vm1915 = vcmp.lt.s32.totalorder %v289, 77
      %v1916 = vsel %vm1915, %v1912, %v1914
      %v1917 = vsel %vm1915, %v1914, %v1912
      %s1918 = scalar_lea.vmem %s1, 144
      %v1919 = vld [vmem:[%s1918] sm:$0xff]
      %v1921 = vsel %vm295, %v1919, 0
      %v1924 = vsel %vm299, %v1916, 0
      %v1927 = vsel %vm299, %v1917, 0
      %1929 = vmatprep.subr.mxu0 %v1927
      %1930 = vmatpush1.msra.mxu0 %v1924
      %1931 = vmatprep.subr.mxu0 0.0
      %1932 = vmatpush1.msra.mxu0 0.0
      %1933 = vmatprep.subr.mxu0 0.0
      %1934 = vmatpush1.msra.mxu0 0.0
      %1935 = vmatprep.subr.mxu0 0.0
      %1936 = vmatpush1.msra.mxu0 0.0
      %1937 = vmatprep.subr.mxu0 0.0
      %1938 = vmatpush1.msra.mxu0 0.0
      %1939 = vmatprep.subr.mxu0 0.0
      %1940 = vmatpush1.msra.mxu0 0.0
      %1941 = vmatprep.subr.mxu0 0.0
      %1942 = vmatpush1.msra.mxu0 0.0
      %1943 = vmatprep.subr.mxu0 0.0
      %1944 = vmatpush1.msra.mxu0 0.0
      %1945 = vmatprep.subr.mxu0 0.0
      %1946 = vmatpush1.msra.mxu0 0.0
      %1947 = vmatprep.subr.mxu0 0.0
      %1948 = vmatpush1.msra.mxu0 0.0
      %1949 = vmatprep.subr.mxu0 0.0
      %1950 = vmatpush1.msra.mxu0 0.0
      %1951 = vmatprep.subr.mxu0 0.0
      %1952 = vmatpush1.msra.mxu0 0.0
      %1953 = vmatprep.subr.mxu0 0.0
      %1954 = vmatpush1.msra.mxu0 0.0
      %1955 = vmatprep.subr.mxu0 0.0
      %1956 = vmatpush1.msra.mxu0 0.0
      %1957 = vmatprep.subr.mxu0 0.0
      %1958 = vmatpush1.msra.mxu0 0.0
      %1959 = vmatprep.subr.mxu0 0.0
      %1960 = vmatpush1.msra.mxu0 0.0
      %1961 = vmatprep.subr.mxu0 0.0
      %1962 = vmatpush1.msra.mxu0 0.0
      %1963 = vmatprep.subr.mxu0 0.0
      %1964 = vmatpush1.msra.mxu0 0.0
      %1965 = vmatprep.subr.mxu0 0.0
      %1966 = vmatpush1.msra.mxu0 0.0
      %1967 = vmatprep.subr.mxu0 0.0
      %1968 = vmatpush1.msra.mxu0 0.0
      %1969 = vmatprep.subr.mxu0 0.0
      %1970 = vmatpush1.msra.mxu0 0.0
      %1971 = vmatprep.subr.mxu0 0.0
      %1972 = vmatpush1.msra.mxu0 0.0
      %1973 = vmatprep.subr.mxu0 0.0
      %1974 = vmatpush1.msra.mxu0 0.0
      %1975 = vmatprep.subr.mxu0 0.0
      %1976 = vmatpush1.msra.mxu0 0.0
      %1977 = vmatprep.subr.mxu0 0.0
      %1978 = vmatpush1.msra.mxu0 0.0
      %1979 = vmatprep.subr.mxu0 0.0
      %1980 = vmatpush1.msra.mxu0 0.0
      %1981 = vmatprep.subr.mxu0 0.0
      %1982 = vmatpush1.msra.mxu0 0.0
      %1983 = vmatprep.subr.mxu0 0.0
      %1984 = vmatpush1.msra.mxu0 0.0
      %1985 = vmatprep.subr.mxu0 0.0
      %1986 = vmatpush1.msra.mxu0 0.0
      %1987 = vmatprep.subr.mxu0 0.0
      %1988 = vmatpush1.msra.mxu0 0.0
      %1989 = vmatprep.subr.mxu0 0.0
      %1990 = vmatpush1.msra.mxu0 0.0
      %1991 = vmatprep.subr.mxu0 0.0
      %1992 = vmatpush1.msra.mxu0 0.0
      %1993 = vmatprep.mubr.f32.mxu0 0.0
      %1994 = vmatmul.mubr.f32.gmra.mrb[0].mxu0 %v1921
      %v1995 = vpop.f32.mrb[0].mxu0
      %v1996 = vadd.f32 0.0, %v1995
      %v1997 = vpop.f32.mrb[0].mxu0
      %v1998 = vadd.f32 0.0, %v1997
      %1999 = vdwg.mxu0
      %v2000 = vadd.f32 %v1909, %v1996
      %v2001 = vadd.f32 %v1910, %v1998
      %2002 = vrot.lane.b32.xlu0 %v279, 76
      %v2003 = vpop.permute.xlu0 %2002
      %2004 = vrot.lane.b32.xlu0 %v282, 76
      %v2005 = vpop.permute.xlu0 %2004
      %vm2006 = vcmp.lt.s32.totalorder %v289, 76
      %v2007 = vsel %vm2006, %v2003, %v2005
      %v2008 = vsel %vm2006, %v2005, %v2003
      %s2009 = scalar_lea.vmem %s1, 152
      %v2010 = vld [vmem:[%s2009] sm:$0xff]
      %v2012 = vsel %vm295, %v2010, 0
      %v2015 = vsel %vm299, %v2007, 0
      %v2018 = vsel %vm299, %v2008, 0
      %2020 = vmatprep.subr.mxu0 %v2018
      %2021 = vmatpush1.msra.mxu0 %v2015
      %2022 = vmatprep.subr.mxu0 0.0
      %2023 = vmatpush1.msra.mxu0 0.0
      %2024 = vmatprep.subr.mxu0 0.0
      %2025 = vmatpush1.msra.mxu0 0.0
      %2026 = vmatprep.subr.mxu0 0.0
      %2027 = vmatpush1.msra.mxu0 0.0
      %2028 = vmatprep.subr.mxu0 0.0
      %2029 = vmatpush1.msra.mxu0 0.0
      %2030 = vmatprep.subr.mxu0 0.0
      %2031 = vmatpush1.msra.mxu0 0.0
      %2032 = vmatprep.subr.mxu0 0.0
      %2033 = vmatpush1.msra.mxu0 0.0
      %2034 = vmatprep.subr.mxu0 0.0
      %2035 = vmatpush1.msra.mxu0 0.0
      %2036 = vmatprep.subr.mxu0 0.0
      %2037 = vmatpush1.msra.mxu0 0.0
      %2038 = vmatprep.subr.mxu0 0.0
      %2039 = vmatpush1.msra.mxu0 0.0
      %2040 = vmatprep.subr.mxu0 0.0
      %2041 = vmatpush1.msra.mxu0 0.0
      %2042 = vmatprep.subr.mxu0 0.0
      %2043 = vmatpush1.msra.mxu0 0.0
      %2044 = vmatprep.subr.mxu0 0.0
      %2045 = vmatpush1.msra.mxu0 0.0
      %2046 = vmatprep.subr.mxu0 0.0
      %2047 = vmatpush1.msra.mxu0 0.0
      %2048 = vmatprep.subr.mxu0 0.0
      %2049 = vmatpush1.msra.mxu0 0.0
      %2050 = vmatprep.subr.mxu0 0.0
      %2051 = vmatpush1.msra.mxu0 0.0
      %2052 = vmatprep.subr.mxu0 0.0
      %2053 = vmatpush1.msra.mxu0 0.0
      %2054 = vmatprep.subr.mxu0 0.0
      %2055 = vmatpush1.msra.mxu0 0.0
      %2056 = vmatprep.subr.mxu0 0.0
      %2057 = vmatpush1.msra.mxu0 0.0
      %2058 = vmatprep.subr.mxu0 0.0
      %2059 = vmatpush1.msra.mxu0 0.0
      %2060 = vmatprep.subr.mxu0 0.0
      %2061 = vmatpush1.msra.mxu0 0.0
      %2062 = vmatprep.subr.mxu0 0.0
      %2063 = vmatpush1.msra.mxu0 0.0
      %2064 = vmatprep.subr.mxu0 0.0
      %2065 = vmatpush1.msra.mxu0 0.0
      %2066 = vmatprep.subr.mxu0 0.0
      %2067 = vmatpush1.msra.mxu0 0.0
      %2068 = vmatprep.subr.mxu0 0.0
      %2069 = vmatpush1.msra.mxu0 0.0
      %2070 = vmatprep.subr.mxu0 0.0
      %2071 = vmatpush1.msra.mxu0 0.0
      %2072 = vmatprep.subr.mxu0 0.0
      %2073 = vmatpush1.msra.mxu0 0.0
      %2074 = vmatprep.subr.mxu0 0.0
      %2075 = vmatpush1.msra.mxu0 0.0
      %2076 = vmatprep.subr.mxu0 0.0
      %2077 = vmatpush1.msra.mxu0 0.0
      %2078 = vmatprep.subr.mxu0 0.0
      %2079 = vmatpush1.msra.mxu0 0.0
      %2080 = vmatprep.subr.mxu0 0.0
      %2081 = vmatpush1.msra.mxu0 0.0
      %2082 = vmatprep.subr.mxu0 0.0
      %2083 = vmatpush1.msra.mxu0 0.0
      %2084 = vmatprep.mubr.f32.mxu0 0.0
      %2085 = vmatmul.mubr.f32.gmra.mrb[0].mxu0 %v2012
      %v2086 = vpop.f32.mrb[0].mxu0
      %v2087 = vadd.f32 0.0, %v2086
      %v2088 = vpop.f32.mrb[0].mxu0
      %v2089 = vadd.f32 0.0, %v2088
      %2090 = vdwg.mxu0
      %v2091 = vadd.f32 %v2000, %v2087
      %v2092 = vadd.f32 %v2001, %v2089
      %2093 = vrot.lane.b32.xlu0 %v279, 64
      %v2094 = vpop.permute.xlu0 %2093
      %2095 = vrot.lane.b32.xlu0 %v282, 64
      %v2096 = vpop.permute.xlu0 %2095
      %vm2097 = vcmp.lt.s32.totalorder %v289, 64
      %v2098 = vsel %vm2097, %v2094, %v2096
      %v2099 = vsel %vm2097, %v2096, %v2094
      %s2100 = scalar_lea.vmem %s1, 160
      %v2101 = vld [vmem:[%s2100] sm:$0xff]
      %v2103 = vsel %vm295, %v2101, 0
      %v2106 = vsel %vm299, %v2098, 0
      %v2109 = vsel %vm299, %v2099, 0
      %2111 = vmatprep.subr.mxu0 %v2109
      %2112 = vmatpush1.msra.mxu0 %v2106
      %2113 = vmatprep.subr.mxu0 0.0
      %2114 = vmatpush1.msra.mxu0 0.0
      %2115 = vmatprep.subr.mxu0 0.0
      %2116 = vmatpush1.msra.mxu0 0.0
      %2117 = vmatprep.subr.mxu0 0.0
      %2118 = vmatpush1.msra.mxu0 0.0
      %2119 = vmatprep.subr.mxu0 0.0
      %2120 = vmatpush1.msra.mxu0 0.0
      %2121 = vmatprep.subr.mxu0 0.0
      %2122 = vmatpush1.msra.mxu0 0.0
      %2123 = vmatprep.subr.mxu0 0.0
      %2124 = vmatpush1.msra.mxu0 0.0
      %2125 = vmatprep.subr.mxu0 0.0
      %2126 = vmatpush1.msra.mxu0 0.0
      %2127 = vmatprep.subr.mxu0 0.0
      %2128 = vmatpush1.msra.mxu0 0.0
      %2129 = vmatprep.subr.mxu0 0.0
      %2130 = vmatpush1.msra.mxu0 0.0
      %2131 = vmatprep.subr.mxu0 0.0
      %2132 = vmatpush1.msra.mxu0 0.0
      %2133 = vmatprep.subr.mxu0 0.0
      %2134 = vmatpush1.msra.mxu0 0.0
      %2135 = vmatprep.subr.mxu0 0.0
      %2136 = vmatpush1.msra.mxu0 0.0
      %2137 = vmatprep.subr.mxu0 0.0
      %2138 = vmatpush1.msra.mxu0 0.0
      %2139 = vmatprep.subr.mxu0 0.0
      %2140 = vmatpush1.msra.mxu0 0.0
      %2141 = vmatprep.subr.mxu0 0.0
      %2142 = vmatpush1.msra.mxu0 0.0
      %2143 = vmatprep.subr.mxu0 0.0
      %2144 = vmatpush1.msra.mxu0 0.0
      %2145 = vmatprep.subr.mxu0 0.0
      %2146 = vmatpush1.msra.mxu0 0.0
      %2147 = vmatprep.subr.mxu0 0.0
      %2148 = vmatpush1.msra.mxu0 0.0
      %2149 = vmatprep.subr.mxu0 0.0
      %2150 = vmatpush1.msra.mxu0 0.0
      %2151 = vmatprep.subr.mxu0 0.0
      %2152 = vmatpush1.msra.mxu0 0.0
      %2153 = vmatprep.subr.mxu0 0.0
      %2154 = vmatpush1.msra.mxu0 0.0
      %2155 = vmatprep.subr.mxu0 0.0
      %2156 = vmatpush1.msra.mxu0 0.0
      %2157 = vmatprep.subr.mxu0 0.0
      %2158 = vmatpush1.msra.mxu0 0.0
      %2159 = vmatprep.subr.mxu0 0.0
      %2160 = vmatpush1.msra.mxu0 0.0
      %2161 = vmatprep.subr.mxu0 0.0
      %2162 = vmatpush1.msra.mxu0 0.0
      %2163 = vmatprep.subr.mxu0 0.0
      %2164 = vmatpush1.msra.mxu0 0.0
      %2165 = vmatprep.subr.mxu0 0.0
      %2166 = vmatpush1.msra.mxu0 0.0
      %2167 = vmatprep.subr.mxu0 0.0
      %2168 = vmatpush1.msra.mxu0 0.0
      %2169 = vmatprep.subr.mxu0 0.0
      %2170 = vmatpush1.msra.mxu0 0.0
      %2171 = vmatprep.subr.mxu0 0.0
      %2172 = vmatpush1.msra.mxu0 0.0
      %2173 = vmatprep.subr.mxu0 0.0
      %2174 = vmatpush1.msra.mxu0 0.0
      %2175 = vmatprep.mubr.f32.mxu0 0.0
      %2176 = vmatmul.mubr.f32.gmra.mrb[0].mxu0 %v2103
      %v2177 = vpop.f32.mrb[0].mxu0
      %v2178 = vadd.f32 0.0, %v2177
      %v2179 = vpop.f32.mrb[0].mxu0
      %v2180 = vadd.f32 0.0, %v2179
      %2181 = vdwg.mxu0
      %v2182 = vadd.f32 %v2091, %v2178
      %v2183 = vadd.f32 %v2092, %v2180
      %2184 = vrot.lane.b32.xlu0 %v279, 63
      %v2185 = vpop.permute.xlu0 %2184
      %2186 = vrot.lane.b32.xlu0 %v282, 63
      %v2187 = vpop.permute.xlu0 %2186
      %vm2188 = vcmp.lt.s32.totalorder %v289, 63
      %v2189 = vsel %vm2188, %v2185, %v2187
      %v2190 = vsel %vm2188, %v2187, %v2185
      %s2191 = scalar_lea.vmem %s1, 168
      %v2192 = vld [vmem:[%s2191] sm:$0xff]
      %v2194 = vsel %vm295, %v2192, 0
      %v2197 = vsel %vm299, %v2189, 0
      %v2200 = vsel %vm299, %v2190, 0
      %2202 = vmatprep.subr.mxu0 %v2200
      %2203 = vmatpush1.msra.mxu0 %v2197
      %2204 = vmatprep.subr.mxu0 0.0
      %2205 = vmatpush1.msra.mxu0 0.0
      %2206 = vmatprep.subr.mxu0 0.0
      %2207 = vmatpush1.msra.mxu0 0.0
      %2208 = vmatprep.subr.mxu0 0.0
      %2209 = vmatpush1.msra.mxu0 0.0
      %2210 = vmatprep.subr.mxu0 0.0
      %2211 = vmatpush1.msra.mxu0 0.0
      %2212 = vmatprep.subr.mxu0 0.0
      %2213 = vmatpush1.msra.mxu0 0.0
      %2214 = vmatprep.subr.mxu0 0.0
      %2215 = vmatpush1.msra.mxu0 0.0
      %2216 = vmatprep.subr.mxu0 0.0
      %2217 = vmatpush1.msra.mxu0 0.0
      %2218 = vmatprep.subr.mxu0 0.0
      %2219 = vmatpush1.msra.mxu0 0.0
      %2220 = vmatprep.subr.mxu0 0.0
      %2221 = vmatpush1.msra.mxu0 0.0
      %2222 = vmatprep.subr.mxu0 0.0
      %2223 = vmatpush1.msra.mxu0 0.0
      %2224 = vmatprep.subr.mxu0 0.0
      %2225 = vmatpush1.msra.mxu0 0.0
      %2226 = vmatprep.subr.mxu0 0.0
      %2227 = vmatpush1.msra.mxu0 0.0
      %2228 = vmatprep.subr.mxu0 0.0
      %2229 = vmatpush1.msra.mxu0 0.0
      %2230 = vmatprep.subr.mxu0 0.0
      %2231 = vmatpush1.msra.mxu0 0.0
      %2232 = vmatprep.subr.mxu0 0.0
      %2233 = vmatpush1.msra.mxu0 0.0
      %2234 = vmatprep.subr.mxu0 0.0
      %2235 = vmatpush1.msra.mxu0 0.0
      %2236 = vmatprep.subr.mxu0 0.0
      %2237 = vmatpush1.msra.mxu0 0.0
      %2238 = vmatprep.subr.mxu0 0.0
      %2239 = vmatpush1.msra.mxu0 0.0
      %2240 = vmatprep.subr.mxu0 0.0
      %2241 = vmatpush1.msra.mxu0 0.0
      %2242 = vmatprep.subr.mxu0 0.0
      %2243 = vmatpush1.msra.mxu0 0.0
      %2244 = vmatprep.subr.mxu0 0.0
      %2245 = vmatpush1.msra.mxu0 0.0
      %2246 = vmatprep.subr.mxu0 0.0
      %2247 = vmatpush1.msra.mxu0 0.0
      %2248 = vmatprep.subr.mxu0 0.0
      %2249 = vmatpush1.msra.mxu0 0.0
      %2250 = vmatprep.subr.mxu0 0.0
      %2251 = vmatpush1.msra.mxu0 0.0
      %2252 = vmatprep.subr.mxu0 0.0
      %2253 = vmatpush1.msra.mxu0 0.0
      %2254 = vmatprep.subr.mxu0 0.0
      %2255 = vmatpush1.msra.mxu0 0.0
      %2256 = vmatprep.subr.mxu0 0.0
      %2257 = vmatpush1.msra.mxu0 0.0
      %2258 = vmatprep.subr.mxu0 0.0
      %2259 = vmatpush1.msra.mxu0 0.0
      %2260 = vmatprep.subr.mxu0 0.0
      %2261 = vmatpush1.msra.mxu0 0.0
      %2262 = vmatprep.subr.mxu0 0.0
      %2263 = vmatpush1.msra.mxu0 0.0
      %2264 = vmatprep.subr.mxu0 0.0
      %2265 = vmatpush1.msra.mxu0 0.0
      %2266 = vmatprep.mubr.f32.mxu0 0.0
      %2267 = vmatmul.mubr.f32.gmra.mrb[0].mxu0 %v2194
      %v2268 = vpop.f32.mrb[0].mxu0
      %v2269 = vadd.f32 0.0, %v2268
      %v2270 = vpop.f32.mrb[0].mxu0
      %v2271 = vadd.f32 0.0, %v2270
      %2272 = vdwg.mxu0
      %v2273 = vadd.f32 %v2182, %v2269
      %v2274 = vadd.f32 %v2183, %v2271
      %2275 = vrot.lane.b32.xlu0 %v279, 62
      %v2276 = vpop.permute.xlu0 %2275
      %2277 = vrot.lane.b32.xlu0 %v282, 62
      %v2278 = vpop.permute.xlu0 %2277
      %vm2279 = vcmp.lt.s32.totalorder %v289, 62
      %v2280 = vsel %vm2279, %v2276, %v2278
      %v2281 = vsel %vm2279, %v2278, %v2276
      %s2282 = scalar_lea.vmem %s1, 176
      %v2283 = vld [vmem:[%s2282] sm:$0xff]
      %v2285 = vsel %vm295, %v2283, 0
      %v2288 = vsel %vm299, %v2280, 0
      %v2291 = vsel %vm299, %v2281, 0
      %2293 = vmatprep.subr.mxu0 %v2291
      %2294 = vmatpush1.msra.mxu0 %v2288
      %2295 = vmatprep.subr.mxu0 0.0
      %2296 = vmatpush1.msra.mxu0 0.0
      %2297 = vmatprep.subr.mxu0 0.0
      %2298 = vmatpush1.msra.mxu0 0.0
      %2299 = vmatprep.subr.mxu0 0.0
      %2300 = vmatpush1.msra.mxu0 0.0
      %2301 = vmatprep.subr.mxu0 0.0
      %2302 = vmatpush1.msra.mxu0 0.0
      %2303 = vmatprep.subr.mxu0 0.0
      %2304 = vmatpush1.msra.mxu0 0.0
      %2305 = vmatprep.subr.mxu0 0.0
      %2306 = vmatpush1.msra.mxu0 0.0
      %2307 = vmatprep.subr.mxu0 0.0
      %2308 = vmatpush1.msra.mxu0 0.0
      %2309 = vmatprep.subr.mxu0 0.0
      %2310 = vmatpush1.msra.mxu0 0.0
      %2311 = vmatprep.subr.mxu0 0.0
      %2312 = vmatpush1.msra.mxu0 0.0
      %2313 = vmatprep.subr.mxu0 0.0
      %2314 = vmatpush1.msra.mxu0 0.0
      %2315 = vmatprep.subr.mxu0 0.0
      %2316 = vmatpush1.msra.mxu0 0.0
      %2317 = vmatprep.subr.mxu0 0.0
      %2318 = vmatpush1.msra.mxu0 0.0
      %2319 = vmatprep.subr.mxu0 0.0
      %2320 = vmatpush1.msra.mxu0 0.0
      %2321 = vmatprep.subr.mxu0 0.0
      %2322 = vmatpush1.msra.mxu0 0.0
      %2323 = vmatprep.subr.mxu0 0.0
      %2324 = vmatpush1.msra.mxu0 0.0
      %2325 = vmatprep.subr.mxu0 0.0
      %2326 = vmatpush1.msra.mxu0 0.0
      %2327 = vmatprep.subr.mxu0 0.0
      %2328 = vmatpush1.msra.mxu0 0.0
      %2329 = vmatprep.subr.mxu0 0.0
      %2330 = vmatpush1.msra.mxu0 0.0
      %2331 = vmatprep.subr.mxu0 0.0
      %2332 = vmatpush1.msra.mxu0 0.0
      %2333 = vmatprep.subr.mxu0 0.0
      %2334 = vmatpush1.msra.mxu0 0.0
      %2335 = vmatprep.subr.mxu0 0.0
      %2336 = vmatpush1.msra.mxu0 0.0
      %2337 = vmatprep.subr.mxu0 0.0
      %2338 = vmatpush1.msra.mxu0 0.0
      %2339 = vmatprep.subr.mxu0 0.0
      %2340 = vmatpush1.msra.mxu0 0.0
      %2341 = vmatprep.subr.mxu0 0.0
      %2342 = vmatpush1.msra.mxu0 0.0
      %2343 = vmatprep.subr.mxu0 0.0
      %2344 = vmatpush1.msra.mxu0 0.0
      %2345 = vmatprep.subr.mxu0 0.0
      %2346 = vmatpush1.msra.mxu0 0.0
      %2347 = vmatprep.subr.mxu0 0.0
      %2348 = vmatpush1.msra.mxu0 0.0
      %2349 = vmatprep.subr.mxu0 0.0
      %2350 = vmatpush1.msra.mxu0 0.0
      %2351 = vmatprep.subr.mxu0 0.0
      %2352 = vmatpush1.msra.mxu0 0.0
      %2353 = vmatprep.subr.mxu0 0.0
      %2354 = vmatpush1.msra.mxu0 0.0
      %2355 = vmatprep.subr.mxu0 0.0
      %2356 = vmatpush1.msra.mxu0 0.0
      %2357 = vmatprep.mubr.f32.mxu0 0.0
      %2358 = vmatmul.mubr.f32.gmra.mrb[0].mxu0 %v2285
      %v2359 = vpop.f32.mrb[0].mxu0
      %v2360 = vadd.f32 0.0, %v2359
      %v2361 = vpop.f32.mrb[0].mxu0
      %v2362 = vadd.f32 0.0, %v2361
      %2363 = vdwg.mxu0
      %v2364 = vadd.f32 %v2273, %v2360
      %v2365 = vadd.f32 %v2274, %v2362
      %2366 = vrot.lane.b32.xlu0 %v279, 61
      %v2367 = vpop.permute.xlu0 %2366
      %2368 = vrot.lane.b32.xlu0 %v282, 61
      %v2369 = vpop.permute.xlu0 %2368
      %vm2370 = vcmp.lt.s32.totalorder %v289, 61
      %v2371 = vsel %vm2370, %v2367, %v2369
      %v2372 = vsel %vm2370, %v2369, %v2367
      %s2373 = scalar_lea.vmem %s1, 184
      %v2374 = vld [vmem:[%s2373] sm:$0xff]
      %v2376 = vsel %vm295, %v2374, 0
      %v2379 = vsel %vm299, %v2371, 0
      %v2382 = vsel %vm299, %v2372, 0
      %2384 = vmatprep.subr.mxu0 %v2382
      %2385 = vmatpush1.msra.mxu0 %v2379
      %2386 = vmatprep.subr.mxu0 0.0
      %2387 = vmatpush1.msra.mxu0 0.0
      %2388 = vmatprep.subr.mxu0 0.0
      %2389 = vmatpush1.msra.mxu0 0.0
      %2390 = vmatprep.subr.mxu0 0.0
      %2391 = vmatpush1.msra.mxu0 0.0
      %2392 = vmatprep.subr.mxu0 0.0
      %2393 = vmatpush1.msra.mxu0 0.0
      %2394 = vmatprep.subr.mxu0 0.0
      %2395 = vmatpush1.msra.mxu0 0.0
      %2396 = vmatprep.subr.mxu0 0.0
      %2397 = vmatpush1.msra.mxu0 0.0
      %2398 = vmatprep.subr.mxu0 0.0
      %2399 = vmatpush1.msra.mxu0 0.0
      %2400 = vmatprep.subr.mxu0 0.0
      %2401 = vmatpush1.msra.mxu0 0.0
      %2402 = vmatprep.subr.mxu0 0.0
      %2403 = vmatpush1.msra.mxu0 0.0
      %2404 = vmatprep.subr.mxu0 0.0
      %2405 = vmatpush1.msra.mxu0 0.0
      %2406 = vmatprep.subr.mxu0 0.0
      %2407 = vmatpush1.msra.mxu0 0.0
      %2408 = vmatprep.subr.mxu0 0.0
      %2409 = vmatpush1.msra.mxu0 0.0
      %2410 = vmatprep.subr.mxu0 0.0
      %2411 = vmatpush1.msra.mxu0 0.0
      %2412 = vmatprep.subr.mxu0 0.0
      %2413 = vmatpush1.msra.mxu0 0.0
      %2414 = vmatprep.subr.mxu0 0.0
      %2415 = vmatpush1.msra.mxu0 0.0
      %2416 = vmatprep.subr.mxu0 0.0
      %2417 = vmatpush1.msra.mxu0 0.0
      %2418 = vmatprep.subr.mxu0 0.0
      %2419 = vmatpush1.msra.mxu0 0.0
      %2420 = vmatprep.subr.mxu0 0.0
      %2421 = vmatpush1.msra.mxu0 0.0
      %2422 = vmatprep.subr.mxu0 0.0
      %2423 = vmatpush1.msra.mxu0 0.0
      %2424 = vmatprep.subr.mxu0 0.0
      %2425 = vmatpush1.msra.mxu0 0.0
      %2426 = vmatprep.subr.mxu0 0.0
      %2427 = vmatpush1.msra.mxu0 0.0
      %2428 = vmatprep.subr.mxu0 0.0
      %2429 = vmatpush1.msra.mxu0 0.0
      %2430 = vmatprep.subr.mxu0 0.0
      %2431 = vmatpush1.msra.mxu0 0.0
      %2432 = vmatprep.subr.mxu0 0.0
      %2433 = vmatpush1.msra.mxu0 0.0
      %2434 = vmatprep.subr.mxu0 0.0
      %2435 = vmatpush1.msra.mxu0 0.0
      %2436 = vmatprep.subr.mxu0 0.0
      %2437 = vmatpush1.msra.mxu0 0.0
      %2438 = vmatprep.subr.mxu0 0.0
      %2439 = vmatpush1.msra.mxu0 0.0
      %2440 = vmatprep.subr.mxu0 0.0
      %2441 = vmatpush1.msra.mxu0 0.0
      %2442 = vmatprep.subr.mxu0 0.0
      %2443 = vmatpush1.msra.mxu0 0.0
      %2444 = vmatprep.subr.mxu0 0.0
      %2445 = vmatpush1.msra.mxu0 0.0
      %2446 = vmatprep.subr.mxu0 0.0
      %2447 = vmatpush1.msra.mxu0 0.0
      %2448 = vmatprep.mubr.f32.mxu0 0.0
      %2449 = vmatmul.mubr.f32.gmra.mrb[0].mxu0 %v2376
      %v2450 = vpop.f32.mrb[0].mxu0
      %v2451 = vadd.f32 0.0, %v2450
      %v2452 = vpop.f32.mrb[0].mxu0
      %v2453 = vadd.f32 0.0, %v2452
      %2454 = vdwg.mxu0
      %v2455 = vadd.f32 %v2364, %v2451
      %v2456 = vadd.f32 %v2365, %v2453
      %2457 = vrot.lane.b32.xlu0 %v279, 60
      %v2458 = vpop.permute.xlu0 %2457
      %2459 = vrot.lane.b32.xlu0 %v282, 60
      %v2460 = vpop.permute.xlu0 %2459
      %vm2461 = vcmp.lt.s32.totalorder %v289, 60
      %v2462 = vsel %vm2461, %v2458, %v2460
      %v2463 = vsel %vm2461, %v2460, %v2458
      %s2464 = scalar_lea.vmem %s1, 192
      %v2465 = vld [vmem:[%s2464] sm:$0xff]
      %v2467 = vsel %vm295, %v2465, 0
      %v2470 = vsel %vm299, %v2462, 0
      %v2473 = vsel %vm299, %v2463, 0
      %2475 = vmatprep.subr.mxu0 %v2473
      %2476 = vmatpush1.msra.mxu0 %v2470
      %2477 = vmatprep.subr.mxu0 0.0
      %2478 = vmatpush1.msra.mxu0 0.0
      %2479 = vmatprep.subr.mxu0 0.0
      %2480 = vmatpush1.msra.mxu0 0.0
      %2481 = vmatprep.subr.mxu0 0.0
      %2482 = vmatpush1.msra.mxu0 0.0
      %2483 = vmatprep.subr.mxu0 0.0
      %2484 = vmatpush1.msra.mxu0 0.0
      %2485 = vmatprep.subr.mxu0 0.0
      %2486 = vmatpush1.msra.mxu0 0.0
      %2487 = vmatprep.subr.mxu0 0.0
      %2488 = vmatpush1.msra.mxu0 0.0
      %2489 = vmatprep.subr.mxu0 0.0
      %2490 = vmatpush1.msra.mxu0 0.0
      %2491 = vmatprep.subr.mxu0 0.0
      %2492 = vmatpush1.msra.mxu0 0.0
      %2493 = vmatprep.subr.mxu0 0.0
      %2494 = vmatpush1.msra.mxu0 0.0
      %2495 = vmatprep.subr.mxu0 0.0
      %2496 = vmatpush1.msra.mxu0 0.0
      %2497 = vmatprep.subr.mxu0 0.0
      %2498 = vmatpush1.msra.mxu0 0.0
      %2499 = vmatprep.subr.mxu0 0.0
      %2500 = vmatpush1.msra.mxu0 0.0
      %2501 = vmatprep.subr.mxu0 0.0
      %2502 = vmatpush1.msra.mxu0 0.0
      %2503 = vmatprep.subr.mxu0 0.0
      %2504 = vmatpush1.msra.mxu0 0.0
      %2505 = vmatprep.subr.mxu0 0.0
      %2506 = vmatpush1.msra.mxu0 0.0
      %2507 = vmatprep.subr.mxu0 0.0
      %2508 = vmatpush1.msra.mxu0 0.0
      %2509 = vmatprep.subr.mxu0 0.0
      %2510 = vmatpush1.msra.mxu0 0.0
      %2511 = vmatprep.subr.mxu0 0.0
      %2512 = vmatpush1.msra.mxu0 0.0
      %2513 = vmatprep.subr.mxu0 0.0
      %2514 = vmatpush1.msra.mxu0 0.0
      %2515 = vmatprep.subr.mxu0 0.0
      %2516 = vmatpush1.msra.mxu0 0.0
      %2517 = vmatprep.subr.mxu0 0.0
      %2518 = vmatpush1.msra.mxu0 0.0
      %2519 = vmatprep.subr.mxu0 0.0
      %2520 = vmatpush1.msra.mxu0 0.0
      %2521 = vmatprep.subr.mxu0 0.0
      %2522 = vmatpush1.msra.mxu0 0.0
      %2523 = vmatprep.subr.mxu0 0.0
      %2524 = vmatpush1.msra.mxu0 0.0
      %2525 = vmatprep.subr.mxu0 0.0
      %2526 = vmatpush1.msra.mxu0 0.0
      %2527 = vmatprep.subr.mxu0 0.0
      %2528 = vmatpush1.msra.mxu0 0.0
      %2529 = vmatprep.subr.mxu0 0.0
      %2530 = vmatpush1.msra.mxu0 0.0
      %2531 = vmatprep.subr.mxu0 0.0
      %2532 = vmatpush1.msra.mxu0 0.0
      %2533 = vmatprep.subr.mxu0 0.0
      %2534 = vmatpush1.msra.mxu0 0.0
      %2535 = vmatprep.subr.mxu0 0.0
      %2536 = vmatpush1.msra.mxu0 0.0
      %2537 = vmatprep.subr.mxu0 0.0
      %2538 = vmatpush1.msra.mxu0 0.0
      %2539 = vmatprep.mubr.f32.mxu0 0.0
      %2540 = vmatmul.mubr.f32.gmra.mrb[0].mxu0 %v2467
      %v2541 = vpop.f32.mrb[0].mxu0
      %v2542 = vadd.f32 0.0, %v2541
      %v2543 = vpop.f32.mrb[0].mxu0
      %v2544 = vadd.f32 0.0, %v2543
      %2545 = vdwg.mxu0
      %v2546 = vadd.f32 %v2455, %v2542
      %v2547 = vadd.f32 %v2456, %v2544
      %v2548 = vld [vmem:[%s2] sm:$0xff]
      %2550 = vset.pattern.permute.xlu0 0
      %2551 = vperm.xlu0 %2550, %v2548
      %v2552 = vpop.permute.xlu0 %2551
      %v2554 = vadd.f32 %v2546, %v2552
      %v2555 = vadd.f32 %v2547, %v2552
      %v2556 = vmax.f32 %v2554, 0.0
      %v2557 = vmax.f32 %v2555, 0.0
      %v2558 = vld [vmem:[%s3] sm:$0xff]
      %2559 = vrot.lane.b32.xlu0 %v2556, 127
      %v2560 = vpop.permute.xlu0 %2559
      %2561 = vrot.lane.b32.xlu0 %v2557, 127
      %v2562 = vpop.permute.xlu0 %2561
      %v2563 = vsel %vm290, %v2560, %v2562
      %v2564 = vsel %vm290, %v2562, %v2560
      %s2565 = scalar_lea.vmem %s3, 8
      %v2566 = vld [vmem:[%s2565] sm:$0xff]
      %vm2567 = vcmask 64512
      %v2569 = vsel %vm2567, %v2566, 0
      %2571 = vmatprep.subr.mxu0 %v2564
      %2572 = vmatpush1.msra.mxu0 %v2563
      %2573 = vmatprep.subr.mxu0 0.0
      %2574 = vmatpush1.msra.mxu0 0.0
      %2575 = vmatprep.subr.mxu0 0.0
      %2576 = vmatpush1.msra.mxu0 0.0
      %2577 = vmatprep.subr.mxu0 0.0
      %2578 = vmatpush1.msra.mxu0 0.0
      %2579 = vmatprep.subr.mxu0 0.0
      %2580 = vmatpush1.msra.mxu0 0.0
      %2581 = vmatprep.subr.mxu0 0.0
      %2582 = vmatpush1.msra.mxu0 0.0
      %2583 = vmatprep.subr.mxu0 0.0
      %2584 = vmatpush1.msra.mxu0 0.0
      %2585 = vmatprep.subr.mxu0 0.0
      %2586 = vmatpush1.msra.mxu0 0.0
      %2587 = vmatprep.subr.mxu0 0.0
      %2588 = vmatpush1.msra.mxu0 0.0
      %2589 = vmatprep.subr.mxu0 0.0
      %2590 = vmatpush1.msra.mxu0 0.0
      %2591 = vmatprep.subr.mxu0 0.0
      %2592 = vmatpush1.msra.mxu0 0.0
      %2593 = vmatprep.subr.mxu0 0.0
      %2594 = vmatpush1.msra.mxu0 0.0
      %2595 = vmatprep.subr.mxu0 0.0
      %2596 = vmatpush1.msra.mxu0 0.0
      %2597 = vmatprep.subr.mxu0 0.0
      %2598 = vmatpush1.msra.mxu0 0.0
      %2599 = vmatprep.subr.mxu0 0.0
      %2600 = vmatpush1.msra.mxu0 0.0
      %2601 = vmatprep.subr.mxu0 0.0
      %2602 = vmatpush1.msra.mxu0 0.0
      %2603 = vmatprep.subr.mxu0 0.0
      %2604 = vmatpush1.msra.mxu0 0.0
      %2605 = vmatprep.subr.mxu0 0.0
      %2606 = vmatpush1.msra.mxu0 0.0
      %2607 = vmatprep.subr.mxu0 0.0
      %2608 = vmatpush1.msra.mxu0 0.0
      %2609 = vmatprep.subr.mxu0 0.0
      %2610 = vmatpush1.msra.mxu0 0.0
      %2611 = vmatprep.subr.mxu0 0.0
      %2612 = vmatpush1.msra.mxu0 0.0
      %2613 = vmatprep.subr.mxu0 0.0
      %2614 = vmatpush1.msra.mxu0 0.0
      %2615 = vmatprep.subr.mxu0 0.0
      %2616 = vmatpush1.msra.mxu0 0.0
      %2617 = vmatprep.subr.mxu0 0.0
      %2618 = vmatpush1.msra.mxu0 0.0
      %2619 = vmatprep.subr.mxu0 0.0
      %2620 = vmatpush1.msra.mxu0 0.0
      %2621 = vmatprep.subr.mxu0 0.0
      %2622 = vmatpush1.msra.mxu0 0.0
      %2623 = vmatprep.subr.mxu0 0.0
      %2624 = vmatpush1.msra.mxu0 0.0
      %2625 = vmatprep.subr.mxu0 0.0
      %2626 = vmatpush1.msra.mxu0 0.0
      %2627 = vmatprep.subr.mxu0 0.0
      %2628 = vmatpush1.msra.mxu0 0.0
      %2629 = vmatprep.subr.mxu0 0.0
      %2630 = vmatpush1.msra.mxu0 0.0
      %2631 = vmatprep.subr.mxu0 0.0
      %2632 = vmatpush1.msra.mxu0 0.0
      %2633 = vmatprep.subr.mxu0 0.0
      %2634 = vmatpush1.msra.mxu0 0.0
      %2635 = vmatprep.mubr.f32.mxu0 0.0
      %2636 = vmatmul.mubr.f32.gmra.mrb[0].mxu0 %v2569
      %v2637 = vpop.f32.mrb[0].mxu0
      %v2638 = vadd.f32 0.0, %v2637
      %v2639 = vpop.f32.mrb[0].mxu0
      %v2640 = vadd.f32 0.0, %v2639
      %2641 = vdwg.mxu0
      %v2643 = vsel %vm2567, %v2558, 0
      %2645 = vmatprep.subr.mxu0 %v2557
      %2646 = vmatpush1.msra.mxu0 %v2556
      %2647 = vmatprep.subr.mxu0 0.0
      %2648 = vmatpush1.msra.mxu0 0.0
      %2649 = vmatprep.subr.mxu0 0.0
      %2650 = vmatpush1.msra.mxu0 0.0
      %2651 = vmatprep.subr.mxu0 0.0
      %2652 = vmatpush1.msra.mxu0 0.0
      %2653 = vmatprep.subr.mxu0 0.0
      %2654 = vmatpush1.msra.mxu0 0.0
      %2655 = vmatprep.subr.mxu0 0.0
      %2656 = vmatpush1.msra.mxu0 0.0
      %2657 = vmatprep.subr.mxu0 0.0
      %2658 = vmatpush1.msra.mxu0 0.0
      %2659 = vmatprep.subr.mxu0 0.0
      %2660 = vmatpush1.msra.mxu0 0.0
      %2661 = vmatprep.subr.mxu0 0.0
      %2662 = vmatpush1.msra.mxu0 0.0
      %2663 = vmatprep.subr.mxu0 0.0
      %2664 = vmatpush1.msra.mxu0 0.0
      %2665 = vmatprep.subr.mxu0 0.0
      %2666 = vmatpush1.msra.mxu0 0.0
      %2667 = vmatprep.subr.mxu0 0.0
      %2668 = vmatpush1.msra.mxu0 0.0
      %2669 = vmatprep.subr.mxu0 0.0
      %2670 = vmatpush1.msra.mxu0 0.0
      %2671 = vmatprep.subr.mxu0 0.0
      %2672 = vmatpush1.msra.mxu0 0.0
      %2673 = vmatprep.subr.mxu0 0.0
      %2674 = vmatpush1.msra.mxu0 0.0
      %2675 = vmatprep.subr.mxu0 0.0
      %2676 = vmatpush1.msra.mxu0 0.0
      %2677 = vmatprep.subr.mxu0 0.0
      %2678 = vmatpush1.msra.mxu0 0.0
      %2679 = vmatprep.subr.mxu0 0.0
      %2680 = vmatpush1.msra.mxu0 0.0
      %2681 = vmatprep.subr.mxu0 0.0
      %2682 = vmatpush1.msra.mxu0 0.0
      %2683 = vmatprep.subr.mxu0 0.0
      %2684 = vmatpush1.msra.mxu0 0.0
      %2685 = vmatprep.subr.mxu0 0.0
      %2686 = vmatpush1.msra.mxu0 0.0
      %2687 = vmatprep.subr.mxu0 0.0
      %2688 = vmatpush1.msra.mxu0 0.0
      %2689 = vmatprep.subr.mxu0 0.0
      %2690 = vmatpush1.msra.mxu0 0.0
      %2691 = vmatprep.subr.mxu0 0.0
      %2692 = vmatpush1.msra.mxu0 0.0
      %2693 = vmatprep.subr.mxu0 0.0
      %2694 = vmatpush1.msra.mxu0 0.0
      %2695 = vmatprep.subr.mxu0 0.0
      %2696 = vmatpush1.msra.mxu0 0.0
      %2697 = vmatprep.subr.mxu0 0.0
      %2698 = vmatpush1.msra.mxu0 0.0
      %2699 = vmatprep.subr.mxu0 0.0
      %2700 = vmatpush1.msra.mxu0 0.0
      %2701 = vmatprep.subr.mxu0 0.0
      %2702 = vmatpush1.msra.mxu0 0.0
      %2703 = vmatprep.subr.mxu0 0.0
      %2704 = vmatpush1.msra.mxu0 0.0
      %2705 = vmatprep.subr.mxu0 0.0
      %2706 = vmatpush1.msra.mxu0 0.0
      %2707 = vmatprep.subr.mxu0 0.0
      %2708 = vmatpush1.msra.mxu0 0.0
      %2709 = vmatprep.mubr.f32.mxu0 0.0
      %2710 = vmatmul.mubr.f32.gmra.mrb[0].mxu0 %v2643
      %v2711 = vpop.f32.mrb[0].mxu0
      %v2712 = vadd.f32 %v2638, %v2711
      %v2713 = vpop.f32.mrb[0].mxu0
      %v2714 = vadd.f32 %v2640, %v2713
      %2715 = vdwg.mxu0
      %2716 = vrot.lane.b32.xlu0 %v2556, 126
      %v2717 = vpop.permute.xlu0 %2716
      %2718 = vrot.lane.b32.xlu0 %v2557, 126
      %v2719 = vpop.permute.xlu0 %2718
      %v2720 = vsel %vm459, %v2717, %v2719
      %v2721 = vsel %vm459, %v2719, %v2717
      %s2722 = scalar_lea.vmem %s3, 16
      %v2723 = vld [vmem:[%s2722] sm:$0xff]
      %v2725 = vsel %vm2567, %v2723, 0
      %2727 = vmatprep.subr.mxu0 %v2721
      %2728 = vmatpush1.msra.mxu0 %v2720
      %2729 = vmatprep.subr.mxu0 0.0
      %2730 = vmatpush1.msra.mxu0 0.0
      %2731 = vmatprep.subr.mxu0 0.0
      %2732 = vmatpush1.msra.mxu0 0.0
      %2733 = vmatprep.subr.mxu0 0.0
      %2734 = vmatpush1.msra.mxu0 0.0
      %2735 = vmatprep.subr.mxu0 0.0
      %2736 = vmatpush1.msra.mxu0 0.0
      %2737 = vmatprep.subr.mxu0 0.0
      %2738 = vmatpush1.msra.mxu0 0.0
      %2739 = vmatprep.subr.mxu0 0.0
      %2740 = vmatpush1.msra.mxu0 0.0
      %2741 = vmatprep.subr.mxu0 0.0
      %2742 = vmatpush1.msra.mxu0 0.0
      %2743 = vmatprep.subr.mxu0 0.0
      %2744 = vmatpush1.msra.mxu0 0.0
      %2745 = vmatprep.subr.mxu0 0.0
      %2746 = vmatpush1.msra.mxu0 0.0
      %2747 = vmatprep.subr.mxu0 0.0
      %2748 = vmatpush1.msra.mxu0 0.0
      %2749 = vmatprep.subr.mxu0 0.0
      %2750 = vmatpush1.msra.mxu0 0.0
      %2751 = vmatprep.subr.mxu0 0.0
      %2752 = vmatpush1.msra.mxu0 0.0
      %2753 = vmatprep.subr.mxu0 0.0
      %2754 = vmatpush1.msra.mxu0 0.0
      %2755 = vmatprep.subr.mxu0 0.0
      %2756 = vmatpush1.msra.mxu0 0.0
      %2757 = vmatprep.subr.mxu0 0.0
      %2758 = vmatpush1.msra.mxu0 0.0
      %2759 = vmatprep.subr.mxu0 0.0
      %2760 = vmatpush1.msra.mxu0 0.0
      %2761 = vmatprep.subr.mxu0 0.0
      %2762 = vmatpush1.msra.mxu0 0.0
      %2763 = vmatprep.subr.mxu0 0.0
      %2764 = vmatpush1.msra.mxu0 0.0
      %2765 = vmatprep.subr.mxu0 0.0
      %2766 = vmatpush1.msra.mxu0 0.0
      %2767 = vmatprep.subr.mxu0 0.0
      %2768 = vmatpush1.msra.mxu0 0.0
      %2769 = vmatprep.subr.mxu0 0.0
      %2770 = vmatpush1.msra.mxu0 0.0
      %2771 = vmatprep.subr.mxu0 0.0
      %2772 = vmatpush1.msra.mxu0 0.0
      %2773 = vmatprep.subr.mxu0 0.0
      %2774 = vmatpush1.msra.mxu0 0.0
      %2775 = vmatprep.subr.mxu0 0.0
      %2776 = vmatpush1.msra.mxu0 0.0
      %2777 = vmatprep.subr.mxu0 0.0
      %2778 = vmatpush1.msra.mxu0 0.0
      %2779 = vmatprep.subr.mxu0 0.0
      %2780 = vmatpush1.msra.mxu0 0.0
      %2781 = vmatprep.subr.mxu0 0.0
      %2782 = vmatpush1.msra.mxu0 0.0
      %2783 = vmatprep.subr.mxu0 0.0
      %2784 = vmatpush1.msra.mxu0 0.0
      %2785 = vmatprep.subr.mxu0 0.0
      %2786 = vmatpush1.msra.mxu0 0.0
      %2787 = vmatprep.subr.mxu0 0.0
      %2788 = vmatpush1.msra.mxu0 0.0
      %2789 = vmatprep.subr.mxu0 0.0
      %2790 = vmatpush1.msra.mxu0 0.0
      %2791 = vmatprep.mubr.f32.mxu0 0.0
      %2792 = vmatmul.mubr.f32.gmra.mrb[0].mxu0 %v2725
      %v2793 = vpop.f32.mrb[0].mxu0
      %v2794 = vadd.f32 0.0, %v2793
      %v2795 = vpop.f32.mrb[0].mxu0
      %v2796 = vadd.f32 0.0, %v2795
      %2797 = vdwg.mxu0
      %v2798 = vadd.f32 %v2712, %v2794
      %v2799 = vadd.f32 %v2714, %v2796
      %2800 = vrot.lane.b32.xlu0 %v2556, 112
      %v2801 = vpop.permute.xlu0 %2800
      %2802 = vrot.lane.b32.xlu0 %v2557, 112
      %v2803 = vpop.permute.xlu0 %2802
      %v2804 = vsel %vm732, %v2801, %v2803
      %v2805 = vsel %vm732, %v2803, %v2801
      %s2806 = scalar_lea.vmem %s3, 24
      %v2807 = vld [vmem:[%s2806] sm:$0xff]
      %v2809 = vsel %vm2567, %v2807, 0
      %2811 = vmatprep.subr.mxu0 %v2805
      %2812 = vmatpush1.msra.mxu0 %v2804
      %2813 = vmatprep.subr.mxu0 0.0
      %2814 = vmatpush1.msra.mxu0 0.0
      %2815 = vmatprep.subr.mxu0 0.0
      %2816 = vmatpush1.msra.mxu0 0.0
      %2817 = vmatprep.subr.mxu0 0.0
      %2818 = vmatpush1.msra.mxu0 0.0
      %2819 = vmatprep.subr.mxu0 0.0
      %2820 = vmatpush1.msra.mxu0 0.0
      %2821 = vmatprep.subr.mxu0 0.0
      %2822 = vmatpush1.msra.mxu0 0.0
      %2823 = vmatprep.subr.mxu0 0.0
      %2824 = vmatpush1.msra.mxu0 0.0
      %2825 = vmatprep.subr.mxu0 0.0
      %2826 = vmatpush1.msra.mxu0 0.0
      %2827 = vmatprep.subr.mxu0 0.0
      %2828 = vmatpush1.msra.mxu0 0.0
      %2829 = vmatprep.subr.mxu0 0.0
      %2830 = vmatpush1.msra.mxu0 0.0
      %2831 = vmatprep.subr.mxu0 0.0
      %2832 = vmatpush1.msra.mxu0 0.0
      %2833 = vmatprep.subr.mxu0 0.0
      %2834 = vmatpush1.msra.mxu0 0.0
      %2835 = vmatprep.subr.mxu0 0.0
      %2836 = vmatpush1.msra.mxu0 0.0
      %2837 = vmatprep.subr.mxu0 0.0
      %2838 = vmatpush1.msra.mxu0 0.0
      %2839 = vmatprep.subr.mxu0 0.0
      %2840 = vmatpush1.msra.mxu0 0.0
      %2841 = vmatprep.subr.mxu0 0.0
      %2842 = vmatpush1.msra.mxu0 0.0
      %2843 = vmatprep.subr.mxu0 0.0
      %2844 = vmatpush1.msra.mxu0 0.0
      %2845 = vmatprep.subr.mxu0 0.0
      %2846 = vmatpush1.msra.mxu0 0.0
      %2847 = vmatprep.subr.mxu0 0.0
      %2848 = vmatpush1.msra.mxu0 0.0
      %2849 = vmatprep.subr.mxu0 0.0
      %2850 = vmatpush1.msra.mxu0 0.0
      %2851 = vmatprep.subr.mxu0 0.0
      %2852 = vmatpush1.msra.mxu0 0.0
      %2853 = vmatprep.subr.mxu0 0.0
      %2854 = vmatpush1.msra.mxu0 0.0
      %2855 = vmatprep.subr.mxu0 0.0
      %2856 = vmatpush1.msra.mxu0 0.0
      %2857 = vmatprep.subr.mxu0 0.0
      %2858 = vmatpush1.msra.mxu0 0.0
      %2859 = vmatprep.subr.mxu0 0.0
      %2860 = vmatpush1.msra.mxu0 0.0
      %2861 = vmatprep.subr.mxu0 0.0
      %2862 = vmatpush1.msra.mxu0 0.0
      %2863 = vmatprep.subr.mxu0 0.0
      %2864 = vmatpush1.msra.mxu0 0.0
      %2865 = vmatprep.subr.mxu0 0.0
      %2866 = vmatpush1.msra.mxu0 0.0
      %2867 = vmatprep.subr.mxu0 0.0
      %2868 = vmatpush1.msra.mxu0 0.0
      %2869 = vmatprep.subr.mxu0 0.0
      %2870 = vmatpush1.msra.mxu0 0.0
      %2871 = vmatprep.subr.mxu0 0.0
      %2872 = vmatpush1.msra.mxu0 0.0
      %2873 = vmatprep.subr.mxu0 0.0
      %2874 = vmatpush1.msra.mxu0 0.0
      %2875 = vmatprep.mubr.f32.mxu0 0.0
      %2876 = vmatmul.mubr.f32.gmra.mrb[0].mxu0 %v2809
      %v2877 = vpop.f32.mrb[0].mxu0
      %v2878 = vadd.f32 0.0, %v2877
      %v2879 = vpop.f32.mrb[0].mxu0
      %v2880 = vadd.f32 0.0, %v2879
      %2881 = vdwg.mxu0
      %v2882 = vadd.f32 %v2798, %v2878
      %v2883 = vadd.f32 %v2799, %v2880
      %2884 = vrot.lane.b32.xlu0 %v2556, 111
      %v2885 = vpop.permute.xlu0 %2884
      %2886 = vrot.lane.b32.xlu0 %v2557, 111
      %v2887 = vpop.permute.xlu0 %2886
      %v2888 = vsel %vm823, %v2885, %v2887
      %v2889 = vsel %vm823, %v2887, %v2885
      %s2890 = scalar_lea.vmem %s3, 32
      %v2891 = vld [vmem:[%s2890] sm:$0xff]
      %v2893 = vsel %vm2567, %v2891, 0
      %2895 = vmatprep.subr.mxu0 %v2889
      %2896 = vmatpush1.msra.mxu0 %v2888
      %2897 = vmatprep.subr.mxu0 0.0
      %2898 = vmatpush1.msra.mxu0 0.0
      %2899 = vmatprep.subr.mxu0 0.0
      %2900 = vmatpush1.msra.mxu0 0.0
      %2901 = vmatprep.subr.mxu0 0.0
      %2902 = vmatpush1.msra.mxu0 0.0
      %2903 = vmatprep.subr.mxu0 0.0
      %2904 = vmatpush1.msra.mxu0 0.0
      %2905 = vmatprep.subr.mxu0 0.0
      %2906 = vmatpush1.msra.mxu0 0.0
      %2907 = vmatprep.subr.mxu0 0.0
      %2908 = vmatpush1.msra.mxu0 0.0
      %2909 = vmatprep.subr.mxu0 0.0
      %2910 = vmatpush1.msra.mxu0 0.0
      %2911 = vmatprep.subr.mxu0 0.0
      %2912 = vmatpush1.msra.mxu0 0.0
      %2913 = vmatprep.subr.mxu0 0.0
      %2914 = vmatpush1.msra.mxu0 0.0
      %2915 = vmatprep.subr.mxu0 0.0
      %2916 = vmatpush1.msra.mxu0 0.0
      %2917 = vmatprep.subr.mxu0 0.0
      %2918 = vmatpush1.msra.mxu0 0.0
      %2919 = vmatprep.subr.mxu0 0.0
      %2920 = vmatpush1.msra.mxu0 0.0
      %2921 = vmatprep.subr.mxu0 0.0
      %2922 = vmatpush1.msra.mxu0 0.0
      %2923 = vmatprep.subr.mxu0 0.0
      %2924 = vmatpush1.msra.mxu0 0.0
      %2925 = vmatprep.subr.mxu0 0.0
      %2926 = vmatpush1.msra.mxu0 0.0
      %2927 = vmatprep.subr.mxu0 0.0
      %2928 = vmatpush1.msra.mxu0 0.0
      %2929 = vmatprep.subr.mxu0 0.0
      %2930 = vmatpush1.msra.mxu0 0.0
      %2931 = vmatprep.subr.mxu0 0.0
      %2932 = vmatpush1.msra.mxu0 0.0
      %2933 = vmatprep.subr.mxu0 0.0
      %2934 = vmatpush1.msra.mxu0 0.0
      %2935 = vmatprep.subr.mxu0 0.0
      %2936 = vmatpush1.msra.mxu0 0.0
      %2937 = vmatprep.subr.mxu0 0.0
      %2938 = vmatpush1.msra.mxu0 0.0
      %2939 = vmatprep.subr.mxu0 0.0
      %2940 = vmatpush1.msra.mxu0 0.0
      %2941 = vmatprep.subr.mxu0 0.0
      %2942 = vmatpush1.msra.mxu0 0.0
      %2943 = vmatprep.subr.mxu0 0.0
      %2944 = vmatpush1.msra.mxu0 0.0
      %2945 = vmatprep.subr.mxu0 0.0
      %2946 = vmatpush1.msra.mxu0 0.0
      %2947 = vmatprep.subr.mxu0 0.0
      %2948 = vmatpush1.msra.mxu0 0.0
      %2949 = vmatprep.subr.mxu0 0.0
      %2950 = vmatpush1.msra.mxu0 0.0
      %2951 = vmatprep.subr.mxu0 0.0
      %2952 = vmatpush1.msra.mxu0 0.0
      %2953 = vmatprep.subr.mxu0 0.0
      %2954 = vmatpush1.msra.mxu0 0.0
      %2955 = vmatprep.subr.mxu0 0.0
      %2956 = vmatpush1.msra.mxu0 0.0
      %2957 = vmatprep.subr.mxu0 0.0
      %2958 = vmatpush1.msra.mxu0 0.0
      %2959 = vmatprep.mubr.f32.mxu0 0.0
      %2960 = vmatmul.mubr.f32.gmra.mrb[0].mxu0 %v2893
      %v2961 = vpop.f32.mrb[0].mxu0
      %v2962 = vadd.f32 0.0, %v2961
      %v2963 = vpop.f32.mrb[0].mxu0
      %v2964 = vadd.f32 0.0, %v2963
      %2965 = vdwg.mxu0
      %v2966 = vadd.f32 %v2882, %v2962
      %v2967 = vadd.f32 %v2883, %v2964
      %2968 = vrot.lane.b32.xlu0 %v2556, 110
      %v2969 = vpop.permute.xlu0 %2968
      %2970 = vrot.lane.b32.xlu0 %v2557, 110
      %v2971 = vpop.permute.xlu0 %2970
      %v2972 = vsel %vm914, %v2969, %v2971
      %v2973 = vsel %vm914, %v2971, %v2969
      %s2974 = scalar_lea.vmem %s3, 40
      %v2975 = vld [vmem:[%s2974] sm:$0xff]
      %v2977 = vsel %vm2567, %v2975, 0
      %2979 = vmatprep.subr.mxu0 %v2973
      %2980 = vmatpush1.msra.mxu0 %v2972
      %2981 = vmatprep.subr.mxu0 0.0
      %2982 = vmatpush1.msra.mxu0 0.0
      %2983 = vmatprep.subr.mxu0 0.0
      %2984 = vmatpush1.msra.mxu0 0.0
      %2985 = vmatprep.subr.mxu0 0.0
      %2986 = vmatpush1.msra.mxu0 0.0
      %2987 = vmatprep.subr.mxu0 0.0
      %2988 = vmatpush1.msra.mxu0 0.0
      %2989 = vmatprep.subr.mxu0 0.0
      %2990 = vmatpush1.msra.mxu0 0.0
      %2991 = vmatprep.subr.mxu0 0.0
      %2992 = vmatpush1.msra.mxu0 0.0
      %2993 = vmatprep.subr.mxu0 0.0
      %2994 = vmatpush1.msra.mxu0 0.0
      %2995 = vmatprep.subr.mxu0 0.0
      %2996 = vmatpush1.msra.mxu0 0.0
      %2997 = vmatprep.subr.mxu0 0.0
      %2998 = vmatpush1.msra.mxu0 0.0
      %2999 = vmatprep.subr.mxu0 0.0
      %3000 = vmatpush1.msra.mxu0 0.0
      %3001 = vmatprep.subr.mxu0 0.0
      %3002 = vmatpush1.msra.mxu0 0.0
      %3003 = vmatprep.subr.mxu0 0.0
      %3004 = vmatpush1.msra.mxu0 0.0
      %3005 = vmatprep.subr.mxu0 0.0
      %3006 = vmatpush1.msra.mxu0 0.0
      %3007 = vmatprep.subr.mxu0 0.0
      %3008 = vmatpush1.msra.mxu0 0.0
      %3009 = vmatprep.subr.mxu0 0.0
      %3010 = vmatpush1.msra.mxu0 0.0
      %3011 = vmatprep.subr.mxu0 0.0
      %3012 = vmatpush1.msra.mxu0 0.0
      %3013 = vmatprep.subr.mxu0 0.0
      %3014 = vmatpush1.msra.mxu0 0.0
      %3015 = vmatprep.subr.mxu0 0.0
      %3016 = vmatpush1.msra.mxu0 0.0
      %3017 = vmatprep.subr.mxu0 0.0
      %3018 = vmatpush1.msra.mxu0 0.0
      %3019 = vmatprep.subr.mxu0 0.0
      %3020 = vmatpush1.msra.mxu0 0.0
      %3021 = vmatprep.subr.mxu0 0.0
      %3022 = vmatpush1.msra.mxu0 0.0
      %3023 = vmatprep.subr.mxu0 0.0
      %3024 = vmatpush1.msra.mxu0 0.0
      %3025 = vmatprep.subr.mxu0 0.0
      %3026 = vmatpush1.msra.mxu0 0.0
      %3027 = vmatprep.subr.mxu0 0.0
      %3028 = vmatpush1.msra.mxu0 0.0
      %3029 = vmatprep.subr.mxu0 0.0
      %3030 = vmatpush1.msra.mxu0 0.0
      %3031 = vmatprep.subr.mxu0 0.0
      %3032 = vmatpush1.msra.mxu0 0.0
      %3033 = vmatprep.subr.mxu0 0.0
      %3034 = vmatpush1.msra.mxu0 0.0
      %3035 = vmatprep.subr.mxu0 0.0
      %3036 = vmatpush1.msra.mxu0 0.0
      %3037 = vmatprep.subr.mxu0 0.0
      %3038 = vmatpush1.msra.mxu0 0.0
      %3039 = vmatprep.subr.mxu0 0.0
      %3040 = vmatpush1.msra.mxu0 0.0
      %3041 = vmatprep.subr.mxu0 0.0
      %3042 = vmatpush1.msra.mxu0 0.0
      %3043 = vmatprep.mubr.f32.mxu0 0.0
      %3044 = vmatmul.mubr.f32.gmra.mrb[0].mxu0 %v2977
      %v3045 = vpop.f32.mrb[0].mxu0
      %v3046 = vadd.f32 0.0, %v3045
      %v3047 = vpop.f32.mrb[0].mxu0
      %v3048 = vadd.f32 0.0, %v3047
      %3049 = vdwg.mxu0
      %v3050 = vadd.f32 %v2966, %v3046
      %v3051 = vadd.f32 %v2967, %v3048
      %3052 = vrot.lane.b32.xlu0 %v2556, 96
      %v3053 = vpop.permute.xlu0 %3052
      %3054 = vrot.lane.b32.xlu0 %v2557, 96
      %v3055 = vpop.permute.xlu0 %3054
      %v3056 = vsel %vm1187, %v3053, %v3055
      %v3057 = vsel %vm1187, %v3055, %v3053
      %s3058 = scalar_lea.vmem %s3, 48
      %v3059 = vld [vmem:[%s3058] sm:$0xff]
      %v3061 = vsel %vm2567, %v3059, 0
      %3063 = vmatprep.subr.mxu0 %v3057
      %3064 = vmatpush1.msra.mxu0 %v3056
      %3065 = vmatprep.subr.mxu0 0.0
      %3066 = vmatpush1.msra.mxu0 0.0
      %3067 = vmatprep.subr.mxu0 0.0
      %3068 = vmatpush1.msra.mxu0 0.0
      %3069 = vmatprep.subr.mxu0 0.0
      %3070 = vmatpush1.msra.mxu0 0.0
      %3071 = vmatprep.subr.mxu0 0.0
      %3072 = vmatpush1.msra.mxu0 0.0
      %3073 = vmatprep.subr.mxu0 0.0
      %3074 = vmatpush1.msra.mxu0 0.0
      %3075 = vmatprep.subr.mxu0 0.0
      %3076 = vmatpush1.msra.mxu0 0.0
      %3077 = vmatprep.subr.mxu0 0.0
      %3078 = vmatpush1.msra.mxu0 0.0
      %3079 = vmatprep.subr.mxu0 0.0
      %3080 = vmatpush1.msra.mxu0 0.0
      %3081 = vmatprep.subr.mxu0 0.0
      %3082 = vmatpush1.msra.mxu0 0.0
      %3083 = vmatprep.subr.mxu0 0.0
      %3084 = vmatpush1.msra.mxu0 0.0
      %3085 = vmatprep.subr.mxu0 0.0
      %3086 = vmatpush1.msra.mxu0 0.0
      %3087 = vmatprep.subr.mxu0 0.0
      %3088 = vmatpush1.msra.mxu0 0.0
      %3089 = vmatprep.subr.mxu0 0.0
      %3090 = vmatpush1.msra.mxu0 0.0
      %3091 = vmatprep.subr.mxu0 0.0
      %3092 = vmatpush1.msra.mxu0 0.0
      %3093 = vmatprep.subr.mxu0 0.0
      %3094 = vmatpush1.msra.mxu0 0.0
      %3095 = vmatprep.subr.mxu0 0.0
      %3096 = vmatpush1.msra.mxu0 0.0
      %3097 = vmatprep.subr.mxu0 0.0
      %3098 = vmatpush1.msra.mxu0 0.0
      %3099 = vmatprep.subr.mxu0 0.0
      %3100 = vmatpush1.msra.mxu0 0.0
      %3101 = vmatprep.subr.mxu0 0.0
      %3102 = vmatpush1.msra.mxu0 0.0
      %3103 = vmatprep.subr.mxu0 0.0
      %3104 = vmatpush1.msra.mxu0 0.0
      %3105 = vmatprep.subr.mxu0 0.0
      %3106 = vmatpush1.msra.mxu0 0.0
      %3107 = vmatprep.subr.mxu0 0.0
      %3108 = vmatpush1.msra.mxu0 0.0
      %3109 = vmatprep.subr.mxu0 0.0
      %3110 = vmatpush1.msra.mxu0 0.0
      %3111 = vmatprep.subr.mxu0 0.0
      %3112 = vmatpush1.msra.mxu0 0.0
      %3113 = vmatprep.subr.mxu0 0.0
      %3114 = vmatpush1.msra.mxu0 0.0
      %3115 = vmatprep.subr.mxu0 0.0
      %3116 = vmatpush1.msra.mxu0 0.0
      %3117 = vmatprep.subr.mxu0 0.0
      %3118 = vmatpush1.msra.mxu0 0.0
      %3119 = vmatprep.subr.mxu0 0.0
      %3120 = vmatpush1.msra.mxu0 0.0
      %3121 = vmatprep.subr.mxu0 0.0
      %3122 = vmatpush1.msra.mxu0 0.0
      %3123 = vmatprep.subr.mxu0 0.0
      %3124 = vmatpush1.msra.mxu0 0.0
      %3125 = vmatprep.subr.mxu0 0.0
      %3126 = vmatpush1.msra.mxu0 0.0
      %3127 = vmatprep.mubr.f32.mxu0 0.0
      %3128 = vmatmul.mubr.f32.gmra.mrb[0].mxu0 %v3061
      %v3129 = vpop.f32.mrb[0].mxu0
      %v3130 = vadd.f32 0.0, %v3129
      %v3131 = vpop.f32.mrb[0].mxu0
      %v3132 = vadd.f32 0.0, %v3131
      %3133 = vdwg.mxu0
      %v3134 = vadd.f32 %v3050, %v3130
      %v3135 = vadd.f32 %v3051, %v3132
      %3136 = vrot.lane.b32.xlu0 %v2556, 95
      %v3137 = vpop.permute.xlu0 %3136
      %3138 = vrot.lane.b32.xlu0 %v2557, 95
      %v3139 = vpop.permute.xlu0 %3138
      %v3140 = vsel %vm1278, %v3137, %v3139
      %v3141 = vsel %vm1278, %v3139, %v3137
      %s3142 = scalar_lea.vmem %s3, 56
      %v3143 = vld [vmem:[%s3142] sm:$0xff]
      %v3145 = vsel %vm2567, %v3143, 0
      %3147 = vmatprep.subr.mxu0 %v3141
      %3148 = vmatpush1.msra.mxu0 %v3140
      %3149 = vmatprep.subr.mxu0 0.0
      %3150 = vmatpush1.msra.mxu0 0.0
      %3151 = vmatprep.subr.mxu0 0.0
      %3152 = vmatpush1.msra.mxu0 0.0
      %3153 = vmatprep.subr.mxu0 0.0
      %3154 = vmatpush1.msra.mxu0 0.0
      %3155 = vmatprep.subr.mxu0 0.0
      %3156 = vmatpush1.msra.mxu0 0.0
      %3157 = vmatprep.subr.mxu0 0.0
      %3158 = vmatpush1.msra.mxu0 0.0
      %3159 = vmatprep.subr.mxu0 0.0
      %3160 = vmatpush1.msra.mxu0 0.0
      %3161 = vmatprep.subr.mxu0 0.0
      %3162 = vmatpush1.msra.mxu0 0.0
      %3163 = vmatprep.subr.mxu0 0.0
      %3164 = vmatpush1.msra.mxu0 0.0
      %3165 = vmatprep.subr.mxu0 0.0
      %3166 = vmatpush1.msra.mxu0 0.0
      %3167 = vmatprep.subr.mxu0 0.0
      %3168 = vmatpush1.msra.mxu0 0.0
      %3169 = vmatprep.subr.mxu0 0.0
      %3170 = vmatpush1.msra.mxu0 0.0
      %3171 = vmatprep.subr.mxu0 0.0
      %3172 = vmatpush1.msra.mxu0 0.0
      %3173 = vmatprep.subr.mxu0 0.0
      %3174 = vmatpush1.msra.mxu0 0.0
      %3175 = vmatprep.subr.mxu0 0.0
      %3176 = vmatpush1.msra.mxu0 0.0
      %3177 = vmatprep.subr.mxu0 0.0
      %3178 = vmatpush1.msra.mxu0 0.0
      %3179 = vmatprep.subr.mxu0 0.0
      %3180 = vmatpush1.msra.mxu0 0.0
      %3181 = vmatprep.subr.mxu0 0.0
      %3182 = vmatpush1.msra.mxu0 0.0
      %3183 = vmatprep.subr.mxu0 0.0
      %3184 = vmatpush1.msra.mxu0 0.0
      %3185 = vmatprep.subr.mxu0 0.0
      %3186 = vmatpush1.msra.mxu0 0.0
      %3187 = vmatprep.subr.mxu0 0.0
      %3188 = vmatpush1.msra.mxu0 0.0
      %3189 = vmatprep.subr.mxu0 0.0
      %3190 = vmatpush1.msra.mxu0 0.0
      %3191 = vmatprep.subr.mxu0 0.0
      %3192 = vmatpush1.msra.mxu0 0.0
      %3193 = vmatprep.subr.mxu0 0.0
      %3194 = vmatpush1.msra.mxu0 0.0
      %3195 = vmatprep.subr.mxu0 0.0
      %3196 = vmatpush1.msra.mxu0 0.0
      %3197 = vmatprep.subr.mxu0 0.0
      %3198 = vmatpush1.msra.mxu0 0.0
      %3199 = vmatprep.subr.mxu0 0.0
      %3200 = vmatpush1.msra.mxu0 0.0
      %3201 = vmatprep.subr.mxu0 0.0
      %3202 = vmatpush1.msra.mxu0 0.0
      %3203 = vmatprep.subr.mxu0 0.0
      %3204 = vmatpush1.msra.mxu0 0.0
      %3205 = vmatprep.subr.mxu0 0.0
      %3206 = vmatpush1.msra.mxu0 0.0
      %3207 = vmatprep.subr.mxu0 0.0
      %3208 = vmatpush1.msra.mxu0 0.0
      %3209 = vmatprep.subr.mxu0 0.0
      %3210 = vmatpush1.msra.mxu0 0.0
      %3211 = vmatprep.mubr.f32.mxu0 0.0
      %3212 = vmatmul.mubr.f32.gmra.mrb[0].mxu0 %v3145
      %v3213 = vpop.f32.mrb[0].mxu0
      %v3214 = vadd.f32 0.0, %v3213
      %v3215 = vpop.f32.mrb[0].mxu0
      %v3216 = vadd.f32 0.0, %v3215
      %3217 = vdwg.mxu0
      %v3218 = vadd.f32 %v3134, %v3214
      %v3219 = vadd.f32 %v3135, %v3216
      %3220 = vrot.lane.b32.xlu0 %v2556, 94
      %v3221 = vpop.permute.xlu0 %3220
      %3222 = vrot.lane.b32.xlu0 %v2557, 94
      %v3223 = vpop.permute.xlu0 %3222
      %v3224 = vsel %vm1369, %v3221, %v3223
      %v3225 = vsel %vm1369, %v3223, %v3221
      %s3226 = scalar_lea.vmem %s3, 64
      %v3227 = vld [vmem:[%s3226] sm:$0xff]
      %v3229 = vsel %vm2567, %v3227, 0
      %3231 = vmatprep.subr.mxu0 %v3225
      %3232 = vmatpush1.msra.mxu0 %v3224
      %3233 = vmatprep.subr.mxu0 0.0
      %3234 = vmatpush1.msra.mxu0 0.0
      %3235 = vmatprep.subr.mxu0 0.0
      %3236 = vmatpush1.msra.mxu0 0.0
      %3237 = vmatprep.subr.mxu0 0.0
      %3238 = vmatpush1.msra.mxu0 0.0
      %3239 = vmatprep.subr.mxu0 0.0
      %3240 = vmatpush1.msra.mxu0 0.0
      %3241 = vmatprep.subr.mxu0 0.0
      %3242 = vmatpush1.msra.mxu0 0.0
      %3243 = vmatprep.subr.mxu0 0.0
      %3244 = vmatpush1.msra.mxu0 0.0
      %3245 = vmatprep.subr.mxu0 0.0
      %3246 = vmatpush1.msra.mxu0 0.0
      %3247 = vmatprep.subr.mxu0 0.0
      %3248 = vmatpush1.msra.mxu0 0.0
      %3249 = vmatprep.subr.mxu0 0.0
      %3250 = vmatpush1.msra.mxu0 0.0
      %3251 = vmatprep.subr.mxu0 0.0
      %3252 = vmatpush1.msra.mxu0 0.0
      %3253 = vmatprep.subr.mxu0 0.0
      %3254 = vmatpush1.msra.mxu0 0.0
      %3255 = vmatprep.subr.mxu0 0.0
      %3256 = vmatpush1.msra.mxu0 0.0
      %3257 = vmatprep.subr.mxu0 0.0
      %3258 = vmatpush1.msra.mxu0 0.0
      %3259 = vmatprep.subr.mxu0 0.0
      %3260 = vmatpush1.msra.mxu0 0.0
      %3261 = vmatprep.subr.mxu0 0.0
      %3262 = vmatpush1.msra.mxu0 0.0
      %3263 = vmatprep.subr.mxu0 0.0
      %3264 = vmatpush1.msra.mxu0 0.0
      %3265 = vmatprep.subr.mxu0 0.0
      %3266 = vmatpush1.msra.mxu0 0.0
      %3267 = vmatprep.subr.mxu0 0.0
      %3268 = vmatpush1.msra.mxu0 0.0
      %3269 = vmatprep.subr.mxu0 0.0
      %3270 = vmatpush1.msra.mxu0 0.0
      %3271 = vmatprep.subr.mxu0 0.0
      %3272 = vmatpush1.msra.mxu0 0.0
      %3273 = vmatprep.subr.mxu0 0.0
      %3274 = vmatpush1.msra.mxu0 0.0
      %3275 = vmatprep.subr.mxu0 0.0
      %3276 = vmatpush1.msra.mxu0 0.0
      %3277 = vmatprep.subr.mxu0 0.0
      %3278 = vmatpush1.msra.mxu0 0.0
      %3279 = vmatprep.subr.mxu0 0.0
      %3280 = vmatpush1.msra.mxu0 0.0
      %3281 = vmatprep.subr.mxu0 0.0
      %3282 = vmatpush1.msra.mxu0 0.0
      %3283 = vmatprep.subr.mxu0 0.0
      %3284 = vmatpush1.msra.mxu0 0.0
      %3285 = vmatprep.subr.mxu0 0.0
      %3286 = vmatpush1.msra.mxu0 0.0
      %3287 = vmatprep.subr.mxu0 0.0
      %3288 = vmatpush1.msra.mxu0 0.0
      %3289 = vmatprep.subr.mxu0 0.0
      %3290 = vmatpush1.msra.mxu0 0.0
      %3291 = vmatprep.subr.mxu0 0.0
      %3292 = vmatpush1.msra.mxu0 0.0
      %3293 = vmatprep.subr.mxu0 0.0
      %3294 = vmatpush1.msra.mxu0 0.0
      %3295 = vmatprep.mubr.f32.mxu0 0.0
      %3296 = vmatmul.mubr.f32.gmra.mrb[0].mxu0 %v3229
      %v3297 = vpop.f32.mrb[0].mxu0
      %v3298 = vadd.f32 0.0, %v3297
      %v3299 = vpop.f32.mrb[0].mxu0
      %v3300 = vadd.f32 0.0, %v3299
      %3301 = vdwg.mxu0
      %v3302 = vadd.f32 %v3218, %v3298
      %v3303 = vadd.f32 %v3219, %v3300
      %v3304 = vld [vmem:[%s4] sm:$0xff]
      %3306 = vset.pattern.permute.xlu0 0
      %3307 = vperm.xlu0 %3306, %v3304
      %v3308 = vpop.permute.xlu0 %3307
      %v3310 = vadd.f32 %v3302, %v3308
      %v3311 = vadd.f32 %v3303, %v3308
      %v3312 = vmax.f32 %v3310, 0.0
      %v3313 = vmax.f32 %v3311, 0.0
      %v3314 = vld [vmem:[%s5] sm:$0x7]
      %3315 = vrot.lane.b32.xlu0 %v3312, 127
      %v3316 = vpop.permute.xlu0 %3315
      %3317 = vrot.lane.b32.xlu0 %v3313, 127
      %v3318 = vpop.permute.xlu0 %3317
      %v3319 = vsel %vm290, %v3316, %v3318
      %v3320 = vsel %vm290, %v3318, %v3316
      %s3321 = scalar_lea.vmem %s5, 4
      %v3322 = vld [vmem:[%s3321] sm:$0x7]
      %v3324 = vsel %vm2567, %v3322, 0
      %3326 = vmatprep.subr.mxu0 %v3320
      %3327 = vmatpush1.msra.mxu0 %v3319
      %3328 = vmatprep.subr.mxu0 0.0
      %3329 = vmatpush1.msra.mxu0 0.0
      %3330 = vmatprep.subr.mxu0 0.0
      %3331 = vmatpush1.msra.mxu0 0.0
      %3332 = vmatprep.subr.mxu0 0.0
      %3333 = vmatpush1.msra.mxu0 0.0
      %3334 = vmatprep.subr.mxu0 0.0
      %3335 = vmatpush1.msra.mxu0 0.0
      %3336 = vmatprep.subr.mxu0 0.0
      %3337 = vmatpush1.msra.mxu0 0.0
      %3338 = vmatprep.subr.mxu0 0.0
      %3339 = vmatpush1.msra.mxu0 0.0
      %3340 = vmatprep.subr.mxu0 0.0
      %3341 = vmatpush1.msra.mxu0 0.0
      %3342 = vmatprep.subr.mxu0 0.0
      %3343 = vmatpush1.msra.mxu0 0.0
      %3344 = vmatprep.subr.mxu0 0.0
      %3345 = vmatpush1.msra.mxu0 0.0
      %3346 = vmatprep.subr.mxu0 0.0
      %3347 = vmatpush1.msra.mxu0 0.0
      %3348 = vmatprep.subr.mxu0 0.0
      %3349 = vmatpush1.msra.mxu0 0.0
      %3350 = vmatprep.subr.mxu0 0.0
      %3351 = vmatpush1.msra.mxu0 0.0
      %3352 = vmatprep.subr.mxu0 0.0
      %3353 = vmatpush1.msra.mxu0 0.0
      %3354 = vmatprep.subr.mxu0 0.0
      %3355 = vmatpush1.msra.mxu0 0.0
      %3356 = vmatprep.subr.mxu0 0.0
      %3357 = vmatpush1.msra.mxu0 0.0
      %3358 = vmatprep.subr.mxu0 0.0
      %3359 = vmatpush1.msra.mxu0 0.0
      %3360 = vmatprep.subr.mxu0 0.0
      %3361 = vmatpush1.msra.mxu0 0.0
      %3362 = vmatprep.subr.mxu0 0.0
      %3363 = vmatpush1.msra.mxu0 0.0
      %3364 = vmatprep.subr.mxu0 0.0
      %3365 = vmatpush1.msra.mxu0 0.0
      %3366 = vmatprep.subr.mxu0 0.0
      %3367 = vmatpush1.msra.mxu0 0.0
      %3368 = vmatprep.subr.mxu0 0.0
      %3369 = vmatpush1.msra.mxu0 0.0
      %3370 = vmatprep.subr.mxu0 0.0
      %3371 = vmatpush1.msra.mxu0 0.0
      %3372 = vmatprep.subr.mxu0 0.0
      %3373 = vmatpush1.msra.mxu0 0.0
      %3374 = vmatprep.subr.mxu0 0.0
      %3375 = vmatpush1.msra.mxu0 0.0
      %3376 = vmatprep.subr.mxu0 0.0
      %3377 = vmatpush1.msra.mxu0 0.0
      %3378 = vmatprep.subr.mxu0 0.0
      %3379 = vmatpush1.msra.mxu0 0.0
      %3380 = vmatprep.subr.mxu0 0.0
      %3381 = vmatpush1.msra.mxu0 0.0
      %3382 = vmatprep.subr.mxu0 0.0
      %3383 = vmatpush1.msra.mxu0 0.0
      %3384 = vmatprep.subr.mxu0 0.0
      %3385 = vmatpush1.msra.mxu0 0.0
      %3386 = vmatprep.subr.mxu0 0.0
      %3387 = vmatpush1.msra.mxu0 0.0
      %3388 = vmatprep.subr.mxu0 0.0
      %3389 = vmatpush1.msra.mxu0 0.0
      %3390 = vmatprep.mubr.f32.mxu0 0.0
      %3391 = vmatmul.mubr.f32.gmra.mrb[0].mxu0 %v3324
      %v3392 = vpop.f32.mrb[0].mxu0
      %v3393 = vadd.f32 0.0, %v3392
      %v3394 = vpop.f32.mrb[0].mxu0
      %v3395 = vadd.f32 0.0, %v3394
      %3396 = vdwg.mxu0
      %v3398 = vsel %vm2567, %v3314, 0
      %3400 = vmatprep.subr.mxu0 %v3313
      %3401 = vmatpush1.msra.mxu0 %v3312
      %3402 = vmatprep.subr.mxu0 0.0
      %3403 = vmatpush1.msra.mxu0 0.0
      %3404 = vmatprep.subr.mxu0 0.0
      %3405 = vmatpush1.msra.mxu0 0.0
      %3406 = vmatprep.subr.mxu0 0.0
      %3407 = vmatpush1.msra.mxu0 0.0
      %3408 = vmatprep.subr.mxu0 0.0
      %3409 = vmatpush1.msra.mxu0 0.0
      %3410 = vmatprep.subr.mxu0 0.0
      %3411 = vmatpush1.msra.mxu0 0.0
      %3412 = vmatprep.subr.mxu0 0.0
      %3413 = vmatpush1.msra.mxu0 0.0
      %3414 = vmatprep.subr.mxu0 0.0
      %3415 = vmatpush1.msra.mxu0 0.0
      %3416 = vmatprep.subr.mxu0 0.0
      %3417 = vmatpush1.msra.mxu0 0.0
      %3418 = vmatprep.subr.mxu0 0.0
      %3419 = vmatpush1.msra.mxu0 0.0
      %3420 = vmatprep.subr.mxu0 0.0
      %3421 = vmatpush1.msra.mxu0 0.0
      %3422 = vmatprep.subr.mxu0 0.0
      %3423 = vmatpush1.msra.mxu0 0.0
      %3424 = vmatprep.subr.mxu0 0.0
      %3425 = vmatpush1.msra.mxu0 0.0
      %3426 = vmatprep.subr.mxu0 0.0
      %3427 = vmatpush1.msra.mxu0 0.0
      %3428 = vmatprep.subr.mxu0 0.0
      %3429 = vmatpush1.msra.mxu0 0.0
      %3430 = vmatprep.subr.mxu0 0.0
      %3431 = vmatpush1.msra.mxu0 0.0
      %3432 = vmatprep.subr.mxu0 0.0
      %3433 = vmatpush1.msra.mxu0 0.0
      %3434 = vmatprep.subr.mxu0 0.0
      %3435 = vmatpush1.msra.mxu0 0.0
      %3436 = vmatprep.subr.mxu0 0.0
      %3437 = vmatpush1.msra.mxu0 0.0
      %3438 = vmatprep.subr.mxu0 0.0
      %3439 = vmatpush1.msra.mxu0 0.0
      %3440 = vmatprep.subr.mxu0 0.0
      %3441 = vmatpush1.msra.mxu0 0.0
      %3442 = vmatprep.subr.mxu0 0.0
      %3443 = vmatpush1.msra.mxu0 0.0
      %3444 = vmatprep.subr.mxu0 0.0
      %3445 = vmatpush1.msra.mxu0 0.0
      %3446 = vmatprep.subr.mxu0 0.0
      %3447 = vmatpush1.msra.mxu0 0.0
      %3448 = vmatprep.subr.mxu0 0.0
      %3449 = vmatpush1.msra.mxu0 0.0
      %3450 = vmatprep.subr.mxu0 0.0
      %3451 = vmatpush1.msra.mxu0 0.0
      %3452 = vmatprep.subr.mxu0 0.0
      %3453 = vmatpush1.msra.mxu0 0.0
      %3454 = vmatprep.subr.mxu0 0.0
      %3455 = vmatpush1.msra.mxu0 0.0
      %3456 = vmatprep.subr.mxu0 0.0
      %3457 = vmatpush1.msra.mxu0 0.0
      %3458 = vmatprep.subr.mxu0 0.0
      %3459 = vmatpush1.msra.mxu0 0.0
      %3460 = vmatprep.subr.mxu0 0.0
      %3461 = vmatpush1.msra.mxu0 0.0
      %3462 = vmatprep.subr.mxu0 0.0
      %3463 = vmatpush1.msra.mxu0 0.0
      %3464 = vmatprep.mubr.f32.mxu0 0.0
      %3465 = vmatmul.mubr.f32.gmra.mrb[0].mxu0 %v3398
      %v3466 = vpop.f32.mrb[0].mxu0
      %v3467 = vadd.f32 %v3393, %v3466
      %v3468 = vpop.f32.mrb[0].mxu0
      %v3469 = vadd.f32 %v3395, %v3468
      %3470 = vdwg.mxu0
      %3471 = vrot.lane.b32.xlu0 %v3312, 126
      %v3472 = vpop.permute.xlu0 %3471
      %3473 = vrot.lane.b32.xlu0 %v3313, 126
      %v3474 = vpop.permute.xlu0 %3473
      %v3475 = vsel %vm459, %v3472, %v3474
      %v3476 = vsel %vm459, %v3474, %v3472
      %s3477 = scalar_lea.vmem %s5, 8
      %v3478 = vld [vmem:[%s3477] sm:$0x7]
      %v3480 = vsel %vm2567, %v3478, 0
      %3482 = vmatprep.subr.mxu0 %v3476
      %3483 = vmatpush1.msra.mxu0 %v3475
      %3484 = vmatprep.subr.mxu0 0.0
      %3485 = vmatpush1.msra.mxu0 0.0
      %3486 = vmatprep.subr.mxu0 0.0
      %3487 = vmatpush1.msra.mxu0 0.0
      %3488 = vmatprep.subr.mxu0 0.0
      %3489 = vmatpush1.msra.mxu0 0.0
      %3490 = vmatprep.subr.mxu0 0.0
      %3491 = vmatpush1.msra.mxu0 0.0
      %3492 = vmatprep.subr.mxu0 0.0
      %3493 = vmatpush1.msra.mxu0 0.0
      %3494 = vmatprep.subr.mxu0 0.0
      %3495 = vmatpush1.msra.mxu0 0.0
      %3496 = vmatprep.subr.mxu0 0.0
      %3497 = vmatpush1.msra.mxu0 0.0
      %3498 = vmatprep.subr.mxu0 0.0
      %3499 = vmatpush1.msra.mxu0 0.0
      %3500 = vmatprep.subr.mxu0 0.0
      %3501 = vmatpush1.msra.mxu0 0.0
      %3502 = vmatprep.subr.mxu0 0.0
      %3503 = vmatpush1.msra.mxu0 0.0
      %3504 = vmatprep.subr.mxu0 0.0
      %3505 = vmatpush1.msra.mxu0 0.0
      %3506 = vmatprep.subr.mxu0 0.0
      %3507 = vmatpush1.msra.mxu0 0.0
      %3508 = vmatprep.subr.mxu0 0.0
      %3509 = vmatpush1.msra.mxu0 0.0
      %3510 = vmatprep.subr.mxu0 0.0
      %3511 = vmatpush1.msra.mxu0 0.0
      %3512 = vmatprep.subr.mxu0 0.0
      %3513 = vmatpush1.msra.mxu0 0.0
      %3514 = vmatprep.subr.mxu0 0.0
      %3515 = vmatpush1.msra.mxu0 0.0
      %3516 = vmatprep.subr.mxu0 0.0
      %3517 = vmatpush1.msra.mxu0 0.0
      %3518 = vmatprep.subr.mxu0 0.0
      %3519 = vmatpush1.msra.mxu0 0.0
      %3520 = vmatprep.subr.mxu0 0.0
      %3521 = vmatpush1.msra.mxu0 0.0
      %3522 = vmatprep.subr.mxu0 0.0
      %3523 = vmatpush1.msra.mxu0 0.0
      %3524 = vmatprep.subr.mxu0 0.0
      %3525 = vmatpush1.msra.mxu0 0.0
      %3526 = vmatprep.subr.mxu0 0.0
      %3527 = vmatpush1.msra.mxu0 0.0
      %3528 = vmatprep.subr.mxu0 0.0
      %3529 = vmatpush1.msra.mxu0 0.0
      %3530 = vmatprep.subr.mxu0 0.0
      %3531 = vmatpush1.msra.mxu0 0.0
      %3532 = vmatprep.subr.mxu0 0.0
      %3533 = vmatpush1.msra.mxu0 0.0
      %3534 = vmatprep.subr.mxu0 0.0
      %3535 = vmatpush1.msra.mxu0 0.0
      %3536 = vmatprep.subr.mxu0 0.0
      %3537 = vmatpush1.msra.mxu0 0.0
      %3538 = vmatprep.subr.mxu0 0.0
      %3539 = vmatpush1.msra.mxu0 0.0
      %3540 = vmatprep.subr.mxu0 0.0
      %3541 = vmatpush1.msra.mxu0 0.0
      %3542 = vmatprep.subr.mxu0 0.0
      %3543 = vmatpush1.msra.mxu0 0.0
      %3544 = vmatprep.subr.mxu0 0.0
      %3545 = vmatpush1.msra.mxu0 0.0
      %3546 = vmatprep.mubr.f32.mxu0 0.0
      %3547 = vmatmul.mubr.f32.gmra.mrb[0].mxu0 %v3480
      %v3548 = vpop.f32.mrb[0].mxu0
      %v3549 = vadd.f32 0.0, %v3548
      %v3550 = vpop.f32.mrb[0].mxu0
      %v3551 = vadd.f32 0.0, %v3550
      %3552 = vdwg.mxu0
      %v3553 = vadd.f32 %v3467, %v3549
      %v3554 = vadd.f32 %v3469, %v3551
      %3555 = vrot.lane.b32.xlu0 %v3312, 112
      %v3556 = vpop.permute.xlu0 %3555
      %3557 = vrot.lane.b32.xlu0 %v3313, 112
      %v3558 = vpop.permute.xlu0 %3557
      %v3559 = vsel %vm732, %v3556, %v3558
      %v3560 = vsel %vm732, %v3558, %v3556
      %s3561 = scalar_lea.vmem %s5, 12
      %v3562 = vld [vmem:[%s3561] sm:$0x7]
      %v3564 = vsel %vm2567, %v3562, 0
      %3566 = vmatprep.subr.mxu0 %v3560
      %3567 = vmatpush1.msra.mxu0 %v3559
      %3568 = vmatprep.subr.mxu0 0.0
      %3569 = vmatpush1.msra.mxu0 0.0
      %3570 = vmatprep.subr.mxu0 0.0
      %3571 = vmatpush1.msra.mxu0 0.0
      %3572 = vmatprep.subr.mxu0 0.0
      %3573 = vmatpush1.msra.mxu0 0.0
      %3574 = vmatprep.subr.mxu0 0.0
      %3575 = vmatpush1.msra.mxu0 0.0
      %3576 = vmatprep.subr.mxu0 0.0
      %3577 = vmatpush1.msra.mxu0 0.0
      %3578 = vmatprep.subr.mxu0 0.0
      %3579 = vmatpush1.msra.mxu0 0.0
      %3580 = vmatprep.subr.mxu0 0.0
      %3581 = vmatpush1.msra.mxu0 0.0
      %3582 = vmatprep.subr.mxu0 0.0
      %3583 = vmatpush1.msra.mxu0 0.0
      %3584 = vmatprep.subr.mxu0 0.0
      %3585 = vmatpush1.msra.mxu0 0.0
      %3586 = vmatprep.subr.mxu0 0.0
      %3587 = vmatpush1.msra.mxu0 0.0
      %3588 = vmatprep.subr.mxu0 0.0
      %3589 = vmatpush1.msra.mxu0 0.0
      %3590 = vmatprep.subr.mxu0 0.0
      %3591 = vmatpush1.msra.mxu0 0.0
      %3592 = vmatprep.subr.mxu0 0.0
      %3593 = vmatpush1.msra.mxu0 0.0
      %3594 = vmatprep.subr.mxu0 0.0
      %3595 = vmatpush1.msra.mxu0 0.0
      %3596 = vmatprep.subr.mxu0 0.0
      %3597 = vmatpush1.msra.mxu0 0.0
      %3598 = vmatprep.subr.mxu0 0.0
      %3599 = vmatpush1.msra.mxu0 0.0
      %3600 = vmatprep.subr.mxu0 0.0
      %3601 = vmatpush1.msra.mxu0 0.0
      %3602 = vmatprep.subr.mxu0 0.0
      %3603 = vmatpush1.msra.mxu0 0.0
      %3604 = vmatprep.subr.mxu0 0.0
      %3605 = vmatpush1.msra.mxu0 0.0
      %3606 = vmatprep.subr.mxu0 0.0
      %3607 = vmatpush1.msra.mxu0 0.0
      %3608 = vmatprep.subr.mxu0 0.0
      %3609 = vmatpush1.msra.mxu0 0.0
      %3610 = vmatprep.subr.mxu0 0.0
      %3611 = vmatpush1.msra.mxu0 0.0
      %3612 = vmatprep.subr.mxu0 0.0
      %3613 = vmatpush1.msra.mxu0 0.0
      %3614 = vmatprep.subr.mxu0 0.0
      %3615 = vmatpush1.msra.mxu0 0.0
      %3616 = vmatprep.subr.mxu0 0.0
      %3617 = vmatpush1.msra.mxu0 0.0
      %3618 = vmatprep.subr.mxu0 0.0
      %3619 = vmatpush1.msra.mxu0 0.0
      %3620 = vmatprep.subr.mxu0 0.0
      %3621 = vmatpush1.msra.mxu0 0.0
      %3622 = vmatprep.subr.mxu0 0.0
      %3623 = vmatpush1.msra.mxu0 0.0
      %3624 = vmatprep.subr.mxu0 0.0
      %3625 = vmatpush1.msra.mxu0 0.0
      %3626 = vmatprep.subr.mxu0 0.0
      %3627 = vmatpush1.msra.mxu0 0.0
      %3628 = vmatprep.subr.mxu0 0.0
      %3629 = vmatpush1.msra.mxu0 0.0
      %3630 = vmatprep.mubr.f32.mxu0 0.0
      %3631 = vmatmul.mubr.f32.gmra.mrb[0].mxu0 %v3564
      %v3632 = vpop.f32.mrb[0].mxu0
      %v3633 = vadd.f32 0.0, %v3632
      %v3634 = vpop.f32.mrb[0].mxu0
      %v3635 = vadd.f32 0.0, %v3634
      %3636 = vdwg.mxu0
      %v3637 = vadd.f32 %v3553, %v3633
      %v3638 = vadd.f32 %v3554, %v3635
      %3639 = vrot.lane.b32.xlu0 %v3312, 111
      %v3640 = vpop.permute.xlu0 %3639
      %3641 = vrot.lane.b32.xlu0 %v3313, 111
      %v3642 = vpop.permute.xlu0 %3641
      %v3643 = vsel %vm823, %v3640, %v3642
      %v3644 = vsel %vm823, %v3642, %v3640
      %s3645 = scalar_lea.vmem %s5, 16
      %v3646 = vld [vmem:[%s3645] sm:$0x7]
      %v3648 = vsel %vm2567, %v3646, 0
      %3650 = vmatprep.subr.mxu0 %v3644
      %3651 = vmatpush1.msra.mxu0 %v3643
      %3652 = vmatprep.subr.mxu0 0.0
      %3653 = vmatpush1.msra.mxu0 0.0
      %3654 = vmatprep.subr.mxu0 0.0
      %3655 = vmatpush1.msra.mxu0 0.0
      %3656 = vmatprep.subr.mxu0 0.0
      %3657 = vmatpush1.msra.mxu0 0.0
      %3658 = vmatprep.subr.mxu0 0.0
      %3659 = vmatpush1.msra.mxu0 0.0
      %3660 = vmatprep.subr.mxu0 0.0
      %3661 = vmatpush1.msra.mxu0 0.0
      %3662 = vmatprep.subr.mxu0 0.0
      %3663 = vmatpush1.msra.mxu0 0.0
      %3664 = vmatprep.subr.mxu0 0.0
      %3665 = vmatpush1.msra.mxu0 0.0
      %3666 = vmatprep.subr.mxu0 0.0
      %3667 = vmatpush1.msra.mxu0 0.0
      %3668 = vmatprep.subr.mxu0 0.0
      %3669 = vmatpush1.msra.mxu0 0.0
      %3670 = vmatprep.subr.mxu0 0.0
      %3671 = vmatpush1.msra.mxu0 0.0
      %3672 = vmatprep.subr.mxu0 0.0
      %3673 = vmatpush1.msra.mxu0 0.0
      %3674 = vmatprep.subr.mxu0 0.0
      %3675 = vmatpush1.msra.mxu0 0.0
      %3676 = vmatprep.subr.mxu0 0.0
      %3677 = vmatpush1.msra.mxu0 0.0
      %3678 = vmatprep.subr.mxu0 0.0
      %3679 = vmatpush1.msra.mxu0 0.0
      %3680 = vmatprep.subr.mxu0 0.0
      %3681 = vmatpush1.msra.mxu0 0.0
      %3682 = vmatprep.subr.mxu0 0.0
      %3683 = vmatpush1.msra.mxu0 0.0
      %3684 = vmatprep.subr.mxu0 0.0
      %3685 = vmatpush1.msra.mxu0 0.0
      %3686 = vmatprep.subr.mxu0 0.0
      %3687 = vmatpush1.msra.mxu0 0.0
      %3688 = vmatprep.subr.mxu0 0.0
      %3689 = vmatpush1.msra.mxu0 0.0
      %3690 = vmatprep.subr.mxu0 0.0
      %3691 = vmatpush1.msra.mxu0 0.0
      %3692 = vmatprep.subr.mxu0 0.0
      %3693 = vmatpush1.msra.mxu0 0.0
      %3694 = vmatprep.subr.mxu0 0.0
      %3695 = vmatpush1.msra.mxu0 0.0
      %3696 = vmatprep.subr.mxu0 0.0
      %3697 = vmatpush1.msra.mxu0 0.0
      %3698 = vmatprep.subr.mxu0 0.0
      %3699 = vmatpush1.msra.mxu0 0.0
      %3700 = vmatprep.subr.mxu0 0.0
      %3701 = vmatpush1.msra.mxu0 0.0
      %3702 = vmatprep.subr.mxu0 0.0
      %3703 = vmatpush1.msra.mxu0 0.0
      %3704 = vmatprep.subr.mxu0 0.0
      %3705 = vmatpush1.msra.mxu0 0.0
      %3706 = vmatprep.subr.mxu0 0.0
      %3707 = vmatpush1.msra.mxu0 0.0
      %3708 = vmatprep.subr.mxu0 0.0
      %3709 = vmatpush1.msra.mxu0 0.0
      %3710 = vmatprep.subr.mxu0 0.0
      %3711 = vmatpush1.msra.mxu0 0.0
      %3712 = vmatprep.subr.mxu0 0.0
      %3713 = vmatpush1.msra.mxu0 0.0
      %3714 = vmatprep.mubr.f32.mxu0 0.0
      %3715 = vmatmul.mubr.f32.gmra.mrb[0].mxu0 %v3648
      %v3716 = vpop.f32.mrb[0].mxu0
      %v3717 = vadd.f32 0.0, %v3716
      %v3718 = vpop.f32.mrb[0].mxu0
      %v3719 = vadd.f32 0.0, %v3718
      %3720 = vdwg.mxu0
      %v3721 = vadd.f32 %v3637, %v3717
      %v3722 = vadd.f32 %v3638, %v3719
      %3723 = vrot.lane.b32.xlu0 %v3312, 110
      %v3724 = vpop.permute.xlu0 %3723
      %3725 = vrot.lane.b32.xlu0 %v3313, 110
      %v3726 = vpop.permute.xlu0 %3725
      %v3727 = vsel %vm914, %v3724, %v3726
      %v3728 = vsel %vm914, %v3726, %v3724
      %s3729 = scalar_lea.vmem %s5, 20
      %v3730 = vld [vmem:[%s3729] sm:$0x7]
      %v3732 = vsel %vm2567, %v3730, 0
      %3734 = vmatprep.subr.mxu0 %v3728
      %3735 = vmatpush1.msra.mxu0 %v3727
      %3736 = vmatprep.subr.mxu0 0.0
      %3737 = vmatpush1.msra.mxu0 0.0
      %3738 = vmatprep.subr.mxu0 0.0
      %3739 = vmatpush1.msra.mxu0 0.0
      %3740 = vmatprep.subr.mxu0 0.0
      %3741 = vmatpush1.msra.mxu0 0.0
      %3742 = vmatprep.subr.mxu0 0.0
      %3743 = vmatpush1.msra.mxu0 0.0
      %3744 = vmatprep.subr.mxu0 0.0
      %3745 = vmatpush1.msra.mxu0 0.0
      %3746 = vmatprep.subr.mxu0 0.0
      %3747 = vmatpush1.msra.mxu0 0.0
      %3748 = vmatprep.subr.mxu0 0.0
      %3749 = vmatpush1.msra.mxu0 0.0
      %3750 = vmatprep.subr.mxu0 0.0
      %3751 = vmatpush1.msra.mxu0 0.0
      %3752 = vmatprep.subr.mxu0 0.0
      %3753 = vmatpush1.msra.mxu0 0.0
      %3754 = vmatprep.subr.mxu0 0.0
      %3755 = vmatpush1.msra.mxu0 0.0
      %3756 = vmatprep.subr.mxu0 0.0
      %3757 = vmatpush1.msra.mxu0 0.0
      %3758 = vmatprep.subr.mxu0 0.0
      %3759 = vmatpush1.msra.mxu0 0.0
      %3760 = vmatprep.subr.mxu0 0.0
      %3761 = vmatpush1.msra.mxu0 0.0
      %3762 = vmatprep.subr.mxu0 0.0
      %3763 = vmatpush1.msra.mxu0 0.0
      %3764 = vmatprep.subr.mxu0 0.0
      %3765 = vmatpush1.msra.mxu0 0.0
      %3766 = vmatprep.subr.mxu0 0.0
      %3767 = vmatpush1.msra.mxu0 0.0
      %3768 = vmatprep.subr.mxu0 0.0
      %3769 = vmatpush1.msra.mxu0 0.0
      %3770 = vmatprep.subr.mxu0 0.0
      %3771 = vmatpush1.msra.mxu0 0.0
      %3772 = vmatprep.subr.mxu0 0.0
      %3773 = vmatpush1.msra.mxu0 0.0
      %3774 = vmatprep.subr.mxu0 0.0
      %3775 = vmatpush1.msra.mxu0 0.0
      %3776 = vmatprep.subr.mxu0 0.0
      %3777 = vmatpush1.msra.mxu0 0.0
      %3778 = vmatprep.subr.mxu0 0.0
      %3779 = vmatpush1.msra.mxu0 0.0
      %3780 = vmatprep.subr.mxu0 0.0
      %3781 = vmatpush1.msra.mxu0 0.0
      %3782 = vmatprep.subr.mxu0 0.0
      %3783 = vmatpush1.msra.mxu0 0.0
      %3784 = vmatprep.subr.mxu0 0.0
      %3785 = vmatpush1.msra.mxu0 0.0
      %3786 = vmatprep.subr.mxu0 0.0
      %3787 = vmatpush1.msra.mxu0 0.0
      %3788 = vmatprep.subr.mxu0 0.0
      %3789 = vmatpush1.msra.mxu0 0.0
      %3790 = vmatprep.subr.mxu0 0.0
      %3791 = vmatpush1.msra.mxu0 0.0
      %3792 = vmatprep.subr.mxu0 0.0
      %3793 = vmatpush1.msra.mxu0 0.0
      %3794 = vmatprep.subr.mxu0 0.0
      %3795 = vmatpush1.msra.mxu0 0.0
      %3796 = vmatprep.subr.mxu0 0.0
      %3797 = vmatpush1.msra.mxu0 0.0
      %3798 = vmatprep.mubr.f32.mxu0 0.0
      %3799 = vmatmul.mubr.f32.gmra.mrb[0].mxu0 %v3732
      %v3800 = vpop.f32.mrb[0].mxu0
      %v3801 = vadd.f32 0.0, %v3800
      %v3802 = vpop.f32.mrb[0].mxu0
      %v3803 = vadd.f32 0.0, %v3802
      %3804 = vdwg.mxu0
      %v3805 = vadd.f32 %v3721, %v3801
      %v3806 = vadd.f32 %v3722, %v3803
      %3807 = vrot.lane.b32.xlu0 %v3312, 96
      %v3808 = vpop.permute.xlu0 %3807
      %3809 = vrot.lane.b32.xlu0 %v3313, 96
      %v3810 = vpop.permute.xlu0 %3809
      %v3811 = vsel %vm1187, %v3808, %v3810
      %v3812 = vsel %vm1187, %v3810, %v3808
      %s3813 = scalar_lea.vmem %s5, 24
      %v3814 = vld [vmem:[%s3813] sm:$0x7]
      %v3816 = vsel %vm2567, %v3814, 0
      %3818 = vmatprep.subr.mxu0 %v3812
      %3819 = vmatpush1.msra.mxu0 %v3811
      %3820 = vmatprep.subr.mxu0 0.0
      %3821 = vmatpush1.msra.mxu0 0.0
      %3822 = vmatprep.subr.mxu0 0.0
      %3823 = vmatpush1.msra.mxu0 0.0
      %3824 = vmatprep.subr.mxu0 0.0
      %3825 = vmatpush1.msra.mxu0 0.0
      %3826 = vmatprep.subr.mxu0 0.0
      %3827 = vmatpush1.msra.mxu0 0.0
      %3828 = vmatprep.subr.mxu0 0.0
      %3829 = vmatpush1.msra.mxu0 0.0
      %3830 = vmatprep.subr.mxu0 0.0
      %3831 = vmatpush1.msra.mxu0 0.0
      %3832 = vmatprep.subr.mxu0 0.0
      %3833 = vmatpush1.msra.mxu0 0.0
      %3834 = vmatprep.subr.mxu0 0.0
      %3835 = vmatpush1.msra.mxu0 0.0
      %3836 = vmatprep.subr.mxu0 0.0
      %3837 = vmatpush1.msra.mxu0 0.0
      %3838 = vmatprep.subr.mxu0 0.0
      %3839 = vmatpush1.msra.mxu0 0.0
      %3840 = vmatprep.subr.mxu0 0.0
      %3841 = vmatpush1.msra.mxu0 0.0
      %3842 = vmatprep.subr.mxu0 0.0
      %3843 = vmatpush1.msra.mxu0 0.0
      %3844 = vmatprep.subr.mxu0 0.0
      %3845 = vmatpush1.msra.mxu0 0.0
      %3846 = vmatprep.subr.mxu0 0.0
      %3847 = vmatpush1.msra.mxu0 0.0
      %3848 = vmatprep.subr.mxu0 0.0
      %3849 = vmatpush1.msra.mxu0 0.0
      %3850 = vmatprep.subr.mxu0 0.0
      %3851 = vmatpush1.msra.mxu0 0.0
      %3852 = vmatprep.subr.mxu0 0.0
      %3853 = vmatpush1.msra.mxu0 0.0
      %3854 = vmatprep.subr.mxu0 0.0
      %3855 = vmatpush1.msra.mxu0 0.0
      %3856 = vmatprep.subr.mxu0 0.0
      %3857 = vmatpush1.msra.mxu0 0.0
      %3858 = vmatprep.subr.mxu0 0.0
      %3859 = vmatpush1.msra.mxu0 0.0
      %3860 = vmatprep.subr.mxu0 0.0
      %3861 = vmatpush1.msra.mxu0 0.0
      %3862 = vmatprep.subr.mxu0 0.0
      %3863 = vmatpush1.msra.mxu0 0.0
      %3864 = vmatprep.subr.mxu0 0.0
      %3865 = vmatpush1.msra.mxu0 0.0
      %3866 = vmatprep.subr.mxu0 0.0
      %3867 = vmatpush1.msra.mxu0 0.0
      %3868 = vmatprep.subr.mxu0 0.0
      %3869 = vmatpush1.msra.mxu0 0.0
      %3870 = vmatprep.subr.mxu0 0.0
      %3871 = vmatpush1.msra.mxu0 0.0
      %3872 = vmatprep.subr.mxu0 0.0
      %3873 = vmatpush1.msra.mxu0 0.0
      %3874 = vmatprep.subr.mxu0 0.0
      %3875 = vmatpush1.msra.mxu0 0.0
      %3876 = vmatprep.subr.mxu0 0.0
      %3877 = vmatpush1.msra.mxu0 0.0
      %3878 = vmatprep.subr.mxu0 0.0
      %3879 = vmatpush1.msra.mxu0 0.0
      %3880 = vmatprep.subr.mxu0 0.0
      %3881 = vmatpush1.msra.mxu0 0.0
      %3882 = vmatprep.mubr.f32.mxu0 0.0
      %3883 = vmatmul.mubr.f32.gmra.mrb[0].mxu0 %v3816
      %v3884 = vpop.f32.mrb[0].mxu0
      %v3885 = vadd.f32 0.0, %v3884
      %v3886 = vpop.f32.mrb[0].mxu0
      %v3887 = vadd.f32 0.0, %v3886
      %3888 = vdwg.mxu0
      %v3889 = vadd.f32 %v3805, %v3885
      %v3890 = vadd.f32 %v3806, %v3887
      %3891 = vrot.lane.b32.xlu0 %v3312, 95
      %v3892 = vpop.permute.xlu0 %3891
      %3893 = vrot.lane.b32.xlu0 %v3313, 95
      %v3894 = vpop.permute.xlu0 %3893
      %v3895 = vsel %vm1278, %v3892, %v3894
      %v3896 = vsel %vm1278, %v3894, %v3892
      %s3897 = scalar_lea.vmem %s5, 28
      %v3898 = vld [vmem:[%s3897] sm:$0x7]
      %v3900 = vsel %vm2567, %v3898, 0
      %3902 = vmatprep.subr.mxu0 %v3896
      %3903 = vmatpush1.msra.mxu0 %v3895
      %3904 = vmatprep.subr.mxu0 0.0
      %3905 = vmatpush1.msra.mxu0 0.0
      %3906 = vmatprep.subr.mxu0 0.0
      %3907 = vmatpush1.msra.mxu0 0.0
      %3908 = vmatprep.subr.mxu0 0.0
      %3909 = vmatpush1.msra.mxu0 0.0
      %3910 = vmatprep.subr.mxu0 0.0
      %3911 = vmatpush1.msra.mxu0 0.0
      %3912 = vmatprep.subr.mxu0 0.0
      %3913 = vmatpush1.msra.mxu0 0.0
      %3914 = vmatprep.subr.mxu0 0.0
      %3915 = vmatpush1.msra.mxu0 0.0
      %3916 = vmatprep.subr.mxu0 0.0
      %3917 = vmatpush1.msra.mxu0 0.0
      %3918 = vmatprep.subr.mxu0 0.0
      %3919 = vmatpush1.msra.mxu0 0.0
      %3920 = vmatprep.subr.mxu0 0.0
      %3921 = vmatpush1.msra.mxu0 0.0
      %3922 = vmatprep.subr.mxu0 0.0
      %3923 = vmatpush1.msra.mxu0 0.0
      %3924 = vmatprep.subr.mxu0 0.0
      %3925 = vmatpush1.msra.mxu0 0.0
      %3926 = vmatprep.subr.mxu0 0.0
      %3927 = vmatpush1.msra.mxu0 0.0
      %3928 = vmatprep.subr.mxu0 0.0
      %3929 = vmatpush1.msra.mxu0 0.0
      %3930 = vmatprep.subr.mxu0 0.0
      %3931 = vmatpush1.msra.mxu0 0.0
      %3932 = vmatprep.subr.mxu0 0.0
      %3933 = vmatpush1.msra.mxu0 0.0
      %3934 = vmatprep.subr.mxu0 0.0
      %3935 = vmatpush1.msra.mxu0 0.0
      %3936 = vmatprep.subr.mxu0 0.0
      %3937 = vmatpush1.msra.mxu0 0.0
      %3938 = vmatprep.subr.mxu0 0.0
      %3939 = vmatpush1.msra.mxu0 0.0
      %3940 = vmatprep.subr.mxu0 0.0
      %3941 = vmatpush1.msra.mxu0 0.0
      %3942 = vmatprep.subr.mxu0 0.0
      %3943 = vmatpush1.msra.mxu0 0.0
      %3944 = vmatprep.subr.mxu0 0.0
      %3945 = vmatpush1.msra.mxu0 0.0
      %3946 = vmatprep.subr.mxu0 0.0
      %3947 = vmatpush1.msra.mxu0 0.0
      %3948 = vmatprep.subr.mxu0 0.0
      %3949 = vmatpush1.msra.mxu0 0.0
      %3950 = vmatprep.subr.mxu0 0.0
      %3951 = vmatpush1.msra.mxu0 0.0
      %3952 = vmatprep.subr.mxu0 0.0
      %3953 = vmatpush1.msra.mxu0 0.0
      %3954 = vmatprep.subr.mxu0 0.0
      %3955 = vmatpush1.msra.mxu0 0.0
      %3956 = vmatprep.subr.mxu0 0.0
      %3957 = vmatpush1.msra.mxu0 0.0
      %3958 = vmatprep.subr.mxu0 0.0
      %3959 = vmatpush1.msra.mxu0 0.0
      %3960 = vmatprep.subr.mxu0 0.0
      %3961 = vmatpush1.msra.mxu0 0.0
      %3962 = vmatprep.subr.mxu0 0.0
      %3963 = vmatpush1.msra.mxu0 0.0
      %3964 = vmatprep.subr.mxu0 0.0
      %3965 = vmatpush1.msra.mxu0 0.0
      %3966 = vmatprep.mubr.f32.mxu0 0.0
      %3967 = vmatmul.mubr.f32.gmra.mrb[0].mxu0 %v3900
      %v3968 = vpop.f32.mrb[0].mxu0
      %v3969 = vadd.f32 0.0, %v3968
      %v3970 = vpop.f32.mrb[0].mxu0
      %v3971 = vadd.f32 0.0, %v3970
      %3972 = vdwg.mxu0
      %v3973 = vadd.f32 %v3889, %v3969
      %v3974 = vadd.f32 %v3890, %v3971
      %3975 = vrot.lane.b32.xlu0 %v3312, 94
      %v3976 = vpop.permute.xlu0 %3975
      %3977 = vrot.lane.b32.xlu0 %v3313, 94
      %v3978 = vpop.permute.xlu0 %3977
      %v3979 = vsel %vm1369, %v3976, %v3978
      %v3980 = vsel %vm1369, %v3978, %v3976
      %s3981 = scalar_lea.vmem %s5, 32
      %v3982 = vld [vmem:[%s3981] sm:$0x7]
      %v3984 = vsel %vm2567, %v3982, 0
      %3986 = vmatprep.subr.mxu0 %v3980
      %3987 = vmatpush1.msra.mxu0 %v3979
      %3988 = vmatprep.subr.mxu0 0.0
      %3989 = vmatpush1.msra.mxu0 0.0
      %3990 = vmatprep.subr.mxu0 0.0
      %3991 = vmatpush1.msra.mxu0 0.0
      %3992 = vmatprep.subr.mxu0 0.0
      %3993 = vmatpush1.msra.mxu0 0.0
      %3994 = vmatprep.subr.mxu0 0.0
      %3995 = vmatpush1.msra.mxu0 0.0
      %3996 = vmatprep.subr.mxu0 0.0
      %3997 = vmatpush1.msra.mxu0 0.0
      %3998 = vmatprep.subr.mxu0 0.0
      %3999 = vmatpush1.msra.mxu0 0.0
      %4000 = vmatprep.subr.mxu0 0.0
      %4001 = vmatpush1.msra.mxu0 0.0
      %4002 = vmatprep.subr.mxu0 0.0
      %4003 = vmatpush1.msra.mxu0 0.0
      %4004 = vmatprep.subr.mxu0 0.0
      %4005 = vmatpush1.msra.mxu0 0.0
      %4006 = vmatprep.subr.mxu0 0.0
      %4007 = vmatpush1.msra.mxu0 0.0
      %4008 = vmatprep.subr.mxu0 0.0
      %4009 = vmatpush1.msra.mxu0 0.0
      %4010 = vmatprep.subr.mxu0 0.0
      %4011 = vmatpush1.msra.mxu0 0.0
      %4012 = vmatprep.subr.mxu0 0.0
      %4013 = vmatpush1.msra.mxu0 0.0
      %4014 = vmatprep.subr.mxu0 0.0
      %4015 = vmatpush1.msra.mxu0 0.0
      %4016 = vmatprep.subr.mxu0 0.0
      %4017 = vmatpush1.msra.mxu0 0.0
      %4018 = vmatprep.subr.mxu0 0.0
      %4019 = vmatpush1.msra.mxu0 0.0
      %4020 = vmatprep.subr.mxu0 0.0
      %4021 = vmatpush1.msra.mxu0 0.0
      %4022 = vmatprep.subr.mxu0 0.0
      %4023 = vmatpush1.msra.mxu0 0.0
      %4024 = vmatprep.subr.mxu0 0.0
      %4025 = vmatpush1.msra.mxu0 0.0
      %4026 = vmatprep.subr.mxu0 0.0
      %4027 = vmatpush1.msra.mxu0 0.0
      %4028 = vmatprep.subr.mxu0 0.0
      %4029 = vmatpush1.msra.mxu0 0.0
      %4030 = vmatprep.subr.mxu0 0.0
      %4031 = vmatpush1.msra.mxu0 0.0
      %4032 = vmatprep.subr.mxu0 0.0
      %4033 = vmatpush1.msra.mxu0 0.0
      %4034 = vmatprep.subr.mxu0 0.0
      %4035 = vmatpush1.msra.mxu0 0.0
      %4036 = vmatprep.subr.mxu0 0.0
      %4037 = vmatpush1.msra.mxu0 0.0
      %4038 = vmatprep.subr.mxu0 0.0
      %4039 = vmatpush1.msra.mxu0 0.0
      %4040 = vmatprep.subr.mxu0 0.0
      %4041 = vmatpush1.msra.mxu0 0.0
      %4042 = vmatprep.subr.mxu0 0.0
      %4043 = vmatpush1.msra.mxu0 0.0
      %4044 = vmatprep.subr.mxu0 0.0
      %4045 = vmatpush1.msra.mxu0 0.0
      %4046 = vmatprep.subr.mxu0 0.0
      %4047 = vmatpush1.msra.mxu0 0.0
      %4048 = vmatprep.subr.mxu0 0.0
      %4049 = vmatpush1.msra.mxu0 0.0
      %4050 = vmatprep.mubr.f32.mxu0 0.0
      %4051 = vmatmul.mubr.f32.gmra.mrb[0].mxu0 %v3984
      %v4052 = vpop.f32.mrb[0].mxu0
      %v4053 = vadd.f32 0.0, %v4052
      %v4054 = vpop.f32.mrb[0].mxu0
      %v4055 = vadd.f32 0.0, %v4054
      %4056 = vdwg.mxu0
      %v4057 = vadd.f32 %v3973, %v4053
      %v4058 = vadd.f32 %v3974, %v4055
      %v4059 = vld [vmem:[%s6] sm:$0x7]
      %4061 = vset.pattern.permute.xlu0 0
      %4062 = vperm.xlu0 %4061, %v4059
      %v4063 = vpop.permute.xlu0 %4062
      %v4065 = vadd.f32 %v4057, %v4063
      %v4066 = vadd.f32 %v4058, %v4063
      %v4069 = vcombine.low %v4065, %v4066
      %4071 = vst [vmem:[%s278] sm:$0x77] %v4069
      %p4072 = scmp.lt.s32.totalorder %s18, 1
      %s4073 = scalar_select %p4072, %s18, 1
      %s4074 = smul.addr %s4073, 2
      %s4075 = smul.addr %s4074, 4
      %s4076 = scalar_lea.vmem %s7, %s4075
      // Predicated region
      $region49: #{srcnn_forward.1} parent=47 // pred_check
        %p4077 = pneg %p188
      $region50: #{srcnn_forward.1} parent=47 // pred_check_branch
        %4079 = sbr.rel (%p4077) target = $region52
      $region51: #{srcnn_forward.1} parent=47 // pred_region
        _
      $region52: #{srcnn_forward.1} parent=47 // pred_fallthru
        _
    $region48: #{srcnn_forward.1} parent=5 // pred_fallthru
      _
    %p4080 = scmp.le.s32.totalorder 2, %s13
    // Predicated region
    $region53: #{srcnn_forward.1} parent=5 // pred_check
      %p4081 = pneg %p4080
    $region54: #{srcnn_forward.1} parent=5 // pred_check_branch
      %4083 = sbr.rel (%p4081) target = $region56
    $region55: #{srcnn_forward.1} parent=5 // pred_region
      %s4084 = ssub.s32 %s13, 2
      // Predicated region
      $region57: #{srcnn_forward.1} parent=55 // pred_check
        %p4085 = pneg %p194
      $region58: #{srcnn_forward.1} parent=55 // pred_check_branch
        %4087 = sbr.rel (%p4085) target = $region60
      $region59: #{srcnn_forward.1} parent=55 // pred_region
        %p4088 = scmp.lt.s32.totalorder %s19, 1
        %s4089 = scalar_select %p4088, %s19, 1
        %s4090 = smul.addr %s4089, 2
        %s4091 = smul.addr %s4090, 4
        %s4092 = scalar_lea.vmem %s7, %s4091
      $region60: #{srcnn_forward.1} parent=55 // pred_fallthru
        _
    $region56: #{srcnn_forward.1} parent=5 // pred_fallthru
      _
  $region6: #{srcnn_forward.1} parent=0 // loop_footer
    %s17 = sadd.s32 1, %s13
  $region7: #{srcnn_forward.1} parent=0 // loop_footer_branch
    %12 = sbr.rel target = $region3
  $region8: #{srcnn_forward.1} parent=0 // loop_exit
    _

</llo_original>
